<compile_context>
chip_gen: v6e
topology: v6e:2x2x1
jax: 0.10.0
libtpu: 0.0.40
codegen_flags: <defaults>
</compile_context>

<pallas_src>
import jax
import jax.numpy as jnp
from jax.experimental import pallas as pl
from jax.experimental.pallas import tpu as pltpu

D_IN = 2048
D_HID = 512
EB_SIZE = 128
GROUP = 20          # fixed "20" dim from the reference reshape
BN_EPS = 1e-5


def _get_visual_kernel(x_ref, w1_ref, b1_ref, w2_ref, shift_ref, mask_ref, o_ref):
    # Linear(2048 -> 512) + bias + ReLU
    h = jnp.dot(x_ref[...], w1_ref[...], preferred_element_type=jnp.float32)
    h = jnp.maximum(h + b1_ref[...], 0.0)
    # Linear(512 -> 128, no bias); BN scale is pre-folded into W2 columns.
    y = jnp.dot(h, w2_ref[...], preferred_element_type=jnp.float32)
    y = y + shift_ref[...]                       # folded BN shift
    # outfit_mask broadcast over the embedding dim
    o_ref[...] = (y * mask_ref[...]).astype(o_ref.dtype)


def _vmem_capacity_bytes():
    try:
        cap = getattr(pltpu.get_tpu_info(), "vmem_capacity_bytes", None)
        if cap:
            return int(cap)
    except Exception:
        pass
    return 128 * 1024 * 1024   # v5e / v6e assumption


def _choose_row_tile(m, vmem_cap):
    # v7x: 64 MiB VMEM per TC -> cap 512 rows; v5e/v6e (128 MiB) -> 1024 rows.
    tile = 512 if vmem_cap <= 64 * 1024 * 1024 else 1024
    # Keep >= 2 grid steps where possible so dimension_semantics=("parallel",)
    # can shard steps across both TensorCores on v7x.
    while tile > 128 and m <= tile:
        tile //= 2
    return tile


def _vmem_limit_bytes(row_tile, vmem_cap):
    x_blk = row_tile * D_IN * 4 * 2             # x block, double-buffered
    o_blk = row_tile * EB_SIZE * 4 * 2          # out block, double-buffered
    m_blk = row_tile * 128 * 4 * 2              # mask block (lane-padded)
    wgt = (D_IN * D_HID + D_HID + D_HID * EB_SIZE + EB_SIZE) * 4  # single-buffered
    hid = row_tile * D_HID * 4                  # compiler-managed (tile,512) f32
    est = x_blk + o_blk + m_blk + wgt + hid + (12 << 20)          # + headroom
    return int(max(min(est, 48 << 20, vmem_cap - (16 << 20)), 32 << 20))


def get_visual_forward(x, outfit_mask, params):
    """GetVisual.forward in inference mode.

    x:           (B, L, 20, 2048) float32
    outfit_mask: (B, L, 20)       float32 (or bool-like)
    returns:     (B, L, 20, 128)
    """
    # TODO(synk): nn.Dropout is stochastic in training mode; implemented here
    #             as inference-mode identity (standard eval semantics).
    w1, b1, w2 = params["w1"], params["b1"], params["w2"]
    gamma, beta = params["gamma"], params["beta"]
    run_mean, run_var = params["mean"], params["var"]

    b, l, g, d = x.shape
    assert d == D_IN and g == GROUP
    m = b * l * g

    # Fold BatchNorm1d (eval, running stats): y * scale + shift.  The scale
    # folds into W2's columns once per call in XLA (free); kernel adds shift.
    scale = gamma / jnp.sqrt(run_var + BN_EPS)
    shift = beta - run_mean * scale
    w2_folded = w2 * scale[None, :]

    x2d = x.reshape(m, D_IN)                       # contiguous reshape, no copy
    mask2d = outfit_mask.reshape(m, 1).astype(x.dtype)

    vmem_cap = _vmem_capacity_bytes()
    row_tile = _choose_row_tile(m, vmem_cap)
    grid = (pl.cdiv(m, row_tile),)                 # ragged tail: Pallas edge block

    const = dict(pipeline_mode=pl.Buffered(1))     # grid-invariant: single-buffer

    out2d = pl.pallas_call(
        _get_visual_kernel,
        out_shape=jax.ShapeDtypeStruct((m, EB_SIZE), x.dtype),
        grid_spec=pltpu.PrefetchScalarGridSpec(
            num_scalar_prefetch=0,
            grid=grid,
            in_specs=[
                pl.BlockSpec((row_tile, D_IN), lambda i: (i, 0)),           # x rows
                pl.BlockSpec((D_IN, D_HID), lambda i: (0, 0), **const),     # W1
                pl.BlockSpec((1, D_HID), lambda i: (0, 0), **const),        # b1
                pl.BlockSpec((D_HID, EB_SIZE), lambda i: (0, 0), **const),  # W2*scale
                pl.BlockSpec((1, EB_SIZE), lambda i: (0, 0), **const),      # BN shift
                pl.BlockSpec((row_tile, 1), lambda i: (i, 0)),              # mask rows
            ],
            out_specs=pl.BlockSpec((row_tile, EB_SIZE), lambda i: (i, 0)),
        ),
        compiler_params=pltpu.CompilerParams(
            dimension_semantics=("parallel",),
            vmem_limit_bytes=_vmem_limit_bytes(row_tile, vmem_cap),
        ),
        cost_estimate=pl.CostEstimate(
            flops=2 * m * (D_IN * D_HID + D_HID * EB_SIZE),
            bytes_accessed=(m * (D_IN + EB_SIZE + 1)
                            + D_IN * D_HID + D_HID
                            + D_HID * EB_SIZE + EB_SIZE) * 4,
            transcendentals=0,
        ),
    )(x2d, w1, b1.reshape(1, D_HID), w2_folded,
      shift.reshape(1, EB_SIZE), mask2d)

    return out2d.reshape(b, l, GROUP, EB_SIZE)


def _reference(x, outfit_mask, params):
    """Pure-JAX reference of GetVisual.forward (inference mode)."""
    w1, b1, w2 = params["w1"], params["b1"], params["w2"]
    gamma, beta = params["gamma"], params["beta"]
    mean, var = params["mean"], params["var"]
    b, l, g, d = x.shape
    x2d = x.reshape(-1, d)
    h = jnp.maximum(x2d @ w1 + b1, 0.0)
    y = h @ w2
    y = gamma * (y - mean) / jnp.sqrt(var + BN_EPS) + beta
    y = y.reshape(b, l, g, -1)
    return y * outfit_mask[..., None]


if __name__ == "__main__":
    key = jax.random.PRNGKey(0)
    keys = jax.random.split(key, 9)

    B, L = 2, 4  # small shapes: x = (2, 4, 20, 2048), mask = (2, 4, 20)
    x = jax.random.normal(keys[0], (B, L, GROUP, D_IN), dtype=jnp.float32)
    outfit_mask = jax.random.bernoulli(
        keys[1], 0.7, (B, L, GROUP)).astype(jnp.float32)

    params = dict(
        w1=jax.random.normal(keys[2], (D_IN, D_HID), jnp.float32) * 0.02,
        b1=jax.random.normal(keys[3], (D_HID,), jnp.float32) * 0.02,
        w2=jax.random.normal(keys[4], (D_HID, EB_SIZE), jnp.float32) * 0.02,
        gamma=jax.random.uniform(keys[5], (EB_SIZE,), jnp.float32, 0.5, 1.5),
        beta=jax.random.normal(keys[6], (EB_SIZE,), jnp.float32) * 0.1,
        mean=jax.random.normal(keys[7], (EB_SIZE,), jnp.float32) * 0.1,
        var=jax.random.uniform(keys[8], (EB_SIZE,), jnp.float32, 0.5, 1.5),
    )

    out = jax.block_until_ready(get_visual_forward(x, outfit_mask, params))
    ref = jax.block_until_ready(_reference(x, outfit_mask, params))

    assert out.shape == (B, L, GROUP, EB_SIZE), out.shape
    assert out.dtype == x.dtype
    max_err = float(jnp.max(jnp.abs(out - ref)))
    assert jnp.allclose(out, ref, rtol=1e-3, atol=1e-3), max_err
    print("KERNEL_OK")
</pallas_src>

<mosaic_0001>
module attributes {stable_mosaic.version = 11 : i64} {
  func.func @_get_visual_kernel(%arg0: i32, %arg1: memref<128x2048xf32, #tpu.memory_space<vmem>>, %arg2: memref<2048x512xf32, #tpu.memory_space<vmem>>, %arg3: memref<1x512xf32, #tpu.memory_space<vmem>>, %arg4: memref<512x128xf32, #tpu.memory_space<vmem>>, %arg5: memref<1x128xf32, #tpu.memory_space<vmem>>, %arg6: memref<128x1xf32, #tpu.memory_space<vmem>>, %arg7: memref<128x128xf32, #tpu.memory_space<vmem>>) attributes {dimension_semantics = [#tpu.dimension_semantics<parallel>], iteration_bounds = array<i64: 2>, scalar_prefetch = 0 : i64, scratch_operands = 0 : i64, tpu.core_type = #tpu.core_type<tc>, window_params = [{transform_indices = @transform_0, window_bounds = array<i64: 128, 2048>}, {pipeline_mode = #tpu.pipeline_mode<synchronous>, transform_indices = @transform_1, window_bounds = array<i64: 2048, 512>}, {pipeline_mode = #tpu.pipeline_mode<synchronous>, transform_indices = @transform_2, window_bounds = array<i64: 1, 512>}, {pipeline_mode = #tpu.pipeline_mode<synchronous>, transform_indices = @transform_3, window_bounds = array<i64: 512, 128>}, {pipeline_mode = #tpu.pipeline_mode<synchronous>, transform_indices = @transform_4, window_bounds = array<i64: 1, 128>}, {transform_indices = @transform_5, window_bounds = array<i64: 128, 1>}, {transform_indices = @transform_6, window_bounds = array<i64: 128, 128>}]} {
    %c0 = arith.constant 0 : index
    %c0_0 = arith.constant 0 : index
    %0 = vector.load %arg1[%c0, %c0_0] : memref<128x2048xf32, #tpu.memory_space<vmem>>, vector<128x2048xf32>
    %c0_1 = arith.constant 0 : index
    %c0_2 = arith.constant 0 : index
    %1 = vector.load %arg2[%c0_1, %c0_2] : memref<2048x512xf32, #tpu.memory_space<vmem>>, vector<2048x512xf32>
    %cst = arith.constant dense<0.000000e+00> : vector<128x512xf32>
    %2 = tpu.matmul %0, %1, %cst {dimension_numbers = #tpu.dot_dimension_numbers<[1], [0], [0], [1], [0, 0, 1, 1], [], []>} : vector<128x2048xf32>, vector<2048x512xf32>, vector<128x512xf32> -> vector<128x512xf32>
    %c0_3 = arith.constant 0 : index
    %c0_4 = arith.constant 0 : index
    %3 = vector.load %arg3[%c0_3, %c0_4] : memref<1x512xf32, #tpu.memory_space<vmem>>, vector<1x512xf32>
    %4 = vector.broadcast %3 : vector<1x512xf32> to vector<128x512xf32>
    %5 = arith.addf %2, %4 : vector<128x512xf32>
    %cst_5 = arith.constant 0.000000e+00 : f32
    %6 = vector.broadcast %cst_5 : f32 to vector<128x512xf32>
    %7 = arith.maximumf %5, %6 : vector<128x512xf32>
    %c0_6 = arith.constant 0 : index
    %c0_7 = arith.constant 0 : index
    %8 = vector.load %arg4[%c0_6, %c0_7] : memref<512x128xf32, #tpu.memory_space<vmem>>, vector<512x128xf32>
    %cst_8 = arith.constant dense<0.000000e+00> : vector<128x128xf32>
    %9 = tpu.matmul %7, %8, %cst_8 {dimension_numbers = #tpu.dot_dimension_numbers<[1], [0], [0], [1], [0, 0, 1, 1], [], []>} : vector<128x512xf32>, vector<512x128xf32>, vector<128x128xf32> -> vector<128x128xf32>
    %c0_9 = arith.constant 0 : index
    %c0_10 = arith.constant 0 : index
    %10 = vector.load %arg5[%c0_9, %c0_10] : memref<1x128xf32, #tpu.memory_space<vmem>>, vector<1x128xf32>
    %11 = vector.broadcast %10 : vector<1x128xf32> to vector<128x128xf32>
    %12 = arith.addf %9, %11 : vector<128x128xf32>
    %c0_11 = arith.constant 0 : index
    %c0_12 = arith.constant 0 : index
    %13 = vector.load %arg6[%c0_11, %c0_12] : memref<128x1xf32, #tpu.memory_space<vmem>>, vector<128x1xf32>
    %14 = vector.broadcast %13 : vector<128x1xf32> to vector<128x128xf32>
    %15 = arith.mulf %12, %14 : vector<128x128xf32>
    %c0_13 = arith.constant 0 : index
    %c0_14 = arith.constant 0 : index
    %16 = vector.load %arg7[%c0_13, %c0_14] : memref<128x128xf32, #tpu.memory_space<vmem>>, vector<128x128xf32>
    tpu.vector_store %arg7[%c0_13, %c0_14], %15 {strides = array<i32>} : memref<128x128xf32, #tpu.memory_space<vmem>>, vector<128x128xf32>,
    return
  }
  func.func @transform_0(%arg0: i32) -> (i32, i32) {
    %c0_i32 = arith.constant 0 : i32
    %c0_i32_0 = arith.constant 0 : i32
    return %arg0, %c0_i32 : i32, i32
  }
  func.func @transform_1(%arg0: i32) -> (i32, i32) {
    %c0_i32 = arith.constant 0 : i32
    %c0_i32_0 = arith.constant 0 : i32
    %c0_i32_1 = arith.constant 0 : i32
    return %c0_i32, %c0_i32_0 : i32, i32
  }
  func.func @transform_2(%arg0: i32) -> (i32, i32) {
    %c0_i32 = arith.constant 0 : i32
    %c0_i32_0 = arith.constant 0 : i32
    %c0_i32_1 = arith.constant 0 : i32
    return %c0_i32, %c0_i32_0 : i32, i32
  }
  func.func @transform_3(%arg0: i32) -> (i32, i32) {
    %c0_i32 = arith.constant 0 : i32
    %c0_i32_0 = arith.constant 0 : i32
    %c0_i32_1 = arith.constant 0 : i32
    return %c0_i32, %c0_i32_0 : i32, i32
  }
  func.func @transform_4(%arg0: i32) -> (i32, i32) {
    %c0_i32 = arith.constant 0 : i32
    %c0_i32_0 = arith.constant 0 : i32
    %c0_i32_1 = arith.constant 0 : i32
    return %c0_i32, %c0_i32_0 : i32, i32
  }
  func.func @transform_5(%arg0: i32) -> (i32, i32) {
    %c0_i32 = arith.constant 0 : i32
    %c0_i32_0 = arith.constant 0 : i32
    return %arg0, %c0_i32 : i32, i32
  }
  func.func @transform_6(%arg0: i32) -> (i32, i32) {
    %c0_i32 = arith.constant 0 : i32
    %c0_i32_0 = arith.constant 0 : i32
    return %arg0, %c0_i32 : i32, i32
  }
}

</mosaic_0001>

<llo_original>
// kernel: tpu_custom_call.1
$region0: #{tpu_custom_call.1}
  #allocation0 [shape = 'u32[]', space=smem, size = 0x4, offset = 0x4, fixed_abs, tag = 'smem constant byte address 0x4 - core index']
  #allocation1 [shape = 'u32[144,128]{1,0:T(1,128)}', space=vmem, size = 0x12000, scoped, tag = 'internal scratch']
  %s0 = inlined_call_operand.hbm [shape: f32[160,2048], index: 0, kind: input, shape index: {}]
  %s1 = inlined_call_operand.hbm [shape: f32[2048,512], index: 1, kind: input, shape index: {}]
  %s2 = inlined_call_operand.hbm [shape: f32[1,512], index: 2, kind: input, shape index: {}]
  %s3 = inlined_call_operand.hbm [shape: f32[512,128], index: 3, kind: input, shape index: {}]
  %s4 = inlined_call_operand.hbm [shape: f32[1,128], index: 4, kind: input, shape index: {}]
  %s5 = inlined_call_operand.vmem [shape: f32[160,1], index: 5, kind: input, shape index: {}]
  %s6 = inlined_call_operand.hbm [shape: f32[160,128], index: 6, kind: output, shape index: {}]
  %s7 = sld [smem:[#allocation0]]
  $region77: #{tpu_custom_call.1} parent=0
    _
  %s9 = ssub.s32 1, %s7
  %s10 = scalar_select 0, %s9, %s7
  $region1: #{tpu_custom_call.1} parent=0
    #allocation2 [shape = 'u8[2097152]{0}', space=vmem, size = 0x200000, scoped, tag = 'input window, operand 0']
    #allocation3 [shape = 's32[2]{0}', space=sflag, size = 0x8, scoped, tag = 'scoped memory for tpu_custom_call.1']
    #allocation4 [shape = 's32[2]{0}', space=sflag, size = 0x8, scoped, tag = 'scoped memory for tpu_custom_call.1']
    #allocation5 [shape = 'u8[4194304]{0}', space=vmem, size = 0x400000, scoped, tag = 'input window, operand 1, single buffered']
    #allocation6 [shape = 's32[1]{0}', space=sflag, size = 0x4, scoped, tag = 'scoped memory for tpu_custom_call.1']
    #allocation7 [shape = 'u8[2048]{0}', space=vmem, size = 0x800, scoped, tag = 'input window, operand 2, single buffered']
    #allocation8 [shape = 'u8[262144]{0}', space=vmem, size = 0x40000, scoped, tag = 'input window, operand 3, single buffered']
    #allocation9 [shape = 's32[1]{0}', space=sflag, size = 0x4, scoped, tag = 'scoped memory for tpu_custom_call.1']
    #allocation10 [shape = 'u8[512]{0}', space=vmem, size = 0x400, scoped, tag = 'input window, operand 4, single buffered']
    #allocation11 [shape = 'u8[131072]{0}', space=vmem, size = 0x20000, scoped, tag = 'output window, operand 0']
    %11 = vsyncpa [#allocation3], 0
    %s12 = scalar_lea.sflag [#allocation3], 1
    %13 = vsyncpa %s12, 0
    %14 = vsyncpa [#allocation6], 0
    %15 = vsyncpa [#allocation9], 0
    %16 = vsyncpa [#allocation4], 0
    %s17 = scalar_lea.sflag [#allocation4], 1
    %18 = vsyncpa %s17, 0
    loop: start=0, step=1, limit=4
    $region2: #{tpu_custom_call.1} parent=1 // loop_pre_header
      _
    $region3: #{tpu_custom_call.1} parent=1 // loop_header
      %s20 = sphi 0, %s24
      %p21 = scmp.ge.s32.totalorder %s20, 4
      %s30 = sphi 0, %s32
      %s33 = sphi 0, %s30
      %s34 = sphi 0, %s33
      %s50 = sphi 0, %s34
      %s54 = sphi 0, %s54
      %s56 = sphi 0, %s54
      %s57 = sphi 0, %s56
      %s71 = sphi 0, %s57
      %s75 = sphi 0, %s75
      %s77 = sphi 0, %s75
      %s78 = sphi 0, %s77
      %s92 = sphi 0, %s78
      %s96 = sphi 0, %s96
      %s98 = sphi 0, %s96
      %s99 = sphi 0, %s98
      %s113 = sphi 0, %s99
      %s117 = sphi 0, %s117
      %s119 = sphi 0, %s117
      %s120 = sphi 0, %s119
      %s134 = sphi 0, %s120
      %s140 = sphi 0, %s142
      %s143 = sphi 0, %s140
      %s144 = sphi 0, %s143
      %s160 = sphi 0, %s144
      %s166 = sphi 0, %s168
      %s169 = sphi 0, %s166
      %s170 = sphi 0, %s169
      %s186 = sphi 0, %s170
    $region4: #{tpu_custom_call.1} parent=1 // loop_header_branch
      %23 = sbr.rel (%p21) target = $region8
    $region5: #{tpu_custom_call.1} parent=1 // loop_body
      %s25 = ssub.s32 %s20, 1
      %s26 = ssub.s32 %s20, 2
      %s27 = sadd.s32 %s20, 1
      %s28 = ssub.s32 %s20, %s27
      %p29 = scmp.eq.s32.totalorder %s28, 0
      %s31 = sadd.s32 %s30, 1
      %s32 = scalar_select %p29, %s30, %s31
      %p35 = pneg %p29
      %p36 = scmp.eq.s32.totalorder %s20, 1
      %p37 = por %p35, %p36
      %p38 = scmp.ne.s32.totalorder %s30, %s33
      %p39 = scmp.eq.s32.totalorder %s20, 0
      %p40 = por %p38, %p39
      %p41 = scmp.ne.s32.totalorder %s30, %s33
      %p42 = scmp.eq.s32.totalorder %s25, 1
      %p43 = por %p41, %p42
      %p44 = scmp.ne.s32.totalorder %s33, %s34
      %p45 = scmp.eq.s32.totalorder %s25, 0
      %p46 = por %p44, %p45
      %p47 = scmp.ne.s32.totalorder %s33, %s34
      %p48 = scmp.eq.s32.totalorder %s26, 1
      %p49 = por %p47, %p48
      %p51 = scmp.ne.s32.totalorder %s34, %s50
      %p52 = scmp.eq.s32.totalorder %s26, 0
      %p53 = por %p51, %p52
      %s55 = sadd.s32 %s54, 1
      %p58 = scmp.eq.s32.totalorder %s20, 1
      %p59 = scmp.ne.s32.totalorder %s54, %s56
      %p60 = scmp.eq.s32.totalorder %s20, 0
      %p61 = por %p59, %p60
      %p62 = scmp.ne.s32.totalorder %s54, %s56
      %p63 = scmp.eq.s32.totalorder %s25, 1
      %p64 = por %p62, %p63
      %p65 = scmp.ne.s32.totalorder %s56, %s57
      %p66 = scmp.eq.s32.totalorder %s25, 0
      %p67 = por %p65, %p66
      %p68 = scmp.ne.s32.totalorder %s56, %s57
      %p69 = scmp.eq.s32.totalorder %s26, 1
      %p70 = por %p68, %p69
      %p72 = scmp.ne.s32.totalorder %s57, %s71
      %p73 = scmp.eq.s32.totalorder %s26, 0
      %p74 = por %p72, %p73
      %s76 = sadd.s32 %s75, 1
      %p79 = scmp.eq.s32.totalorder %s20, 1
      %p80 = scmp.ne.s32.totalorder %s75, %s77
      %p81 = scmp.eq.s32.totalorder %s20, 0
      %p82 = por %p80, %p81
      %p83 = scmp.ne.s32.totalorder %s75, %s77
      %p84 = scmp.eq.s32.totalorder %s25, 1
      %p85 = por %p83, %p84
      %p86 = scmp.ne.s32.totalorder %s77, %s78
      %p87 = scmp.eq.s32.totalorder %s25, 0
      %p88 = por %p86, %p87
      %p89 = scmp.ne.s32.totalorder %s77, %s78
      %p90 = scmp.eq.s32.totalorder %s26, 1
      %p91 = por %p89, %p90
      %p93 = scmp.ne.s32.totalorder %s78, %s92
      %p94 = scmp.eq.s32.totalorder %s26, 0
      %p95 = por %p93, %p94
      %s97 = sadd.s32 %s96, 1
      %p100 = scmp.eq.s32.totalorder %s20, 1
      %p101 = scmp.ne.s32.totalorder %s96, %s98
      %p102 = scmp.eq.s32.totalorder %s20, 0
      %p103 = por %p101, %p102
      %p104 = scmp.ne.s32.totalorder %s96, %s98
      %p105 = scmp.eq.s32.totalorder %s25, 1
      %p106 = por %p104, %p105
      %p107 = scmp.ne.s32.totalorder %s98, %s99
      %p108 = scmp.eq.s32.totalorder %s25, 0
      %p109 = por %p107, %p108
      %p110 = scmp.ne.s32.totalorder %s98, %s99
      %p111 = scmp.eq.s32.totalorder %s26, 1
      %p112 = por %p110, %p111
      %p114 = scmp.ne.s32.totalorder %s99, %s113
      %p115 = scmp.eq.s32.totalorder %s26, 0
      %p116 = por %p114, %p115
      %s118 = sadd.s32 %s117, 1
      %p121 = scmp.eq.s32.totalorder %s20, 1
      %p122 = scmp.ne.s32.totalorder %s117, %s119
      %p123 = scmp.eq.s32.totalorder %s20, 0
      %p124 = por %p122, %p123
      %p125 = scmp.ne.s32.totalorder %s117, %s119
      %p126 = scmp.eq.s32.totalorder %s25, 1
      %p127 = por %p125, %p126
      %p128 = scmp.ne.s32.totalorder %s119, %s120
      %p129 = scmp.eq.s32.totalorder %s25, 0
      %p130 = por %p128, %p129
      %p131 = scmp.ne.s32.totalorder %s119, %s120
      %p132 = scmp.eq.s32.totalorder %s26, 1
      %p133 = por %p131, %p132
      %p135 = scmp.ne.s32.totalorder %s120, %s134
      %p136 = scmp.eq.s32.totalorder %s26, 0
      %p137 = por %p135, %p136
      %s138 = ssub.s32 %s20, %s27
      %p139 = scmp.eq.s32.totalorder %s138, 0
      %s141 = sadd.s32 %s140, 1
      %s142 = scalar_select %p139, %s140, %s141
      %p145 = pneg %p139
      %p146 = scmp.eq.s32.totalorder %s20, 1
      %p147 = por %p145, %p146
      %p148 = scmp.ne.s32.totalorder %s140, %s143
      %p149 = scmp.eq.s32.totalorder %s20, 0
      %p150 = por %p148, %p149
      %p151 = scmp.ne.s32.totalorder %s140, %s143
      %p152 = scmp.eq.s32.totalorder %s25, 1
      %p153 = por %p151, %p152
      %p154 = scmp.ne.s32.totalorder %s143, %s144
      %p155 = scmp.eq.s32.totalorder %s25, 0
      %p156 = por %p154, %p155
      %p157 = scmp.ne.s32.totalorder %s143, %s144
      %p158 = scmp.eq.s32.totalorder %s26, 1
      %p159 = por %p157, %p158
      %p161 = scmp.ne.s32.totalorder %s144, %s160
      %p162 = scmp.eq.s32.totalorder %s26, 0
      %p163 = por %p161, %p162
      %s164 = ssub.s32 %s20, %s27
      %p165 = scmp.eq.s32.totalorder %s164, 0
      %s167 = sadd.s32 %s166, 1
      %s168 = scalar_select %p165, %s166, %s167
      %p171 = pneg %p165
      %p172 = scmp.eq.s32.totalorder %s20, 1
      %p173 = por %p171, %p172
      %p174 = scmp.ne.s32.totalorder %s166, %s169
      %p175 = scmp.eq.s32.totalorder %s20, 0
      %p176 = por %p174, %p175
      %p177 = scmp.ne.s32.totalorder %s166, %s169
      %p178 = scmp.eq.s32.totalorder %s25, 1
      %p179 = por %p177, %p178
      %p180 = scmp.ne.s32.totalorder %s169, %s170
      %p181 = scmp.eq.s32.totalorder %s25, 0
      %p182 = por %p180, %p181
      %p183 = scmp.ne.s32.totalorder %s169, %s170
      %p184 = scmp.eq.s32.totalorder %s26, 1
      %p185 = por %p183, %p184
      %p187 = scmp.ne.s32.totalorder %s170, %s186
      %p188 = scmp.eq.s32.totalorder %s26, 0
      %p189 = por %p187, %p188
      %p190 = scmp.le.s32.totalorder 1, %s20
      %p191 = scmp.lt.s32.totalorder %s20, 3
      %p192 = pnand %p190, %p191
      %p193 = pneg %p192
      // Predicated region
      $region9: #{tpu_custom_call.1} parent=5 // pred_check
        _
      $region10: #{tpu_custom_call.1} parent=5 // pred_check_branch
        %195 = sbr.rel (%p192) target = $region12
      $region11: #{tpu_custom_call.1} parent=5 // pred_region
        %s196 = ssub.s32 %s20, 1
        // Predicated region
        $region13: #{tpu_custom_call.1} parent=11 // pred_check
          %p197 = pneg %p67
        $region14: #{tpu_custom_call.1} parent=11 // pred_check_branch
          %199 = sbr.rel (%p197) target = $region16
        $region15: #{tpu_custom_call.1} parent=11 // pred_region
          %s201 = ssub.s32 131072, 131072
          %202 = vsyncadd [#allocation6], %s201
          %s203 = sshll.u32 [#allocation5], 4
          %s204 = int_to_ptr.vmem [resolvable:$true] %s203
          %209 = dma.hbm_to_vmem [thread:$0]  %s1, 131072, %s204, [#allocation6], 512, 512, 32
        $region16: #{tpu_custom_call.1} parent=11 // pred_fallthru
          _
        // Predicated region
        $region17: #{tpu_custom_call.1} parent=11 // pred_check
          %p210 = pneg %p88
        $region18: #{tpu_custom_call.1} parent=11 // pred_check_branch
          %212 = sbr.rel (%p210) target = $region20
        $region19: #{tpu_custom_call.1} parent=11 // pred_region
          %s214 = ssub.s32 64, 64
          %215 = vsyncadd [#allocation6], %s214
          %s217 = sshll.u32 [#allocation7], 4
          %s218 = int_to_ptr.vmem [resolvable:$true] %s217
          %220 = dma.hbm_to_vmem [thread:$0]  %s2, 64, %s218, [#allocation6]
        $region20: #{tpu_custom_call.1} parent=11 // pred_fallthru
          _
        // Predicated region
        $region21: #{tpu_custom_call.1} parent=11 // pred_check
          %p221 = pneg %p109
        $region22: #{tpu_custom_call.1} parent=11 // pred_check_branch
          %223 = sbr.rel (%p221) target = $region24
        $region23: #{tpu_custom_call.1} parent=11 // pred_region
          %s225 = ssub.s32 8192, 8192
          %226 = vsyncadd [#allocation9], %s225
          %s227 = sshll.u32 [#allocation8], 4
          %s228 = int_to_ptr.vmem [resolvable:$true] %s227
          %233 = dma.hbm_to_vmem [thread:$0]  %s3, 8192, %s228, [#allocation9], 128, 128, 8
        $region24: #{tpu_custom_call.1} parent=11 // pred_fallthru
          _
        // Predicated region
        $region25: #{tpu_custom_call.1} parent=11 // pred_check
          %p234 = pneg %p130
        $region26: #{tpu_custom_call.1} parent=11 // pred_check_branch
          %236 = sbr.rel (%p234) target = $region28
        $region27: #{tpu_custom_call.1} parent=11 // pred_region
          %s238 = ssub.s32 16, 16
          %239 = vsyncadd [#allocation9], %s238
          %s241 = sshll.u32 [#allocation10], 4
          %s242 = int_to_ptr.vmem [resolvable:$true] %s241
          %244 = dma.hbm_to_vmem [thread:$0]  %s4, 16, %s242, [#allocation9]
        $region28: #{tpu_custom_call.1} parent=11 // pred_fallthru
          _
      $region12: #{tpu_custom_call.1} parent=5 // pred_fallthru
        _
      %p245 = scmp.lt.s32.totalorder %s20, 2
      // Predicated region
      $region29: #{tpu_custom_call.1} parent=5 // pred_check
        %p246 = pneg %p245
      $region30: #{tpu_custom_call.1} parent=5 // pred_check_branch
        %248 = sbr.rel (%p246) target = $region32
      $region31: #{tpu_custom_call.1} parent=5 // pred_region
        // Predicated region
        $region33: #{tpu_custom_call.1} parent=31 // pred_check
          %p249 = pneg %p40
        $region34: #{tpu_custom_call.1} parent=31 // pred_check_branch
          %251 = sbr.rel (%p249) target = $region36
        $region35: #{tpu_custom_call.1} parent=31 // pred_region
          %s252 = sand.u32 %s30, 1
          %s253 = scalar_lea.sflag [#allocation3], %s252
          %s254 = sand.u32 %s30, 1
          %s255 = smul.addr %s254, 2048
          %s256 = scalar_lea.vmem [#allocation2], %s255
          %s257 = smul.u32 16, %s20
          %s258 = ssub.s32 20, %s257
          %p259 = scmp.lt.s32.totalorder %s258, 16
          %s260 = scalar_select %p259, %s258, 16
          %s261 = smul.u32 128, %s260
          %s262 = smul.u32 %s261, 16
          %s264 = ssub.s32 32768, %s262
          %265 = vsyncadd %s253, %s264
          %p266 = scmp.ne.s32.totalorder 0, %s262
          %s267 = smul.addr %s257, 16
          %s268 = smul.addr %s267, 128
          %s269 = scalar_lea.hbm %s0, %s268
          %s270 = smul.u32 128, %s260
          %s271 = sshll.u32 %s256, 4
          %s272 = int_to_ptr.vmem [resolvable:$true] %s271
          %s273 = sshll.u32 %s270, 4
          %277 = dma.hbm_to_vmem [thread:$0]  (%p266), %s269, %s273, %s272, %s253, 2048, 2048, 128
        $region36: #{tpu_custom_call.1} parent=31 // pred_fallthru
          _
        // Predicated region
        $region37: #{tpu_custom_call.1} parent=31 // pred_check
          %p278 = pneg %p150
        $region38: #{tpu_custom_call.1} parent=31 // pred_check_branch
          %280 = sbr.rel (%p278) target = $region40
        $region39: #{tpu_custom_call.1} parent=31 // pred_region
          %s281 = smul.u32 16, %s20
          %s282 = ssub.s32 20, %s281
          %p283 = scmp.lt.s32.totalorder %s282, 16
          %s284 = scalar_select %p283, %s282, 16
          %s285 = smul.u32 128, %s284
          %p286 = scmp.lt.s32.totalorder %s281, 19
          %s287 = scalar_select %p286, %s281, 19
          %s288 = smul.addr %s287, 8
          %s289 = scalar_lea.vmem %s5, %s288
          %s290 = smul.u32 16, %s20
          %s291 = ssub.s32 20, %s290
          %p292 = scmp.lt.s32.totalorder %s291, 16
          %s293 = scalar_select %p292, %s291, 16
          %s294 = smul.u32 128, %s293
        $region40: #{tpu_custom_call.1} parent=31 // pred_fallthru
          _
      $region32: #{tpu_custom_call.1} parent=5 // pred_fallthru
        _
      %p295 = scmp.le.s32.totalorder 1, %s20
      %p296 = scmp.lt.s32.totalorder %s20, 3
      %p297 = pnand %p295, %p296
      %p298 = pneg %p297
      // Predicated region
      $region41: #{tpu_custom_call.1} parent=5 // pred_check
        _
      $region42: #{tpu_custom_call.1} parent=5 // pred_check_branch
        %300 = sbr.rel (%p297) target = $region44
      $region43: #{tpu_custom_call.1} parent=5 // pred_region
        %s301 = ssub.s32 %s20, 1
        %s302 = sand.u32 %s33, 1
        %s303 = scalar_lea.sflag [#allocation3], %s302
        %s304 = sand.u32 %s33, 1
        %s305 = smul.addr %s304, 2048
        %s306 = scalar_lea.vmem [#allocation2], %s305
        // Predicated region
        $region45: #{tpu_custom_call.1} parent=43 // pred_check
          %p307 = pneg %p46
        $region46: #{tpu_custom_call.1} parent=43 // pred_check_branch
          %309 = sbr.rel (%p307) target = $region48
        $region47: #{tpu_custom_call.1} parent=43 // pred_region
          %310 = dma.done %s303, 32768
        $region48: #{tpu_custom_call.1} parent=43 // pred_fallthru
          _
        // Predicated region
        $region49: #{tpu_custom_call.1} parent=43 // pred_check
          %p311 = pneg %p67
        $region50: #{tpu_custom_call.1} parent=43 // pred_check_branch
          %313 = sbr.rel (%p311) target = $region52
        $region51: #{tpu_custom_call.1} parent=43 // pred_region
          %314 = dma.done [#allocation6], 131072
        $region52: #{tpu_custom_call.1} parent=43 // pred_fallthru
          _
        // Predicated region
        $region53: #{tpu_custom_call.1} parent=43 // pred_check
          %p315 = pneg %p88
        $region54: #{tpu_custom_call.1} parent=43 // pred_check_branch
          %317 = sbr.rel (%p315) target = $region56
        $region55: #{tpu_custom_call.1} parent=43 // pred_region
          %318 = dma.done [#allocation6], 64
        $region56: #{tpu_custom_call.1} parent=43 // pred_fallthru
          _
        // Predicated region
        $region57: #{tpu_custom_call.1} parent=43 // pred_check
          %p319 = pneg %p109
        $region58: #{tpu_custom_call.1} parent=43 // pred_check_branch
          %321 = sbr.rel (%p319) target = $region60
        $region59: #{tpu_custom_call.1} parent=43 // pred_region
          %322 = dma.done [#allocation9], 8192
        $region60: #{tpu_custom_call.1} parent=43 // pred_fallthru
          _
        // Predicated region
        $region61: #{tpu_custom_call.1} parent=43 // pred_check
          %p323 = pneg %p130
        $region62: #{tpu_custom_call.1} parent=43 // pred_check_branch
          %325 = sbr.rel (%p323) target = $region64
        $region63: #{tpu_custom_call.1} parent=43 // pred_region
          %326 = dma.done [#allocation9], 16
        $region64: #{tpu_custom_call.1} parent=43 // pred_fallthru
          _
        %s327 = sand.u32 %s33, 1
        %s328 = scalar_lea.sflag [#allocation3], %s327
        %s329 = sand.u32 %s33, 1
        %s330 = smul.addr %s329, 2048
        %s331 = scalar_lea.vmem [#allocation2], %s330
        %p332 = pneg %p46
        %p333 = pneg %p43
        %p334 = pneg %p67
        %p335 = pneg %p64
        %p336 = pneg %p88
        %p337 = pneg %p85
        %p338 = pneg %p109
        %p339 = pneg %p106
        %p340 = pneg %p130
        %p341 = pneg %p127
        %s342 = smul.u32 16, %s25
        %s343 = ssub.s32 20, %s342
        %p344 = scmp.lt.s32.totalorder %s343, 16
        %s345 = scalar_select %p344, %s343, 16
        %s346 = smul.u32 128, %s345
        %p347 = scmp.lt.s32.totalorder %s342, 19
        %s348 = scalar_select %p347, %s342, 19
        %s349 = smul.addr %s348, 8
        %s350 = scalar_lea.vmem %s5, %s349
        %p351 = pneg %p156
        %p352 = pneg %p153
        %p353 = pneg %p182
        %p354 = pneg %p179
        %s355 = sand.u32 %s169, 1
        %s356 = scalar_lea.sflag [#allocation4], %s355
        %s357 = sand.u32 %s169, 1
        %s358 = smul.addr %s357, 128
        %s359 = scalar_lea.vmem [#allocation11], %s358
        %s360 = smul.u32 16, %s25
        %s361 = ssub.s32 20, %s360
        %p362 = scmp.lt.s32.totalorder %s361, 16
        %s363 = scalar_select %p362, %s361, 16
        %s364 = smul.u32 128, %s363
        %s365 = smul.u32 %s364, 16
        %s366 = smul.u32 16, %s25
        %s367 = ssub.s32 20, %s366
        %p368 = scmp.lt.s32.totalorder %s367, 16
        %s369 = scalar_select %p368, %s367, 16
        %s370 = smul.u32 128, %s369
        %p371 = scmp.lt.s32.totalorder %s366, 19
        %s372 = scalar_select %p371, %s366, 19
        %s373 = smul.addr %s372, 8
        %s374 = scalar_lea.vmem %s5, %s373
        %s375 = smul.u32 16, %s25
        %s376 = ssub.s32 20, %s375
        %p377 = scmp.lt.s32.totalorder %s376, 16
        %s378 = scalar_select %p377, %s376, 16
        %s379 = smul.u32 128, %s378
        %s380 = smul.u32 16, %s25
        %s381 = ssub.s32 20, %s380
        %p382 = scmp.lt.s32.totalorder %s381, 16
        %s383 = scalar_select %p382, %s381, 16
        %s384 = smul.u32 128, %s383
        %v385 = vld [vmem:[%s306] sm:$0xff]
        %v386 = vld [vmem:[%s306 + $0x8] sm:$0xff]
        %v387 = vld [vmem:[%s306 + $0x10] sm:$0xff]
        %v388 = vld [vmem:[%s306 + $0x18] sm:$0xff]
        %v389 = vld [vmem:[%s306 + $0x20] sm:$0xff]
        %v390 = vld [vmem:[%s306 + $0x28] sm:$0xff]
        %v391 = vld [vmem:[%s306 + $0x30] sm:$0xff]
        %v392 = vld [vmem:[%s306 + $0x38] sm:$0xff]
        %v393 = vld [vmem:[%s306 + $0x40] sm:$0xff]
        %v394 = vld [vmem:[%s306 + $0x48] sm:$0xff]
        %v395 = vld [vmem:[%s306 + $0x50] sm:$0xff]
        %v396 = vld [vmem:[%s306 + $0x58] sm:$0xff]
        %v397 = vld [vmem:[%s306 + $0x60] sm:$0xff]
        %v398 = vld [vmem:[%s306 + $0x68] sm:$0xff]
        %v399 = vld [vmem:[%s306 + $0x70] sm:$0xff]
        %v400 = vld [vmem:[%s306 + $0x78] sm:$0xff]
        %v401 = vld [vmem:[%s306 + $0x80] sm:$0xff]
        %v402 = vld [vmem:[%s306 + $0x88] sm:$0xff]
        %v403 = vld [vmem:[%s306 + $0x90] sm:$0xff]
        %v404 = vld [vmem:[%s306 + $0x98] sm:$0xff]
        %v405 = vld [vmem:[%s306 + $0xa0] sm:$0xff]
        %v406 = vld [vmem:[%s306 + $0xa8] sm:$0xff]
        %v407 = vld [vmem:[%s306 + $0xb0] sm:$0xff]
        %v408 = vld [vmem:[%s306 + $0xb8] sm:$0xff]
        %v409 = vld [vmem:[%s306 + $0xc0] sm:$0xff]
        %v410 = vld [vmem:[%s306 + $0xc8] sm:$0xff]
        %v411 = vld [vmem:[%s306 + $0xd0] sm:$0xff]
        %v412 = vld [vmem:[%s306 + $0xd8] sm:$0xff]
        %v413 = vld [vmem:[%s306 + $0xe0] sm:$0xff]
        %v414 = vld [vmem:[%s306 + $0xe8] sm:$0xff]
        %v415 = vld [vmem:[%s306 + $0xf0] sm:$0xff]
        %v416 = vld [vmem:[%s306 + $0xf8] sm:$0xff]
        %v417 = vld [vmem:[%s306 + $0x100] sm:$0xff]
        %v418 = vld [vmem:[%s306 + $0x108] sm:$0xff]
        %v419 = vld [vmem:[%s306 + $0x110] sm:$0xff]
        %v420 = vld [vmem:[%s306 + $0x118] sm:$0xff]
        %v421 = vld [vmem:[%s306 + $0x120] sm:$0xff]
        %v422 = vld [vmem:[%s306 + $0x128] sm:$0xff]
        %v423 = vld [vmem:[%s306 + $0x130] sm:$0xff]
        %v424 = vld [vmem:[%s306 + $0x138] sm:$0xff]
        %v425 = vld [vmem:[%s306 + $0x140] sm:$0xff]
        %v426 = vld [vmem:[%s306 + $0x148] sm:$0xff]
        %v427 = vld [vmem:[%s306 + $0x150] sm:$0xff]
        %v428 = vld [vmem:[%s306 + $0x158] sm:$0xff]
        %v429 = vld [vmem:[%s306 + $0x160] sm:$0xff]
        %v430 = vld [vmem:[%s306 + $0x168] sm:$0xff]
        %v431 = vld [vmem:[%s306 + $0x170] sm:$0xff]
        %v432 = vld [vmem:[%s306 + $0x178] sm:$0xff]
        %v433 = vld [vmem:[%s306 + $0x180] sm:$0xff]
        %v434 = vld [vmem:[%s306 + $0x188] sm:$0xff]
        %v435 = vld [vmem:[%s306 + $0x190] sm:$0xff]
        %v436 = vld [vmem:[%s306 + $0x198] sm:$0xff]
        %v437 = vld [vmem:[%s306 + $0x1a0] sm:$0xff]
        %v438 = vld [vmem:[%s306 + $0x1a8] sm:$0xff]
        %v439 = vld [vmem:[%s306 + $0x1b0] sm:$0xff]
        %v440 = vld [vmem:[%s306 + $0x1b8] sm:$0xff]
        %v441 = vld [vmem:[%s306 + $0x1c0] sm:$0xff]
        %v442 = vld [vmem:[%s306 + $0x1c8] sm:$0xff]
        %v443 = vld [vmem:[%s306 + $0x1d0] sm:$0xff]
        %v444 = vld [vmem:[%s306 + $0x1d8] sm:$0xff]
        %v445 = vld [vmem:[%s306 + $0x1e0] sm:$0xff]
        %v446 = vld [vmem:[%s306 + $0x1e8] sm:$0xff]
        %v447 = vld [vmem:[%s306 + $0x1f0] sm:$0xff]
        %v448 = vld [vmem:[%s306 + $0x1f8] sm:$0xff]
        %v449 = vld [vmem:[%s306 + $0x200] sm:$0xff]
        %v450 = vld [vmem:[%s306 + $0x208] sm:$0xff]
        %v451 = vld [vmem:[%s306 + $0x210] sm:$0xff]
        %v452 = vld [vmem:[%s306 + $0x218] sm:$0xff]
        %v453 = vld [vmem:[%s306 + $0x220] sm:$0xff]
        %v454 = vld [vmem:[%s306 + $0x228] sm:$0xff]
        %v455 = vld [vmem:[%s306 + $0x230] sm:$0xff]
        %v456 = vld [vmem:[%s306 + $0x238] sm:$0xff]
        %v457 = vld [vmem:[%s306 + $0x240] sm:$0xff]
        %v458 = vld [vmem:[%s306 + $0x248] sm:$0xff]
        %v459 = vld [vmem:[%s306 + $0x250] sm:$0xff]
        %v460 = vld [vmem:[%s306 + $0x258] sm:$0xff]
        %v461 = vld [vmem:[%s306 + $0x260] sm:$0xff]
        %v462 = vld [vmem:[%s306 + $0x268] sm:$0xff]
        %v463 = vld [vmem:[%s306 + $0x270] sm:$0xff]
        %v464 = vld [vmem:[%s306 + $0x278] sm:$0xff]
        %v465 = vld [vmem:[%s306 + $0x280] sm:$0xff]
        %v466 = vld [vmem:[%s306 + $0x288] sm:$0xff]
        %v467 = vld [vmem:[%s306 + $0x290] sm:$0xff]
        %v468 = vld [vmem:[%s306 + $0x298] sm:$0xff]
        %v469 = vld [vmem:[%s306 + $0x2a0] sm:$0xff]
        %v470 = vld [vmem:[%s306 + $0x2a8] sm:$0xff]
        %v471 = vld [vmem:[%s306 + $0x2b0] sm:$0xff]
        %v472 = vld [vmem:[%s306 + $0x2b8] sm:$0xff]
        %v473 = vld [vmem:[%s306 + $0x2c0] sm:$0xff]
        %v474 = vld [vmem:[%s306 + $0x2c8] sm:$0xff]
        %v475 = vld [vmem:[%s306 + $0x2d0] sm:$0xff]
        %v476 = vld [vmem:[%s306 + $0x2d8] sm:$0xff]
        %v477 = vld [vmem:[%s306 + $0x2e0] sm:$0xff]
        %v478 = vld [vmem:[%s306 + $0x2e8] sm:$0xff]
        %v479 = vld [vmem:[%s306 + $0x2f0] sm:$0xff]
        %v480 = vld [vmem:[%s306 + $0x2f8] sm:$0xff]
        %v481 = vld [vmem:[%s306 + $0x300] sm:$0xff]
        %v482 = vld [vmem:[%s306 + $0x308] sm:$0xff]
        %v483 = vld [vmem:[%s306 + $0x310] sm:$0xff]
        %v484 = vld [vmem:[%s306 + $0x318] sm:$0xff]
        %v485 = vld [vmem:[%s306 + $0x320] sm:$0xff]
        %v486 = vld [vmem:[%s306 + $0x328] sm:$0xff]
        %v487 = vld [vmem:[%s306 + $0x330] sm:$0xff]
        %v488 = vld [vmem:[%s306 + $0x338] sm:$0xff]
        %v489 = vld [vmem:[%s306 + $0x340] sm:$0xff]
        %v490 = vld [vmem:[%s306 + $0x348] sm:$0xff]
        %v491 = vld [vmem:[%s306 + $0x350] sm:$0xff]
        %v492 = vld [vmem:[%s306 + $0x358] sm:$0xff]
        %v493 = vld [vmem:[%s306 + $0x360] sm:$0xff]
        %v494 = vld [vmem:[%s306 + $0x368] sm:$0xff]
        %v495 = vld [vmem:[%s306 + $0x370] sm:$0xff]
        %v496 = vld [vmem:[%s306 + $0x378] sm:$0xff]
        %v497 = vld [vmem:[%s306 + $0x380] sm:$0xff]
        %v498 = vld [vmem:[%s306 + $0x388] sm:$0xff]
        %v499 = vld [vmem:[%s306 + $0x390] sm:$0xff]
        %v500 = vld [vmem:[%s306 + $0x398] sm:$0xff]
        %v501 = vld [vmem:[%s306 + $0x3a0] sm:$0xff]
        %v502 = vld [vmem:[%s306 + $0x3a8] sm:$0xff]
        %v503 = vld [vmem:[%s306 + $0x3b0] sm:$0xff]
        %v504 = vld [vmem:[%s306 + $0x3b8] sm:$0xff]
        %v505 = vld [vmem:[%s306 + $0x3c0] sm:$0xff]
        %v506 = vld [vmem:[%s306 + $0x3c8] sm:$0xff]
        %v507 = vld [vmem:[%s306 + $0x3d0] sm:$0xff]
        %v508 = vld [vmem:[%s306 + $0x3d8] sm:$0xff]
        %v509 = vld [vmem:[%s306 + $0x3e0] sm:$0xff]
        %v510 = vld [vmem:[%s306 + $0x3e8] sm:$0xff]
        %v511 = vld [vmem:[%s306 + $0x3f0] sm:$0xff]
        %v512 = vld [vmem:[%s306 + $0x3f8] sm:$0xff]
        %v513 = vld [vmem:[%s306 + $0x400] sm:$0xff]
        %v514 = vld [vmem:[%s306 + $0x408] sm:$0xff]
        %v515 = vld [vmem:[%s306 + $0x410] sm:$0xff]
        %v516 = vld [vmem:[%s306 + $0x418] sm:$0xff]
        %v517 = vld [vmem:[%s306 + $0x420] sm:$0xff]
        %v518 = vld [vmem:[%s306 + $0x428] sm:$0xff]
        %v519 = vld [vmem:[%s306 + $0x430] sm:$0xff]
        %v520 = vld [vmem:[%s306 + $0x438] sm:$0xff]
        %v521 = vld [vmem:[%s306 + $0x440] sm:$0xff]
        %v522 = vld [vmem:[%s306 + $0x448] sm:$0xff]
        %v523 = vld [vmem:[%s306 + $0x450] sm:$0xff]
        %v524 = vld [vmem:[%s306 + $0x458] sm:$0xff]
        %v525 = vld [vmem:[%s306 + $0x460] sm:$0xff]
        %v526 = vld [vmem:[%s306 + $0x468] sm:$0xff]
        %v527 = vld [vmem:[%s306 + $0x470] sm:$0xff]
        %v528 = vld [vmem:[%s306 + $0x478] sm:$0xff]
        %v529 = vld [vmem:[%s306 + $0x480] sm:$0xff]
        %v530 = vld [vmem:[%s306 + $0x488] sm:$0xff]
        %v531 = vld [vmem:[%s306 + $0x490] sm:$0xff]
        %v532 = vld [vmem:[%s306 + $0x498] sm:$0xff]
        %v533 = vld [vmem:[%s306 + $0x4a0] sm:$0xff]
        %v534 = vld [vmem:[%s306 + $0x4a8] sm:$0xff]
        %v535 = vld [vmem:[%s306 + $0x4b0] sm:$0xff]
        %v536 = vld [vmem:[%s306 + $0x4b8] sm:$0xff]
        %v537 = vld [vmem:[%s306 + $0x4c0] sm:$0xff]
        %v538 = vld [vmem:[%s306 + $0x4c8] sm:$0xff]
        %v539 = vld [vmem:[%s306 + $0x4d0] sm:$0xff]
        %v540 = vld [vmem:[%s306 + $0x4d8] sm:$0xff]
        %v541 = vld [vmem:[%s306 + $0x4e0] sm:$0xff]
        %v542 = vld [vmem:[%s306 + $0x4e8] sm:$0xff]
        %v543 = vld [vmem:[%s306 + $0x4f0] sm:$0xff]
        %v544 = vld [vmem:[%s306 + $0x4f8] sm:$0xff]
        %v545 = vld [vmem:[%s306 + $0x500] sm:$0xff]
        %v546 = vld [vmem:[%s306 + $0x508] sm:$0xff]
        %v547 = vld [vmem:[%s306 + $0x510] sm:$0xff]
        %v548 = vld [vmem:[%s306 + $0x518] sm:$0xff]
        %v549 = vld [vmem:[%s306 + $0x520] sm:$0xff]
        %v550 = vld [vmem:[%s306 + $0x528] sm:$0xff]
        %v551 = vld [vmem:[%s306 + $0x530] sm:$0xff]
        %v552 = vld [vmem:[%s306 + $0x538] sm:$0xff]
        %v553 = vld [vmem:[%s306 + $0x540] sm:$0xff]
        %v554 = vld [vmem:[%s306 + $0x548] sm:$0xff]
        %v555 = vld [vmem:[%s306 + $0x550] sm:$0xff]
        %v556 = vld [vmem:[%s306 + $0x558] sm:$0xff]
        %v557 = vld [vmem:[%s306 + $0x560] sm:$0xff]
        %v558 = vld [vmem:[%s306 + $0x568] sm:$0xff]
        %v559 = vld [vmem:[%s306 + $0x570] sm:$0xff]
        %v560 = vld [vmem:[%s306 + $0x578] sm:$0xff]
        %v561 = vld [vmem:[%s306 + $0x580] sm:$0xff]
        %v562 = vld [vmem:[%s306 + $0x588] sm:$0xff]
        %v563 = vld [vmem:[%s306 + $0x590] sm:$0xff]
        %v564 = vld [vmem:[%s306 + $0x598] sm:$0xff]
        %v565 = vld [vmem:[%s306 + $0x5a0] sm:$0xff]
        %v566 = vld [vmem:[%s306 + $0x5a8] sm:$0xff]
        %v567 = vld [vmem:[%s306 + $0x5b0] sm:$0xff]
        %v568 = vld [vmem:[%s306 + $0x5b8] sm:$0xff]
        %v569 = vld [vmem:[%s306 + $0x5c0] sm:$0xff]
        %v570 = vld [vmem:[%s306 + $0x5c8] sm:$0xff]
        %v571 = vld [vmem:[%s306 + $0x5d0] sm:$0xff]
        %v572 = vld [vmem:[%s306 + $0x5d8] sm:$0xff]
        %v573 = vld [vmem:[%s306 + $0x5e0] sm:$0xff]
        %v574 = vld [vmem:[%s306 + $0x5e8] sm:$0xff]
        %v575 = vld [vmem:[%s306 + $0x5f0] sm:$0xff]
        %v576 = vld [vmem:[%s306 + $0x5f8] sm:$0xff]
        %v577 = vld [vmem:[%s306 + $0x600] sm:$0xff]
        %v578 = vld [vmem:[%s306 + $0x608] sm:$0xff]
        %v579 = vld [vmem:[%s306 + $0x610] sm:$0xff]
        %v580 = vld [vmem:[%s306 + $0x618] sm:$0xff]
        %v581 = vld [vmem:[%s306 + $0x620] sm:$0xff]
        %v582 = vld [vmem:[%s306 + $0x628] sm:$0xff]
        %v583 = vld [vmem:[%s306 + $0x630] sm:$0xff]
        %v584 = vld [vmem:[%s306 + $0x638] sm:$0xff]
        %v585 = vld [vmem:[%s306 + $0x640] sm:$0xff]
        %v586 = vld [vmem:[%s306 + $0x648] sm:$0xff]
        %v587 = vld [vmem:[%s306 + $0x650] sm:$0xff]
        %v588 = vld [vmem:[%s306 + $0x658] sm:$0xff]
        %v589 = vld [vmem:[%s306 + $0x660] sm:$0xff]
        %v590 = vld [vmem:[%s306 + $0x668] sm:$0xff]
        %v591 = vld [vmem:[%s306 + $0x670] sm:$0xff]
        %v592 = vld [vmem:[%s306 + $0x678] sm:$0xff]
        %v593 = vld [vmem:[%s306 + $0x680] sm:$0xff]
        %v594 = vld [vmem:[%s306 + $0x688] sm:$0xff]
        %v595 = vld [vmem:[%s306 + $0x690] sm:$0xff]
        %v596 = vld [vmem:[%s306 + $0x698] sm:$0xff]
        %v597 = vld [vmem:[%s306 + $0x6a0] sm:$0xff]
        %v598 = vld [vmem:[%s306 + $0x6a8] sm:$0xff]
        %v599 = vld [vmem:[%s306 + $0x6b0] sm:$0xff]
        %v600 = vld [vmem:[%s306 + $0x6b8] sm:$0xff]
        %v601 = vld [vmem:[%s306 + $0x6c0] sm:$0xff]
        %v602 = vld [vmem:[%s306 + $0x6c8] sm:$0xff]
        %v603 = vld [vmem:[%s306 + $0x6d0] sm:$0xff]
        %v604 = vld [vmem:[%s306 + $0x6d8] sm:$0xff]
        %v605 = vld [vmem:[%s306 + $0x6e0] sm:$0xff]
        %v606 = vld [vmem:[%s306 + $0x6e8] sm:$0xff]
        %v607 = vld [vmem:[%s306 + $0x6f0] sm:$0xff]
        %v608 = vld [vmem:[%s306 + $0x6f8] sm:$0xff]
        %v609 = vld [vmem:[%s306 + $0x700] sm:$0xff]
        %v610 = vld [vmem:[%s306 + $0x708] sm:$0xff]
        %v611 = vld [vmem:[%s306 + $0x710] sm:$0xff]
        %v612 = vld [vmem:[%s306 + $0x718] sm:$0xff]
        %v613 = vld [vmem:[%s306 + $0x720] sm:$0xff]
        %v614 = vld [vmem:[%s306 + $0x728] sm:$0xff]
        %v615 = vld [vmem:[%s306 + $0x730] sm:$0xff]
        %v616 = vld [vmem:[%s306 + $0x738] sm:$0xff]
        %v617 = vld [vmem:[%s306 + $0x740] sm:$0xff]
        %v618 = vld [vmem:[%s306 + $0x748] sm:$0xff]
        %v619 = vld [vmem:[%s306 + $0x750] sm:$0xff]
        %v620 = vld [vmem:[%s306 + $0x758] sm:$0xff]
        %v621 = vld [vmem:[%s306 + $0x760] sm:$0xff]
        %v622 = vld [vmem:[%s306 + $0x768] sm:$0xff]
        %v623 = vld [vmem:[%s306 + $0x770] sm:$0xff]
        %v624 = vld [vmem:[%s306 + $0x778] sm:$0xff]
        %v625 = vld [vmem:[%s306 + $0x780] sm:$0xff]
        %v626 = vld [vmem:[%s306 + $0x788] sm:$0xff]
        %v627 = vld [vmem:[%s306 + $0x790] sm:$0xff]
        %v628 = vld [vmem:[%s306 + $0x798] sm:$0xff]
        %v629 = vld [vmem:[%s306 + $0x7a0] sm:$0xff]
        %v630 = vld [vmem:[%s306 + $0x7a8] sm:$0xff]
        %v631 = vld [vmem:[%s306 + $0x7b0] sm:$0xff]
        %v632 = vld [vmem:[%s306 + $0x7b8] sm:$0xff]
        %v633 = vld [vmem:[%s306 + $0x7c0] sm:$0xff]
        %v634 = vld [vmem:[%s306 + $0x7c8] sm:$0xff]
        %v635 = vld [vmem:[%s306 + $0x7d0] sm:$0xff]
        %v636 = vld [vmem:[%s306 + $0x7d8] sm:$0xff]
        %v637 = vld [vmem:[%s306 + $0x7e0] sm:$0xff]
        %v638 = vld [vmem:[%s306 + $0x7e8] sm:$0xff]
        %v639 = vld [vmem:[%s306 + $0x7f0] sm:$0xff]
        %v640 = vld [vmem:[%s306 + $0x7f8] sm:$0xff]
        %v641 = vld [vmem:[#allocation5] sm:$0xff]
        %v642 = vld [vmem:[#allocation5 + $0x8] sm:$0xff]
        %v643 = vld [vmem:[#allocation5 + $0x10] sm:$0xff]
        %v644 = vld [vmem:[#allocation5 + $0x18] sm:$0xff]
        %v645 = vld [vmem:[#allocation5 + $0x20] sm:$0xff]
        %v646 = vld [vmem:[#allocation5 + $0x28] sm:$0xff]
        %v647 = vld [vmem:[#allocation5 + $0x30] sm:$0xff]
        %v648 = vld [vmem:[#allocation5 + $0x38] sm:$0xff]
        %v649 = vld [vmem:[#allocation5 + $0x40] sm:$0xff]
        %v650 = vld [vmem:[#allocation5 + $0x48] sm:$0xff]
        %v651 = vld [vmem:[#allocation5 + $0x50] sm:$0xff]
        %v652 = vld [vmem:[#allocation5 + $0x58] sm:$0xff]
        %v653 = vld [vmem:[#allocation5 + $0x60] sm:$0xff]
        %v654 = vld [vmem:[#allocation5 + $0x68] sm:$0xff]
        %v655 = vld [vmem:[#allocation5 + $0x70] sm:$0xff]
        %v656 = vld [vmem:[#allocation5 + $0x78] sm:$0xff]
        %v657 = vld [vmem:[#allocation5 + $0x80] sm:$0xff]
        %v658 = vld [vmem:[#allocation5 + $0x88] sm:$0xff]
        %v659 = vld [vmem:[#allocation5 + $0x90] sm:$0xff]
        %v660 = vld [vmem:[#allocation5 + $0x98] sm:$0xff]
        %v661 = vld [vmem:[#allocation5 + $0xa0] sm:$0xff]
        %v662 = vld [vmem:[#allocation5 + $0xa8] sm:$0xff]
        %v663 = vld [vmem:[#allocation5 + $0xb0] sm:$0xff]
        %v664 = vld [vmem:[#allocation5 + $0xb8] sm:$0xff]
        %v665 = vld [vmem:[#allocation5 + $0xc0] sm:$0xff]
        %v666 = vld [vmem:[#allocation5 + $0xc8] sm:$0xff]
        %v667 = vld [vmem:[#allocation5 + $0xd0] sm:$0xff]
        %v668 = vld [vmem:[#allocation5 + $0xd8] sm:$0xff]
        %v669 = vld [vmem:[#allocation5 + $0xe0] sm:$0xff]
        %v670 = vld [vmem:[#allocation5 + $0xe8] sm:$0xff]
        %v671 = vld [vmem:[#allocation5 + $0xf0] sm:$0xff]
        %v672 = vld [vmem:[#allocation5 + $0xf8] sm:$0xff]
        %v673 = vld [vmem:[#allocation5 + $0x100] sm:$0xff]
        %v674 = vld [vmem:[#allocation5 + $0x108] sm:$0xff]
        %v675 = vld [vmem:[#allocation5 + $0x110] sm:$0xff]
        %v676 = vld [vmem:[#allocation5 + $0x118] sm:$0xff]
        %v677 = vld [vmem:[#allocation5 + $0x120] sm:$0xff]
        %v678 = vld [vmem:[#allocation5 + $0x128] sm:$0xff]
        %v679 = vld [vmem:[#allocation5 + $0x130] sm:$0xff]
        %v680 = vld [vmem:[#allocation5 + $0x138] sm:$0xff]
        %v681 = vld [vmem:[#allocation5 + $0x140] sm:$0xff]
        %v682 = vld [vmem:[#allocation5 + $0x148] sm:$0xff]
        %v683 = vld [vmem:[#allocation5 + $0x150] sm:$0xff]
        %v684 = vld [vmem:[#allocation5 + $0x158] sm:$0xff]
        %v685 = vld [vmem:[#allocation5 + $0x160] sm:$0xff]
        %v686 = vld [vmem:[#allocation5 + $0x168] sm:$0xff]
        %v687 = vld [vmem:[#allocation5 + $0x170] sm:$0xff]
        %v688 = vld [vmem:[#allocation5 + $0x178] sm:$0xff]
        %v689 = vld [vmem:[#allocation5 + $0x180] sm:$0xff]
        %v690 = vld [vmem:[#allocation5 + $0x188] sm:$0xff]
        %v691 = vld [vmem:[#allocation5 + $0x190] sm:$0xff]
        %v692 = vld [vmem:[#allocation5 + $0x198] sm:$0xff]
        %v693 = vld [vmem:[#allocation5 + $0x1a0] sm:$0xff]
        %v694 = vld [vmem:[#allocation5 + $0x1a8] sm:$0xff]
        %v695 = vld [vmem:[#allocation5 + $0x1b0] sm:$0xff]
        %v696 = vld [vmem:[#allocation5 + $0x1b8] sm:$0xff]
        %v697 = vld [vmem:[#allocation5 + $0x1c0] sm:$0xff]
        %v698 = vld [vmem:[#allocation5 + $0x1c8] sm:$0xff]
        %v699 = vld [vmem:[#allocation5 + $0x1d0] sm:$0xff]
        %v700 = vld [vmem:[#allocation5 + $0x1d8] sm:$0xff]
        %v701 = vld [vmem:[#allocation5 + $0x1e0] sm:$0xff]
        %v702 = vld [vmem:[#allocation5 + $0x1e8] sm:$0xff]
        %v703 = vld [vmem:[#allocation5 + $0x1f0] sm:$0xff]
        %v704 = vld [vmem:[#allocation5 + $0x1f8] sm:$0xff]
        %v705 = vld [vmem:[#allocation5 + $0x200] sm:$0xff]
        %v706 = vld [vmem:[#allocation5 + $0x208] sm:$0xff]
        %v707 = vld [vmem:[#allocation5 + $0x210] sm:$0xff]
        %v708 = vld [vmem:[#allocation5 + $0x218] sm:$0xff]
        %v709 = vld [vmem:[#allocation5 + $0x220] sm:$0xff]
        %v710 = vld [vmem:[#allocation5 + $0x228] sm:$0xff]
        %v711 = vld [vmem:[#allocation5 + $0x230] sm:$0xff]
        %v712 = vld [vmem:[#allocation5 + $0x238] sm:$0xff]
        %v713 = vld [vmem:[#allocation5 + $0x240] sm:$0xff]
        %v714 = vld [vmem:[#allocation5 + $0x248] sm:$0xff]
        %v715 = vld [vmem:[#allocation5 + $0x250] sm:$0xff]
        %v716 = vld [vmem:[#allocation5 + $0x258] sm:$0xff]
        %v717 = vld [vmem:[#allocation5 + $0x260] sm:$0xff]
        %v718 = vld [vmem:[#allocation5 + $0x268] sm:$0xff]
        %v719 = vld [vmem:[#allocation5 + $0x270] sm:$0xff]
        %v720 = vld [vmem:[#allocation5 + $0x278] sm:$0xff]
        %v721 = vld [vmem:[#allocation5 + $0x280] sm:$0xff]
        %v722 = vld [vmem:[#allocation5 + $0x288] sm:$0xff]
        %v723 = vld [vmem:[#allocation5 + $0x290] sm:$0xff]
        %v724 = vld [vmem:[#allocation5 + $0x298] sm:$0xff]
        %v725 = vld [vmem:[#allocation5 + $0x2a0] sm:$0xff]
        %v726 = vld [vmem:[#allocation5 + $0x2a8] sm:$0xff]
        %v727 = vld [vmem:[#allocation5 + $0x2b0] sm:$0xff]
        %v728 = vld [vmem:[#allocation5 + $0x2b8] sm:$0xff]
        %v729 = vld [vmem:[#allocation5 + $0x2c0] sm:$0xff]
        %v730 = vld [vmem:[#allocation5 + $0x2c8] sm:$0xff]
        %v731 = vld [vmem:[#allocation5 + $0x2d0] sm:$0xff]
        %v732 = vld [vmem:[#allocation5 + $0x2d8] sm:$0xff]
        %v733 = vld [vmem:[#allocation5 + $0x2e0] sm:$0xff]
        %v734 = vld [vmem:[#allocation5 + $0x2e8] sm:$0xff]
        %v735 = vld [vmem:[#allocation5 + $0x2f0] sm:$0xff]
        %v736 = vld [vmem:[#allocation5 + $0x2f8] sm:$0xff]
        %v737 = vld [vmem:[#allocation5 + $0x300] sm:$0xff]
        %v738 = vld [vmem:[#allocation5 + $0x308] sm:$0xff]
        %v739 = vld [vmem:[#allocation5 + $0x310] sm:$0xff]
        %v740 = vld [vmem:[#allocation5 + $0x318] sm:$0xff]
        %v741 = vld [vmem:[#allocation5 + $0x320] sm:$0xff]
        %v742 = vld [vmem:[#allocation5 + $0x328] sm:$0xff]
        %v743 = vld [vmem:[#allocation5 + $0x330] sm:$0xff]
        %v744 = vld [vmem:[#allocation5 + $0x338] sm:$0xff]
        %v745 = vld [vmem:[#allocation5 + $0x340] sm:$0xff]
        %v746 = vld [vmem:[#allocation5 + $0x348] sm:$0xff]
        %v747 = vld [vmem:[#allocation5 + $0x350] sm:$0xff]
        %v748 = vld [vmem:[#allocation5 + $0x358] sm:$0xff]
        %v749 = vld [vmem:[#allocation5 + $0x360] sm:$0xff]
        %v750 = vld [vmem:[#allocation5 + $0x368] sm:$0xff]
        %v751 = vld [vmem:[#allocation5 + $0x370] sm:$0xff]
        %v752 = vld [vmem:[#allocation5 + $0x378] sm:$0xff]
        %v753 = vld [vmem:[#allocation5 + $0x380] sm:$0xff]
        %v754 = vld [vmem:[#allocation5 + $0x388] sm:$0xff]
        %v755 = vld [vmem:[#allocation5 + $0x390] sm:$0xff]
        %v756 = vld [vmem:[#allocation5 + $0x398] sm:$0xff]
        %v757 = vld [vmem:[#allocation5 + $0x3a0] sm:$0xff]
        %v758 = vld [vmem:[#allocation5 + $0x3a8] sm:$0xff]
        %v759 = vld [vmem:[#allocation5 + $0x3b0] sm:$0xff]
        %v760 = vld [vmem:[#allocation5 + $0x3b8] sm:$0xff]
        %v761 = vld [vmem:[#allocation5 + $0x3c0] sm:$0xff]
        %v762 = vld [vmem:[#allocation5 + $0x3c8] sm:$0xff]
        %v763 = vld [vmem:[#allocation5 + $0x3d0] sm:$0xff]
        %v764 = vld [vmem:[#allocation5 + $0x3d8] sm:$0xff]
        %v765 = vld [vmem:[#allocation5 + $0x3e0] sm:$0xff]
        %v766 = vld [vmem:[#allocation5 + $0x3e8] sm:$0xff]
        %v767 = vld [vmem:[#allocation5 + $0x3f0] sm:$0xff]
        %v768 = vld [vmem:[#allocation5 + $0x3f8] sm:$0xff]
        %v769 = vld [vmem:[#allocation5 + $0x400] sm:$0xff]
        %v770 = vld [vmem:[#allocation5 + $0x408] sm:$0xff]
        %v771 = vld [vmem:[#allocation5 + $0x410] sm:$0xff]
        %v772 = vld [vmem:[#allocation5 + $0x418] sm:$0xff]
        %v773 = vld [vmem:[#allocation5 + $0x420] sm:$0xff]
        %v774 = vld [vmem:[#allocation5 + $0x428] sm:$0xff]
        %v775 = vld [vmem:[#allocation5 + $0x430] sm:$0xff]
        %v776 = vld [vmem:[#allocation5 + $0x438] sm:$0xff]
        %v777 = vld [vmem:[#allocation5 + $0x440] sm:$0xff]
        %v778 = vld [vmem:[#allocation5 + $0x448] sm:$0xff]
        %v779 = vld [vmem:[#allocation5 + $0x450] sm:$0xff]
        %v780 = vld [vmem:[#allocation5 + $0x458] sm:$0xff]
        %v781 = vld [vmem:[#allocation5 + $0x460] sm:$0xff]
        %v782 = vld [vmem:[#allocation5 + $0x468] sm:$0xff]
        %v783 = vld [vmem:[#allocation5 + $0x470] sm:$0xff]
        %v784 = vld [vmem:[#allocation5 + $0x478] sm:$0xff]
        %v785 = vld [vmem:[#allocation5 + $0x480] sm:$0xff]
        %v786 = vld [vmem:[#allocation5 + $0x488] sm:$0xff]
        %v787 = vld [vmem:[#allocation5 + $0x490] sm:$0xff]
        %v788 = vld [vmem:[#allocation5 + $0x498] sm:$0xff]
        %v789 = vld [vmem:[#allocation5 + $0x4a0] sm:$0xff]
        %v790 = vld [vmem:[#allocation5 + $0x4a8] sm:$0xff]
        %v791 = vld [vmem:[#allocation5 + $0x4b0] sm:$0xff]
        %v792 = vld [vmem:[#allocation5 + $0x4b8] sm:$0xff]
        %v793 = vld [vmem:[#allocation5 + $0x4c0] sm:$0xff]
        %v794 = vld [vmem:[#allocation5 + $0x4c8] sm:$0xff]
        %v795 = vld [vmem:[#allocation5 + $0x4d0] sm:$0xff]
        %v796 = vld [vmem:[#allocation5 + $0x4d8] sm:$0xff]
        %v797 = vld [vmem:[#allocation5 + $0x4e0] sm:$0xff]
        %v798 = vld [vmem:[#allocation5 + $0x4e8] sm:$0xff]
        %v799 = vld [vmem:[#allocation5 + $0x4f0] sm:$0xff]
        %v800 = vld [vmem:[#allocation5 + $0x4f8] sm:$0xff]
        %v801 = vld [vmem:[#allocation5 + $0x500] sm:$0xff]
        %v802 = vld [vmem:[#allocation5 + $0x508] sm:$0xff]
        %v803 = vld [vmem:[#allocation5 + $0x510] sm:$0xff]
        %v804 = vld [vmem:[#allocation5 + $0x518] sm:$0xff]
        %v805 = vld [vmem:[#allocation5 + $0x520] sm:$0xff]
        %v806 = vld [vmem:[#allocation5 + $0x528] sm:$0xff]
        %v807 = vld [vmem:[#allocation5 + $0x530] sm:$0xff]
        %v808 = vld [vmem:[#allocation5 + $0x538] sm:$0xff]
        %v809 = vld [vmem:[#allocation5 + $0x540] sm:$0xff]
        %v810 = vld [vmem:[#allocation5 + $0x548] sm:$0xff]
        %v811 = vld [vmem:[#allocation5 + $0x550] sm:$0xff]
        %v812 = vld [vmem:[#allocation5 + $0x558] sm:$0xff]
        %v813 = vld [vmem:[#allocation5 + $0x560] sm:$0xff]
        %v814 = vld [vmem:[#allocation5 + $0x568] sm:$0xff]
        %v815 = vld [vmem:[#allocation5 + $0x570] sm:$0xff]
        %v816 = vld [vmem:[#allocation5 + $0x578] sm:$0xff]
        %v817 = vld [vmem:[#allocation5 + $0x580] sm:$0xff]
        %v818 = vld [vmem:[#allocation5 + $0x588] sm:$0xff]
        %v819 = vld [vmem:[#allocation5 + $0x590] sm:$0xff]
        %v820 = vld [vmem:[#allocation5 + $0x598] sm:$0xff]
        %v821 = vld [vmem:[#allocation5 + $0x5a0] sm:$0xff]
        %v822 = vld [vmem:[#allocation5 + $0x5a8] sm:$0xff]
        %v823 = vld [vmem:[#allocation5 + $0x5b0] sm:$0xff]
        %v824 = vld [vmem:[#allocation5 + $0x5b8] sm:$0xff]
        %v825 = vld [vmem:[#allocation5 + $0x5c0] sm:$0xff]
        %v826 = vld [vmem:[#allocation5 + $0x5c8] sm:$0xff]
        %v827 = vld [vmem:[#allocation5 + $0x5d0] sm:$0xff]
        %v828 = vld [vmem:[#allocation5 + $0x5d8] sm:$0xff]
        %v829 = vld [vmem:[#allocation5 + $0x5e0] sm:$0xff]
        %v830 = vld [vmem:[#allocation5 + $0x5e8] sm:$0xff]
        %v831 = vld [vmem:[#allocation5 + $0x5f0] sm:$0xff]
        %v832 = vld [vmem:[#allocation5 + $0x5f8] sm:$0xff]
        %v833 = vld [vmem:[#allocation5 + $0x600] sm:$0xff]
        %v834 = vld [vmem:[#allocation5 + $0x608] sm:$0xff]
        %v835 = vld [vmem:[#allocation5 + $0x610] sm:$0xff]
        %v836 = vld [vmem:[#allocation5 + $0x618] sm:$0xff]
        %v837 = vld [vmem:[#allocation5 + $0x620] sm:$0xff]
        %v838 = vld [vmem:[#allocation5 + $0x628] sm:$0xff]
        %v839 = vld [vmem:[#allocation5 + $0x630] sm:$0xff]
        %v840 = vld [vmem:[#allocation5 + $0x638] sm:$0xff]
        %v841 = vld [vmem:[#allocation5 + $0x640] sm:$0xff]
        %v842 = vld [vmem:[#allocation5 + $0x648] sm:$0xff]
        %v843 = vld [vmem:[#allocation5 + $0x650] sm:$0xff]
        %v844 = vld [vmem:[#allocation5 + $0x658] sm:$0xff]
        %v845 = vld [vmem:[#allocation5 + $0x660] sm:$0xff]
        %v846 = vld [vmem:[#allocation5 + $0x668] sm:$0xff]
        %v847 = vld [vmem:[#allocation5 + $0x670] sm:$0xff]
        %v848 = vld [vmem:[#allocation5 + $0x678] sm:$0xff]
        %v849 = vld [vmem:[#allocation5 + $0x680] sm:$0xff]
        %v850 = vld [vmem:[#allocation5 + $0x688] sm:$0xff]
        %v851 = vld [vmem:[#allocation5 + $0x690] sm:$0xff]
        %v852 = vld [vmem:[#allocation5 + $0x698] sm:$0xff]
        %v853 = vld [vmem:[#allocation5 + $0x6a0] sm:$0xff]
        %v854 = vld [vmem:[#allocation5 + $0x6a8] sm:$0xff]
        %v855 = vld [vmem:[#allocation5 + $0x6b0] sm:$0xff]
        %v856 = vld [vmem:[#allocation5 + $0x6b8] sm:$0xff]
        %v857 = vld [vmem:[#allocation5 + $0x6c0] sm:$0xff]
        %v858 = vld [vmem:[#allocation5 + $0x6c8] sm:$0xff]
        %v859 = vld [vmem:[#allocation5 + $0x6d0] sm:$0xff]
        %v860 = vld [vmem:[#allocation5 + $0x6d8] sm:$0xff]
        %v861 = vld [vmem:[#allocation5 + $0x6e0] sm:$0xff]
        %v862 = vld [vmem:[#allocation5 + $0x6e8] sm:$0xff]
        %v863 = vld [vmem:[#allocation5 + $0x6f0] sm:$0xff]
        %v864 = vld [vmem:[#allocation5 + $0x6f8] sm:$0xff]
        %v865 = vld [vmem:[#allocation5 + $0x700] sm:$0xff]
        %v866 = vld [vmem:[#allocation5 + $0x708] sm:$0xff]
        %v867 = vld [vmem:[#allocation5 + $0x710] sm:$0xff]
        %v868 = vld [vmem:[#allocation5 + $0x718] sm:$0xff]
        %v869 = vld [vmem:[#allocation5 + $0x720] sm:$0xff]
        %v870 = vld [vmem:[#allocation5 + $0x728] sm:$0xff]
        %v871 = vld [vmem:[#allocation5 + $0x730] sm:$0xff]
        %v872 = vld [vmem:[#allocation5 + $0x738] sm:$0xff]
        %v873 = vld [vmem:[#allocation5 + $0x740] sm:$0xff]
        %v874 = vld [vmem:[#allocation5 + $0x748] sm:$0xff]
        %v875 = vld [vmem:[#allocation5 + $0x750] sm:$0xff]
        %v876 = vld [vmem:[#allocation5 + $0x758] sm:$0xff]
        %v877 = vld [vmem:[#allocation5 + $0x760] sm:$0xff]
        %v878 = vld [vmem:[#allocation5 + $0x768] sm:$0xff]
        %v879 = vld [vmem:[#allocation5 + $0x770] sm:$0xff]
        %v880 = vld [vmem:[#allocation5 + $0x778] sm:$0xff]
        %v881 = vld [vmem:[#allocation5 + $0x780] sm:$0xff]
        %v882 = vld [vmem:[#allocation5 + $0x788] sm:$0xff]
        %v883 = vld [vmem:[#allocation5 + $0x790] sm:$0xff]
        %v884 = vld [vmem:[#allocation5 + $0x798] sm:$0xff]
        %v885 = vld [vmem:[#allocation5 + $0x7a0] sm:$0xff]
        %v886 = vld [vmem:[#allocation5 + $0x7a8] sm:$0xff]
        %v887 = vld [vmem:[#allocation5 + $0x7b0] sm:$0xff]
        %v888 = vld [vmem:[#allocation5 + $0x7b8] sm:$0xff]
        %v889 = vld [vmem:[#allocation5 + $0x7c0] sm:$0xff]
        %v890 = vld [vmem:[#allocation5 + $0x7c8] sm:$0xff]
        %v891 = vld [vmem:[#allocation5 + $0x7d0] sm:$0xff]
        %v892 = vld [vmem:[#allocation5 + $0x7d8] sm:$0xff]
        %v893 = vld [vmem:[#allocation5 + $0x7e0] sm:$0xff]
        %v894 = vld [vmem:[#allocation5 + $0x7e8] sm:$0xff]
        %v895 = vld [vmem:[#allocation5 + $0x7f0] sm:$0xff]
        %v896 = vld [vmem:[#allocation5 + $0x7f8] sm:$0xff]
        %v897 = vld [vmem:[#allocation5 + $0x800] sm:$0xff]
        %v898 = vld [vmem:[#allocation5 + $0x808] sm:$0xff]
        %v899 = vld [vmem:[#allocation5 + $0x810] sm:$0xff]
        %v900 = vld [vmem:[#allocation5 + $0x818] sm:$0xff]
        %v901 = vld [vmem:[#allocation5 + $0x820] sm:$0xff]
        %v902 = vld [vmem:[#allocation5 + $0x828] sm:$0xff]
        %v903 = vld [vmem:[#allocation5 + $0x830] sm:$0xff]
        %v904 = vld [vmem:[#allocation5 + $0x838] sm:$0xff]
        %v905 = vld [vmem:[#allocation5 + $0x840] sm:$0xff]
        %v906 = vld [vmem:[#allocation5 + $0x848] sm:$0xff]
        %v907 = vld [vmem:[#allocation5 + $0x850] sm:$0xff]
        %v908 = vld [vmem:[#allocation5 + $0x858] sm:$0xff]
        %v909 = vld [vmem:[#allocation5 + $0x860] sm:$0xff]
        %v910 = vld [vmem:[#allocation5 + $0x868] sm:$0xff]
        %v911 = vld [vmem:[#allocation5 + $0x870] sm:$0xff]
        %v912 = vld [vmem:[#allocation5 + $0x878] sm:$0xff]
        %v913 = vld [vmem:[#allocation5 + $0x880] sm:$0xff]
        %v914 = vld [vmem:[#allocation5 + $0x888] sm:$0xff]
        %v915 = vld [vmem:[#allocation5 + $0x890] sm:$0xff]
        %v916 = vld [vmem:[#allocation5 + $0x898] sm:$0xff]
        %v917 = vld [vmem:[#allocation5 + $0x8a0] sm:$0xff]
        %v918 = vld [vmem:[#allocation5 + $0x8a8] sm:$0xff]
        %v919 = vld [vmem:[#allocation5 + $0x8b0] sm:$0xff]
        %v920 = vld [vmem:[#allocation5 + $0x8b8] sm:$0xff]
        %v921 = vld [vmem:[#allocation5 + $0x8c0] sm:$0xff]
        %v922 = vld [vmem:[#allocation5 + $0x8c8] sm:$0xff]
        %v923 = vld [vmem:[#allocation5 + $0x8d0] sm:$0xff]
        %v924 = vld [vmem:[#allocation5 + $0x8d8] sm:$0xff]
        %v925 = vld [vmem:[#allocation5 + $0x8e0] sm:$0xff]
        %v926 = vld [vmem:[#allocation5 + $0x8e8] sm:$0xff]
        %v927 = vld [vmem:[#allocation5 + $0x8f0] sm:$0xff]
        %v928 = vld [vmem:[#allocation5 + $0x8f8] sm:$0xff]
        %v929 = vld [vmem:[#allocation5 + $0x900] sm:$0xff]
        %v930 = vld [vmem:[#allocation5 + $0x908] sm:$0xff]
        %v931 = vld [vmem:[#allocation5 + $0x910] sm:$0xff]
        %v932 = vld [vmem:[#allocation5 + $0x918] sm:$0xff]
        %v933 = vld [vmem:[#allocation5 + $0x920] sm:$0xff]
        %v934 = vld [vmem:[#allocation5 + $0x928] sm:$0xff]
        %v935 = vld [vmem:[#allocation5 + $0x930] sm:$0xff]
        %v936 = vld [vmem:[#allocation5 + $0x938] sm:$0xff]
        %v937 = vld [vmem:[#allocation5 + $0x940] sm:$0xff]
        %v938 = vld [vmem:[#allocation5 + $0x948] sm:$0xff]
        %v939 = vld [vmem:[#allocation5 + $0x950] sm:$0xff]
        %v940 = vld [vmem:[#allocation5 + $0x958] sm:$0xff]
        %v941 = vld [vmem:[#allocation5 + $0x960] sm:$0xff]
        %v942 = vld [vmem:[#allocation5 + $0x968] sm:$0xff]
        %v943 = vld [vmem:[#allocation5 + $0x970] sm:$0xff]
        %v944 = vld [vmem:[#allocation5 + $0x978] sm:$0xff]
        %v945 = vld [vmem:[#allocation5 + $0x980] sm:$0xff]
        %v946 = vld [vmem:[#allocation5 + $0x988] sm:$0xff]
        %v947 = vld [vmem:[#allocation5 + $0x990] sm:$0xff]
        %v948 = vld [vmem:[#allocation5 + $0x998] sm:$0xff]
        %v949 = vld [vmem:[#allocation5 + $0x9a0] sm:$0xff]
        %v950 = vld [vmem:[#allocation5 + $0x9a8] sm:$0xff]
        %v951 = vld [vmem:[#allocation5 + $0x9b0] sm:$0xff]
        %v952 = vld [vmem:[#allocation5 + $0x9b8] sm:$0xff]
        %v953 = vld [vmem:[#allocation5 + $0x9c0] sm:$0xff]
        %v954 = vld [vmem:[#allocation5 + $0x9c8] sm:$0xff]
        %v955 = vld [vmem:[#allocation5 + $0x9d0] sm:$0xff]
        %v956 = vld [vmem:[#allocation5 + $0x9d8] sm:$0xff]
        %v957 = vld [vmem:[#allocation5 + $0x9e0] sm:$0xff]
        %v958 = vld [vmem:[#allocation5 + $0x9e8] sm:$0xff]
        %v959 = vld [vmem:[#allocation5 + $0x9f0] sm:$0xff]
        %v960 = vld [vmem:[#allocation5 + $0x9f8] sm:$0xff]
        %v961 = vld [vmem:[#allocation5 + $0xa00] sm:$0xff]
        %v962 = vld [vmem:[#allocation5 + $0xa08] sm:$0xff]
        %v963 = vld [vmem:[#allocation5 + $0xa10] sm:$0xff]
        %v964 = vld [vmem:[#allocation5 + $0xa18] sm:$0xff]
        %v965 = vld [vmem:[#allocation5 + $0xa20] sm:$0xff]
        %v966 = vld [vmem:[#allocation5 + $0xa28] sm:$0xff]
        %v967 = vld [vmem:[#allocation5 + $0xa30] sm:$0xff]
        %v968 = vld [vmem:[#allocation5 + $0xa38] sm:$0xff]
        %v969 = vld [vmem:[#allocation5 + $0xa40] sm:$0xff]
        %v970 = vld [vmem:[#allocation5 + $0xa48] sm:$0xff]
        %v971 = vld [vmem:[#allocation5 + $0xa50] sm:$0xff]
        %v972 = vld [vmem:[#allocation5 + $0xa58] sm:$0xff]
        %v973 = vld [vmem:[#allocation5 + $0xa60] sm:$0xff]
        %v974 = vld [vmem:[#allocation5 + $0xa68] sm:$0xff]
        %v975 = vld [vmem:[#allocation5 + $0xa70] sm:$0xff]
        %v976 = vld [vmem:[#allocation5 + $0xa78] sm:$0xff]
        %v977 = vld [vmem:[#allocation5 + $0xa80] sm:$0xff]
        %v978 = vld [vmem:[#allocation5 + $0xa88] sm:$0xff]
        %v979 = vld [vmem:[#allocation5 + $0xa90] sm:$0xff]
        %v980 = vld [vmem:[#allocation5 + $0xa98] sm:$0xff]
        %v981 = vld [vmem:[#allocation5 + $0xaa0] sm:$0xff]
        %v982 = vld [vmem:[#allocation5 + $0xaa8] sm:$0xff]
        %v983 = vld [vmem:[#allocation5 + $0xab0] sm:$0xff]
        %v984 = vld [vmem:[#allocation5 + $0xab8] sm:$0xff]
        %v985 = vld [vmem:[#allocation5 + $0xac0] sm:$0xff]
        %v986 = vld [vmem:[#allocation5 + $0xac8] sm:$0xff]
        %v987 = vld [vmem:[#allocation5 + $0xad0] sm:$0xff]
        %v988 = vld [vmem:[#allocation5 + $0xad8] sm:$0xff]
        %v989 = vld [vmem:[#allocation5 + $0xae0] sm:$0xff]
        %v990 = vld [vmem:[#allocation5 + $0xae8] sm:$0xff]
        %v991 = vld [vmem:[#allocation5 + $0xaf0] sm:$0xff]
        %v992 = vld [vmem:[#allocation5 + $0xaf8] sm:$0xff]
        %v993 = vld [vmem:[#allocation5 + $0xb00] sm:$0xff]
        %v994 = vld [vmem:[#allocation5 + $0xb08] sm:$0xff]
        %v995 = vld [vmem:[#allocation5 + $0xb10] sm:$0xff]
        %v996 = vld [vmem:[#allocation5 + $0xb18] sm:$0xff]
        %v997 = vld [vmem:[#allocation5 + $0xb20] sm:$0xff]
        %v998 = vld [vmem:[#allocation5 + $0xb28] sm:$0xff]
        %v999 = vld [vmem:[#allocation5 + $0xb30] sm:$0xff]
        %v1000 = vld [vmem:[#allocation5 + $0xb38] sm:$0xff]
        %v1001 = vld [vmem:[#allocation5 + $0xb40] sm:$0xff]
        %v1002 = vld [vmem:[#allocation5 + $0xb48] sm:$0xff]
        %v1003 = vld [vmem:[#allocation5 + $0xb50] sm:$0xff]
        %v1004 = vld [vmem:[#allocation5 + $0xb58] sm:$0xff]
        %v1005 = vld [vmem:[#allocation5 + $0xb60] sm:$0xff]
        %v1006 = vld [vmem:[#allocation5 + $0xb68] sm:$0xff]
        %v1007 = vld [vmem:[#allocation5 + $0xb70] sm:$0xff]
        %v1008 = vld [vmem:[#allocation5 + $0xb78] sm:$0xff]
        %v1009 = vld [vmem:[#allocation5 + $0xb80] sm:$0xff]
        %v1010 = vld [vmem:[#allocation5 + $0xb88] sm:$0xff]
        %v1011 = vld [vmem:[#allocation5 + $0xb90] sm:$0xff]
        %v1012 = vld [vmem:[#allocation5 + $0xb98] sm:$0xff]
        %v1013 = vld [vmem:[#allocation5 + $0xba0] sm:$0xff]
        %v1014 = vld [vmem:[#allocation5 + $0xba8] sm:$0xff]
        %v1015 = vld [vmem:[#allocation5 + $0xbb0] sm:$0xff]
        %v1016 = vld [vmem:[#allocation5 + $0xbb8] sm:$0xff]
        %v1017 = vld [vmem:[#allocation5 + $0xbc0] sm:$0xff]
        %v1018 = vld [vmem:[#allocation5 + $0xbc8] sm:$0xff]
        %v1019 = vld [vmem:[#allocation5 + $0xbd0] sm:$0xff]
        %v1020 = vld [vmem:[#allocation5 + $0xbd8] sm:$0xff]
        %v1021 = vld [vmem:[#allocation5 + $0xbe0] sm:$0xff]
        %v1022 = vld [vmem:[#allocation5 + $0xbe8] sm:$0xff]
        %v1023 = vld [vmem:[#allocation5 + $0xbf0] sm:$0xff]
        %v1024 = vld [vmem:[#allocation5 + $0xbf8] sm:$0xff]
        %v1025 = vld [vmem:[#allocation5 + $0xc00] sm:$0xff]
        %v1026 = vld [vmem:[#allocation5 + $0xc08] sm:$0xff]
        %v1027 = vld [vmem:[#allocation5 + $0xc10] sm:$0xff]
        %v1028 = vld [vmem:[#allocation5 + $0xc18] sm:$0xff]
        %v1029 = vld [vmem:[#allocation5 + $0xc20] sm:$0xff]
        %v1030 = vld [vmem:[#allocation5 + $0xc28] sm:$0xff]
        %v1031 = vld [vmem:[#allocation5 + $0xc30] sm:$0xff]
        %v1032 = vld [vmem:[#allocation5 + $0xc38] sm:$0xff]
        %v1033 = vld [vmem:[#allocation5 + $0xc40] sm:$0xff]
        %v1034 = vld [vmem:[#allocation5 + $0xc48] sm:$0xff]
        %v1035 = vld [vmem:[#allocation5 + $0xc50] sm:$0xff]
        %v1036 = vld [vmem:[#allocation5 + $0xc58] sm:$0xff]
        %v1037 = vld [vmem:[#allocation5 + $0xc60] sm:$0xff]
        %v1038 = vld [vmem:[#allocation5 + $0xc68] sm:$0xff]
        %v1039 = vld [vmem:[#allocation5 + $0xc70] sm:$0xff]
        %v1040 = vld [vmem:[#allocation5 + $0xc78] sm:$0xff]
        %v1041 = vld [vmem:[#allocation5 + $0xc80] sm:$0xff]
        %v1042 = vld [vmem:[#allocation5 + $0xc88] sm:$0xff]
        %v1043 = vld [vmem:[#allocation5 + $0xc90] sm:$0xff]
        %v1044 = vld [vmem:[#allocation5 + $0xc98] sm:$0xff]
        %v1045 = vld [vmem:[#allocation5 + $0xca0] sm:$0xff]
        %v1046 = vld [vmem:[#allocation5 + $0xca8] sm:$0xff]
        %v1047 = vld [vmem:[#allocation5 + $0xcb0] sm:$0xff]
        %v1048 = vld [vmem:[#allocation5 + $0xcb8] sm:$0xff]
        %v1049 = vld [vmem:[#allocation5 + $0xcc0] sm:$0xff]
        %v1050 = vld [vmem:[#allocation5 + $0xcc8] sm:$0xff]
        %v1051 = vld [vmem:[#allocation5 + $0xcd0] sm:$0xff]
        %v1052 = vld [vmem:[#allocation5 + $0xcd8] sm:$0xff]
        %v1053 = vld [vmem:[#allocation5 + $0xce0] sm:$0xff]
        %v1054 = vld [vmem:[#allocation5 + $0xce8] sm:$0xff]
        %v1055 = vld [vmem:[#allocation5 + $0xcf0] sm:$0xff]
        %v1056 = vld [vmem:[#allocation5 + $0xcf8] sm:$0xff]
        %v1057 = vld [vmem:[#allocation5 + $0xd00] sm:$0xff]
        %v1058 = vld [vmem:[#allocation5 + $0xd08] sm:$0xff]
        %v1059 = vld [vmem:[#allocation5 + $0xd10] sm:$0xff]
        %v1060 = vld [vmem:[#allocation5 + $0xd18] sm:$0xff]
        %v1061 = vld [vmem:[#allocation5 + $0xd20] sm:$0xff]
        %v1062 = vld [vmem:[#allocation5 + $0xd28] sm:$0xff]
        %v1063 = vld [vmem:[#allocation5 + $0xd30] sm:$0xff]
        %v1064 = vld [vmem:[#allocation5 + $0xd38] sm:$0xff]
        %v1065 = vld [vmem:[#allocation5 + $0xd40] sm:$0xff]
        %v1066 = vld [vmem:[#allocation5 + $0xd48] sm:$0xff]
        %v1067 = vld [vmem:[#allocation5 + $0xd50] sm:$0xff]
        %v1068 = vld [vmem:[#allocation5 + $0xd58] sm:$0xff]
        %v1069 = vld [vmem:[#allocation5 + $0xd60] sm:$0xff]
        %v1070 = vld [vmem:[#allocation5 + $0xd68] sm:$0xff]
        %v1071 = vld [vmem:[#allocation5 + $0xd70] sm:$0xff]
        %v1072 = vld [vmem:[#allocation5 + $0xd78] sm:$0xff]
        %v1073 = vld [vmem:[#allocation5 + $0xd80] sm:$0xff]
        %v1074 = vld [vmem:[#allocation5 + $0xd88] sm:$0xff]
        %v1075 = vld [vmem:[#allocation5 + $0xd90] sm:$0xff]
        %v1076 = vld [vmem:[#allocation5 + $0xd98] sm:$0xff]
        %v1077 = vld [vmem:[#allocation5 + $0xda0] sm:$0xff]
        %v1078 = vld [vmem:[#allocation5 + $0xda8] sm:$0xff]
        %v1079 = vld [vmem:[#allocation5 + $0xdb0] sm:$0xff]
        %v1080 = vld [vmem:[#allocation5 + $0xdb8] sm:$0xff]
        %v1081 = vld [vmem:[#allocation5 + $0xdc0] sm:$0xff]
        %v1082 = vld [vmem:[#allocation5 + $0xdc8] sm:$0xff]
        %v1083 = vld [vmem:[#allocation5 + $0xdd0] sm:$0xff]
        %v1084 = vld [vmem:[#allocation5 + $0xdd8] sm:$0xff]
        %v1085 = vld [vmem:[#allocation5 + $0xde0] sm:$0xff]
        %v1086 = vld [vmem:[#allocation5 + $0xde8] sm:$0xff]
        %v1087 = vld [vmem:[#allocation5 + $0xdf0] sm:$0xff]
        %v1088 = vld [vmem:[#allocation5 + $0xdf8] sm:$0xff]
        %v1089 = vld [vmem:[#allocation5 + $0xe00] sm:$0xff]
        %v1090 = vld [vmem:[#allocation5 + $0xe08] sm:$0xff]
        %v1091 = vld [vmem:[#allocation5 + $0xe10] sm:$0xff]
        %v1092 = vld [vmem:[#allocation5 + $0xe18] sm:$0xff]
        %v1093 = vld [vmem:[#allocation5 + $0xe20] sm:$0xff]
        %v1094 = vld [vmem:[#allocation5 + $0xe28] sm:$0xff]
        %v1095 = vld [vmem:[#allocation5 + $0xe30] sm:$0xff]
        %v1096 = vld [vmem:[#allocation5 + $0xe38] sm:$0xff]
        %v1097 = vld [vmem:[#allocation5 + $0xe40] sm:$0xff]
        %v1098 = vld [vmem:[#allocation5 + $0xe48] sm:$0xff]
        %v1099 = vld [vmem:[#allocation5 + $0xe50] sm:$0xff]
        %v1100 = vld [vmem:[#allocation5 + $0xe58] sm:$0xff]
        %v1101 = vld [vmem:[#allocation5 + $0xe60] sm:$0xff]
        %v1102 = vld [vmem:[#allocation5 + $0xe68] sm:$0xff]
        %v1103 = vld [vmem:[#allocation5 + $0xe70] sm:$0xff]
        %v1104 = vld [vmem:[#allocation5 + $0xe78] sm:$0xff]
        %v1105 = vld [vmem:[#allocation5 + $0xe80] sm:$0xff]
        %v1106 = vld [vmem:[#allocation5 + $0xe88] sm:$0xff]
        %v1107 = vld [vmem:[#allocation5 + $0xe90] sm:$0xff]
        %v1108 = vld [vmem:[#allocation5 + $0xe98] sm:$0xff]
        %v1109 = vld [vmem:[#allocation5 + $0xea0] sm:$0xff]
        %v1110 = vld [vmem:[#allocation5 + $0xea8] sm:$0xff]
        %v1111 = vld [vmem:[#allocation5 + $0xeb0] sm:$0xff]
        %v1112 = vld [vmem:[#allocation5 + $0xeb8] sm:$0xff]
        %v1113 = vld [vmem:[#allocation5 + $0xec0] sm:$0xff]
        %v1114 = vld [vmem:[#allocation5 + $0xec8] sm:$0xff]
        %v1115 = vld [vmem:[#allocation5 + $0xed0] sm:$0xff]
        %v1116 = vld [vmem:[#allocation5 + $0xed8] sm:$0xff]
        %v1117 = vld [vmem:[#allocation5 + $0xee0] sm:$0xff]
        %v1118 = vld [vmem:[#allocation5 + $0xee8] sm:$0xff]
        %v1119 = vld [vmem:[#allocation5 + $0xef0] sm:$0xff]
        %v1120 = vld [vmem:[#allocation5 + $0xef8] sm:$0xff]
        %v1121 = vld [vmem:[#allocation5 + $0xf00] sm:$0xff]
        %v1122 = vld [vmem:[#allocation5 + $0xf08] sm:$0xff]
        %v1123 = vld [vmem:[#allocation5 + $0xf10] sm:$0xff]
        %v1124 = vld [vmem:[#allocation5 + $0xf18] sm:$0xff]
        %v1125 = vld [vmem:[#allocation5 + $0xf20] sm:$0xff]
        %v1126 = vld [vmem:[#allocation5 + $0xf28] sm:$0xff]
        %v1127 = vld [vmem:[#allocation5 + $0xf30] sm:$0xff]
        %v1128 = vld [vmem:[#allocation5 + $0xf38] sm:$0xff]
        %v1129 = vld [vmem:[#allocation5 + $0xf40] sm:$0xff]
        %v1130 = vld [vmem:[#allocation5 + $0xf48] sm:$0xff]
        %v1131 = vld [vmem:[#allocation5 + $0xf50] sm:$0xff]
        %v1132 = vld [vmem:[#allocation5 + $0xf58] sm:$0xff]
        %v1133 = vld [vmem:[#allocation5 + $0xf60] sm:$0xff]
        %v1134 = vld [vmem:[#allocation5 + $0xf68] sm:$0xff]
        %v1135 = vld [vmem:[#allocation5 + $0xf70] sm:$0xff]
        %v1136 = vld [vmem:[#allocation5 + $0xf78] sm:$0xff]
        %v1137 = vld [vmem:[#allocation5 + $0xf80] sm:$0xff]
        %v1138 = vld [vmem:[#allocation5 + $0xf88] sm:$0xff]
        %v1139 = vld [vmem:[#allocation5 + $0xf90] sm:$0xff]
        %v1140 = vld [vmem:[#allocation5 + $0xf98] sm:$0xff]
        %v1141 = vld [vmem:[#allocation5 + $0xfa0] sm:$0xff]
        %v1142 = vld [vmem:[#allocation5 + $0xfa8] sm:$0xff]
        %v1143 = vld [vmem:[#allocation5 + $0xfb0] sm:$0xff]
        %v1144 = vld [vmem:[#allocation5 + $0xfb8] sm:$0xff]
        %v1145 = vld [vmem:[#allocation5 + $0xfc0] sm:$0xff]
        %v1146 = vld [vmem:[#allocation5 + $0xfc8] sm:$0xff]
        %v1147 = vld [vmem:[#allocation5 + $0xfd0] sm:$0xff]
        %v1148 = vld [vmem:[#allocation5 + $0xfd8] sm:$0xff]
        %v1149 = vld [vmem:[#allocation5 + $0xfe0] sm:$0xff]
        %v1150 = vld [vmem:[#allocation5 + $0xfe8] sm:$0xff]
        %v1151 = vld [vmem:[#allocation5 + $0xff0] sm:$0xff]
        %v1152 = vld [vmem:[#allocation5 + $0xff8] sm:$0xff]
        %v1153 = vld [vmem:[#allocation5 + $0x1000] sm:$0xff]
        %v1154 = vld [vmem:[#allocation5 + $0x1008] sm:$0xff]
        %v1155 = vld [vmem:[#allocation5 + $0x1010] sm:$0xff]
        %v1156 = vld [vmem:[#allocation5 + $0x1018] sm:$0xff]
        %v1157 = vld [vmem:[#allocation5 + $0x1020] sm:$0xff]
        %v1158 = vld [vmem:[#allocation5 + $0x1028] sm:$0xff]
        %v1159 = vld [vmem:[#allocation5 + $0x1030] sm:$0xff]
        %v1160 = vld [vmem:[#allocation5 + $0x1038] sm:$0xff]
        %v1161 = vld [vmem:[#allocation5 + $0x1040] sm:$0xff]
        %v1162 = vld [vmem:[#allocation5 + $0x1048] sm:$0xff]
        %v1163 = vld [vmem:[#allocation5 + $0x1050] sm:$0xff]
        %v1164 = vld [vmem:[#allocation5 + $0x1058] sm:$0xff]
        %v1165 = vld [vmem:[#allocation5 + $0x1060] sm:$0xff]
        %v1166 = vld [vmem:[#allocation5 + $0x1068] sm:$0xff]
        %v1167 = vld [vmem:[#allocation5 + $0x1070] sm:$0xff]
        %v1168 = vld [vmem:[#allocation5 + $0x1078] sm:$0xff]
        %v1169 = vld [vmem:[#allocation5 + $0x1080] sm:$0xff]
        %v1170 = vld [vmem:[#allocation5 + $0x1088] sm:$0xff]
        %v1171 = vld [vmem:[#allocation5 + $0x1090] sm:$0xff]
        %v1172 = vld [vmem:[#allocation5 + $0x1098] sm:$0xff]
        %v1173 = vld [vmem:[#allocation5 + $0x10a0] sm:$0xff]
        %v1174 = vld [vmem:[#allocation5 + $0x10a8] sm:$0xff]
        %v1175 = vld [vmem:[#allocation5 + $0x10b0] sm:$0xff]
        %v1176 = vld [vmem:[#allocation5 + $0x10b8] sm:$0xff]
        %v1177 = vld [vmem:[#allocation5 + $0x10c0] sm:$0xff]
        %v1178 = vld [vmem:[#allocation5 + $0x10c8] sm:$0xff]
        %v1179 = vld [vmem:[#allocation5 + $0x10d0] sm:$0xff]
        %v1180 = vld [vmem:[#allocation5 + $0x10d8] sm:$0xff]
        %v1181 = vld [vmem:[#allocation5 + $0x10e0] sm:$0xff]
        %v1182 = vld [vmem:[#allocation5 + $0x10e8] sm:$0xff]
        %v1183 = vld [vmem:[#allocation5 + $0x10f0] sm:$0xff]
        %v1184 = vld [vmem:[#allocation5 + $0x10f8] sm:$0xff]
        %v1185 = vld [vmem:[#allocation5 + $0x1100] sm:$0xff]
        %v1186 = vld [vmem:[#allocation5 + $0x1108] sm:$0xff]
        %v1187 = vld [vmem:[#allocation5 + $0x1110] sm:$0xff]
        %v1188 = vld [vmem:[#allocation5 + $0x1118] sm:$0xff]
        %v1189 = vld [vmem:[#allocation5 + $0x1120] sm:$0xff]
        %v1190 = vld [vmem:[#allocation5 + $0x1128] sm:$0xff]
        %v1191 = vld [vmem:[#allocation5 + $0x1130] sm:$0xff]
        %v1192 = vld [vmem:[#allocation5 + $0x1138] sm:$0xff]
        %v1193 = vld [vmem:[#allocation5 + $0x1140] sm:$0xff]
        %v1194 = vld [vmem:[#allocation5 + $0x1148] sm:$0xff]
        %v1195 = vld [vmem:[#allocation5 + $0x1150] sm:$0xff]
        %v1196 = vld [vmem:[#allocation5 + $0x1158] sm:$0xff]
        %v1197 = vld [vmem:[#allocation5 + $0x1160] sm:$0xff]
        %v1198 = vld [vmem:[#allocation5 + $0x1168] sm:$0xff]
        %v1199 = vld [vmem:[#allocation5 + $0x1170] sm:$0xff]
        %v1200 = vld [vmem:[#allocation5 + $0x1178] sm:$0xff]
        %v1201 = vld [vmem:[#allocation5 + $0x1180] sm:$0xff]
        %v1202 = vld [vmem:[#allocation5 + $0x1188] sm:$0xff]
        %v1203 = vld [vmem:[#allocation5 + $0x1190] sm:$0xff]
        %v1204 = vld [vmem:[#allocation5 + $0x1198] sm:$0xff]
        %v1205 = vld [vmem:[#allocation5 + $0x11a0] sm:$0xff]
        %v1206 = vld [vmem:[#allocation5 + $0x11a8] sm:$0xff]
        %v1207 = vld [vmem:[#allocation5 + $0x11b0] sm:$0xff]
        %v1208 = vld [vmem:[#allocation5 + $0x11b8] sm:$0xff]
        %v1209 = vld [vmem:[#allocation5 + $0x11c0] sm:$0xff]
        %v1210 = vld [vmem:[#allocation5 + $0x11c8] sm:$0xff]
        %v1211 = vld [vmem:[#allocation5 + $0x11d0] sm:$0xff]
        %v1212 = vld [vmem:[#allocation5 + $0x11d8] sm:$0xff]
        %v1213 = vld [vmem:[#allocation5 + $0x11e0] sm:$0xff]
        %v1214 = vld [vmem:[#allocation5 + $0x11e8] sm:$0xff]
        %v1215 = vld [vmem:[#allocation5 + $0x11f0] sm:$0xff]
        %v1216 = vld [vmem:[#allocation5 + $0x11f8] sm:$0xff]
        %v1217 = vld [vmem:[#allocation5 + $0x1200] sm:$0xff]
        %v1218 = vld [vmem:[#allocation5 + $0x1208] sm:$0xff]
        %v1219 = vld [vmem:[#allocation5 + $0x1210] sm:$0xff]
        %v1220 = vld [vmem:[#allocation5 + $0x1218] sm:$0xff]
        %v1221 = vld [vmem:[#allocation5 + $0x1220] sm:$0xff]
        %v1222 = vld [vmem:[#allocation5 + $0x1228] sm:$0xff]
        %v1223 = vld [vmem:[#allocation5 + $0x1230] sm:$0xff]
        %v1224 = vld [vmem:[#allocation5 + $0x1238] sm:$0xff]
        %v1225 = vld [vmem:[#allocation5 + $0x1240] sm:$0xff]
        %v1226 = vld [vmem:[#allocation5 + $0x1248] sm:$0xff]
        %v1227 = vld [vmem:[#allocation5 + $0x1250] sm:$0xff]
        %v1228 = vld [vmem:[#allocation5 + $0x1258] sm:$0xff]
        %v1229 = vld [vmem:[#allocation5 + $0x1260] sm:$0xff]
        %v1230 = vld [vmem:[#allocation5 + $0x1268] sm:$0xff]
        %v1231 = vld [vmem:[#allocation5 + $0x1270] sm:$0xff]
        %v1232 = vld [vmem:[#allocation5 + $0x1278] sm:$0xff]
        %v1233 = vld [vmem:[#allocation5 + $0x1280] sm:$0xff]
        %v1234 = vld [vmem:[#allocation5 + $0x1288] sm:$0xff]
        %v1235 = vld [vmem:[#allocation5 + $0x1290] sm:$0xff]
        %v1236 = vld [vmem:[#allocation5 + $0x1298] sm:$0xff]
        %v1237 = vld [vmem:[#allocation5 + $0x12a0] sm:$0xff]
        %v1238 = vld [vmem:[#allocation5 + $0x12a8] sm:$0xff]
        %v1239 = vld [vmem:[#allocation5 + $0x12b0] sm:$0xff]
        %v1240 = vld [vmem:[#allocation5 + $0x12b8] sm:$0xff]
        %v1241 = vld [vmem:[#allocation5 + $0x12c0] sm:$0xff]
        %v1242 = vld [vmem:[#allocation5 + $0x12c8] sm:$0xff]
        %v1243 = vld [vmem:[#allocation5 + $0x12d0] sm:$0xff]
        %v1244 = vld [vmem:[#allocation5 + $0x12d8] sm:$0xff]
        %v1245 = vld [vmem:[#allocation5 + $0x12e0] sm:$0xff]
        %v1246 = vld [vmem:[#allocation5 + $0x12e8] sm:$0xff]
        %v1247 = vld [vmem:[#allocation5 + $0x12f0] sm:$0xff]
        %v1248 = vld [vmem:[#allocation5 + $0x12f8] sm:$0xff]
        %v1249 = vld [vmem:[#allocation5 + $0x1300] sm:$0xff]
        %v1250 = vld [vmem:[#allocation5 + $0x1308] sm:$0xff]
        %v1251 = vld [vmem:[#allocation5 + $0x1310] sm:$0xff]
        %v1252 = vld [vmem:[#allocation5 + $0x1318] sm:$0xff]
        %v1253 = vld [vmem:[#allocation5 + $0x1320] sm:$0xff]
        %v1254 = vld [vmem:[#allocation5 + $0x1328] sm:$0xff]
        %v1255 = vld [vmem:[#allocation5 + $0x1330] sm:$0xff]
        %v1256 = vld [vmem:[#allocation5 + $0x1338] sm:$0xff]
        %v1257 = vld [vmem:[#allocation5 + $0x1340] sm:$0xff]
        %v1258 = vld [vmem:[#allocation5 + $0x1348] sm:$0xff]
        %v1259 = vld [vmem:[#allocation5 + $0x1350] sm:$0xff]
        %v1260 = vld [vmem:[#allocation5 + $0x1358] sm:$0xff]
        %v1261 = vld [vmem:[#allocation5 + $0x1360] sm:$0xff]
        %v1262 = vld [vmem:[#allocation5 + $0x1368] sm:$0xff]
        %v1263 = vld [vmem:[#allocation5 + $0x1370] sm:$0xff]
        %v1264 = vld [vmem:[#allocation5 + $0x1378] sm:$0xff]
        %v1265 = vld [vmem:[#allocation5 + $0x1380] sm:$0xff]
        %v1266 = vld [vmem:[#allocation5 + $0x1388] sm:$0xff]
        %v1267 = vld [vmem:[#allocation5 + $0x1390] sm:$0xff]
        %v1268 = vld [vmem:[#allocation5 + $0x1398] sm:$0xff]
        %v1269 = vld [vmem:[#allocation5 + $0x13a0] sm:$0xff]
        %v1270 = vld [vmem:[#allocation5 + $0x13a8] sm:$0xff]
        %v1271 = vld [vmem:[#allocation5 + $0x13b0] sm:$0xff]
        %v1272 = vld [vmem:[#allocation5 + $0x13b8] sm:$0xff]
        %v1273 = vld [vmem:[#allocation5 + $0x13c0] sm:$0xff]
        %v1274 = vld [vmem:[#allocation5 + $0x13c8] sm:$0xff]
        %v1275 = vld [vmem:[#allocation5 + $0x13d0] sm:$0xff]
        %v1276 = vld [vmem:[#allocation5 + $0x13d8] sm:$0xff]
        %v1277 = vld [vmem:[#allocation5 + $0x13e0] sm:$0xff]
        %v1278 = vld [vmem:[#allocation5 + $0x13e8] sm:$0xff]
        %v1279 = vld [vmem:[#allocation5 + $0x13f0] sm:$0xff]
        %v1280 = vld [vmem:[#allocation5 + $0x13f8] sm:$0xff]
        %v1281 = vld [vmem:[#allocation5 + $0x1400] sm:$0xff]
        %v1282 = vld [vmem:[#allocation5 + $0x1408] sm:$0xff]
        %v1283 = vld [vmem:[#allocation5 + $0x1410] sm:$0xff]
        %v1284 = vld [vmem:[#allocation5 + $0x1418] sm:$0xff]
        %v1285 = vld [vmem:[#allocation5 + $0x1420] sm:$0xff]
        %v1286 = vld [vmem:[#allocation5 + $0x1428] sm:$0xff]
        %v1287 = vld [vmem:[#allocation5 + $0x1430] sm:$0xff]
        %v1288 = vld [vmem:[#allocation5 + $0x1438] sm:$0xff]
        %v1289 = vld [vmem:[#allocation5 + $0x1440] sm:$0xff]
        %v1290 = vld [vmem:[#allocation5 + $0x1448] sm:$0xff]
        %v1291 = vld [vmem:[#allocation5 + $0x1450] sm:$0xff]
        %v1292 = vld [vmem:[#allocation5 + $0x1458] sm:$0xff]
        %v1293 = vld [vmem:[#allocation5 + $0x1460] sm:$0xff]
        %v1294 = vld [vmem:[#allocation5 + $0x1468] sm:$0xff]
        %v1295 = vld [vmem:[#allocation5 + $0x1470] sm:$0xff]
        %v1296 = vld [vmem:[#allocation5 + $0x1478] sm:$0xff]
        %v1297 = vld [vmem:[#allocation5 + $0x1480] sm:$0xff]
        %v1298 = vld [vmem:[#allocation5 + $0x1488] sm:$0xff]
        %v1299 = vld [vmem:[#allocation5 + $0x1490] sm:$0xff]
        %v1300 = vld [vmem:[#allocation5 + $0x1498] sm:$0xff]
        %v1301 = vld [vmem:[#allocation5 + $0x14a0] sm:$0xff]
        %v1302 = vld [vmem:[#allocation5 + $0x14a8] sm:$0xff]
        %v1303 = vld [vmem:[#allocation5 + $0x14b0] sm:$0xff]
        %v1304 = vld [vmem:[#allocation5 + $0x14b8] sm:$0xff]
        %v1305 = vld [vmem:[#allocation5 + $0x14c0] sm:$0xff]
        %v1306 = vld [vmem:[#allocation5 + $0x14c8] sm:$0xff]
        %v1307 = vld [vmem:[#allocation5 + $0x14d0] sm:$0xff]
        %v1308 = vld [vmem:[#allocation5 + $0x14d8] sm:$0xff]
        %v1309 = vld [vmem:[#allocation5 + $0x14e0] sm:$0xff]
        %v1310 = vld [vmem:[#allocation5 + $0x14e8] sm:$0xff]
        %v1311 = vld [vmem:[#allocation5 + $0x14f0] sm:$0xff]
        %v1312 = vld [vmem:[#allocation5 + $0x14f8] sm:$0xff]
        %v1313 = vld [vmem:[#allocation5 + $0x1500] sm:$0xff]
        %v1314 = vld [vmem:[#allocation5 + $0x1508] sm:$0xff]
        %v1315 = vld [vmem:[#allocation5 + $0x1510] sm:$0xff]
        %v1316 = vld [vmem:[#allocation5 + $0x1518] sm:$0xff]
        %v1317 = vld [vmem:[#allocation5 + $0x1520] sm:$0xff]
        %v1318 = vld [vmem:[#allocation5 + $0x1528] sm:$0xff]
        %v1319 = vld [vmem:[#allocation5 + $0x1530] sm:$0xff]
        %v1320 = vld [vmem:[#allocation5 + $0x1538] sm:$0xff]
        %v1321 = vld [vmem:[#allocation5 + $0x1540] sm:$0xff]
        %v1322 = vld [vmem:[#allocation5 + $0x1548] sm:$0xff]
        %v1323 = vld [vmem:[#allocation5 + $0x1550] sm:$0xff]
        %v1324 = vld [vmem:[#allocation5 + $0x1558] sm:$0xff]
        %v1325 = vld [vmem:[#allocation5 + $0x1560] sm:$0xff]
        %v1326 = vld [vmem:[#allocation5 + $0x1568] sm:$0xff]
        %v1327 = vld [vmem:[#allocation5 + $0x1570] sm:$0xff]
        %v1328 = vld [vmem:[#allocation5 + $0x1578] sm:$0xff]
        %v1329 = vld [vmem:[#allocation5 + $0x1580] sm:$0xff]
        %v1330 = vld [vmem:[#allocation5 + $0x1588] sm:$0xff]
        %v1331 = vld [vmem:[#allocation5 + $0x1590] sm:$0xff]
        %v1332 = vld [vmem:[#allocation5 + $0x1598] sm:$0xff]
        %v1333 = vld [vmem:[#allocation5 + $0x15a0] sm:$0xff]
        %v1334 = vld [vmem:[#allocation5 + $0x15a8] sm:$0xff]
        %v1335 = vld [vmem:[#allocation5 + $0x15b0] sm:$0xff]
        %v1336 = vld [vmem:[#allocation5 + $0x15b8] sm:$0xff]
        %v1337 = vld [vmem:[#allocation5 + $0x15c0] sm:$0xff]
        %v1338 = vld [vmem:[#allocation5 + $0x15c8] sm:$0xff]
        %v1339 = vld [vmem:[#allocation5 + $0x15d0] sm:$0xff]
        %v1340 = vld [vmem:[#allocation5 + $0x15d8] sm:$0xff]
        %v1341 = vld [vmem:[#allocation5 + $0x15e0] sm:$0xff]
        %v1342 = vld [vmem:[#allocation5 + $0x15e8] sm:$0xff]
        %v1343 = vld [vmem:[#allocation5 + $0x15f0] sm:$0xff]
        %v1344 = vld [vmem:[#allocation5 + $0x15f8] sm:$0xff]
        %v1345 = vld [vmem:[#allocation5 + $0x1600] sm:$0xff]
        %v1346 = vld [vmem:[#allocation5 + $0x1608] sm:$0xff]
        %v1347 = vld [vmem:[#allocation5 + $0x1610] sm:$0xff]
        %v1348 = vld [vmem:[#allocation5 + $0x1618] sm:$0xff]
        %v1349 = vld [vmem:[#allocation5 + $0x1620] sm:$0xff]
        %v1350 = vld [vmem:[#allocation5 + $0x1628] sm:$0xff]
        %v1351 = vld [vmem:[#allocation5 + $0x1630] sm:$0xff]
        %v1352 = vld [vmem:[#allocation5 + $0x1638] sm:$0xff]
        %v1353 = vld [vmem:[#allocation5 + $0x1640] sm:$0xff]
        %v1354 = vld [vmem:[#allocation5 + $0x1648] sm:$0xff]
        %v1355 = vld [vmem:[#allocation5 + $0x1650] sm:$0xff]
        %v1356 = vld [vmem:[#allocation5 + $0x1658] sm:$0xff]
        %v1357 = vld [vmem:[#allocation5 + $0x1660] sm:$0xff]
        %v1358 = vld [vmem:[#allocation5 + $0x1668] sm:$0xff]
        %v1359 = vld [vmem:[#allocation5 + $0x1670] sm:$0xff]
        %v1360 = vld [vmem:[#allocation5 + $0x1678] sm:$0xff]
        %v1361 = vld [vmem:[#allocation5 + $0x1680] sm:$0xff]
        %v1362 = vld [vmem:[#allocation5 + $0x1688] sm:$0xff]
        %v1363 = vld [vmem:[#allocation5 + $0x1690] sm:$0xff]
        %v1364 = vld [vmem:[#allocation5 + $0x1698] sm:$0xff]
        %v1365 = vld [vmem:[#allocation5 + $0x16a0] sm:$0xff]
        %v1366 = vld [vmem:[#allocation5 + $0x16a8] sm:$0xff]
        %v1367 = vld [vmem:[#allocation5 + $0x16b0] sm:$0xff]
        %v1368 = vld [vmem:[#allocation5 + $0x16b8] sm:$0xff]
        %v1369 = vld [vmem:[#allocation5 + $0x16c0] sm:$0xff]
        %v1370 = vld [vmem:[#allocation5 + $0x16c8] sm:$0xff]
        %v1371 = vld [vmem:[#allocation5 + $0x16d0] sm:$0xff]
        %v1372 = vld [vmem:[#allocation5 + $0x16d8] sm:$0xff]
        %v1373 = vld [vmem:[#allocation5 + $0x16e0] sm:$0xff]
        %v1374 = vld [vmem:[#allocation5 + $0x16e8] sm:$0xff]
        %v1375 = vld [vmem:[#allocation5 + $0x16f0] sm:$0xff]
        %v1376 = vld [vmem:[#allocation5 + $0x16f8] sm:$0xff]
        %v1377 = vld [vmem:[#allocation5 + $0x1700] sm:$0xff]
        %v1378 = vld [vmem:[#allocation5 + $0x1708] sm:$0xff]
        %v1379 = vld [vmem:[#allocation5 + $0x1710] sm:$0xff]
        %v1380 = vld [vmem:[#allocation5 + $0x1718] sm:$0xff]
        %v1381 = vld [vmem:[#allocation5 + $0x1720] sm:$0xff]
        %v1382 = vld [vmem:[#allocation5 + $0x1728] sm:$0xff]
        %v1383 = vld [vmem:[#allocation5 + $0x1730] sm:$0xff]
        %v1384 = vld [vmem:[#allocation5 + $0x1738] sm:$0xff]
        %v1385 = vld [vmem:[#allocation5 + $0x1740] sm:$0xff]
        %v1386 = vld [vmem:[#allocation5 + $0x1748] sm:$0xff]
        %v1387 = vld [vmem:[#allocation5 + $0x1750] sm:$0xff]
        %v1388 = vld [vmem:[#allocation5 + $0x1758] sm:$0xff]
        %v1389 = vld [vmem:[#allocation5 + $0x1760] sm:$0xff]
        %v1390 = vld [vmem:[#allocation5 + $0x1768] sm:$0xff]
        %v1391 = vld [vmem:[#allocation5 + $0x1770] sm:$0xff]
        %v1392 = vld [vmem:[#allocation5 + $0x1778] sm:$0xff]
        %v1393 = vld [vmem:[#allocation5 + $0x1780] sm:$0xff]
        %v1394 = vld [vmem:[#allocation5 + $0x1788] sm:$0xff]
        %v1395 = vld [vmem:[#allocation5 + $0x1790] sm:$0xff]
        %v1396 = vld [vmem:[#allocation5 + $0x1798] sm:$0xff]
        %v1397 = vld [vmem:[#allocation5 + $0x17a0] sm:$0xff]
        %v1398 = vld [vmem:[#allocation5 + $0x17a8] sm:$0xff]
        %v1399 = vld [vmem:[#allocation5 + $0x17b0] sm:$0xff]
        %v1400 = vld [vmem:[#allocation5 + $0x17b8] sm:$0xff]
        %v1401 = vld [vmem:[#allocation5 + $0x17c0] sm:$0xff]
        %v1402 = vld [vmem:[#allocation5 + $0x17c8] sm:$0xff]
        %v1403 = vld [vmem:[#allocation5 + $0x17d0] sm:$0xff]
        %v1404 = vld [vmem:[#allocation5 + $0x17d8] sm:$0xff]
        %v1405 = vld [vmem:[#allocation5 + $0x17e0] sm:$0xff]
        %v1406 = vld [vmem:[#allocation5 + $0x17e8] sm:$0xff]
        %v1407 = vld [vmem:[#allocation5 + $0x17f0] sm:$0xff]
        %v1408 = vld [vmem:[#allocation5 + $0x17f8] sm:$0xff]
        %v1409 = vld [vmem:[#allocation5 + $0x1800] sm:$0xff]
        %v1410 = vld [vmem:[#allocation5 + $0x1808] sm:$0xff]
        %v1411 = vld [vmem:[#allocation5 + $0x1810] sm:$0xff]
        %v1412 = vld [vmem:[#allocation5 + $0x1818] sm:$0xff]
        %v1413 = vld [vmem:[#allocation5 + $0x1820] sm:$0xff]
        %v1414 = vld [vmem:[#allocation5 + $0x1828] sm:$0xff]
        %v1415 = vld [vmem:[#allocation5 + $0x1830] sm:$0xff]
        %v1416 = vld [vmem:[#allocation5 + $0x1838] sm:$0xff]
        %v1417 = vld [vmem:[#allocation5 + $0x1840] sm:$0xff]
        %v1418 = vld [vmem:[#allocation5 + $0x1848] sm:$0xff]
        %v1419 = vld [vmem:[#allocation5 + $0x1850] sm:$0xff]
        %v1420 = vld [vmem:[#allocation5 + $0x1858] sm:$0xff]
        %v1421 = vld [vmem:[#allocation5 + $0x1860] sm:$0xff]
        %v1422 = vld [vmem:[#allocation5 + $0x1868] sm:$0xff]
        %v1423 = vld [vmem:[#allocation5 + $0x1870] sm:$0xff]
        %v1424 = vld [vmem:[#allocation5 + $0x1878] sm:$0xff]
        %v1425 = vld [vmem:[#allocation5 + $0x1880] sm:$0xff]
        %v1426 = vld [vmem:[#allocation5 + $0x1888] sm:$0xff]
        %v1427 = vld [vmem:[#allocation5 + $0x1890] sm:$0xff]
        %v1428 = vld [vmem:[#allocation5 + $0x1898] sm:$0xff]
        %v1429 = vld [vmem:[#allocation5 + $0x18a0] sm:$0xff]
        %v1430 = vld [vmem:[#allocation5 + $0x18a8] sm:$0xff]
        %v1431 = vld [vmem:[#allocation5 + $0x18b0] sm:$0xff]
        %v1432 = vld [vmem:[#allocation5 + $0x18b8] sm:$0xff]
        %v1433 = vld [vmem:[#allocation5 + $0x18c0] sm:$0xff]
        %v1434 = vld [vmem:[#allocation5 + $0x18c8] sm:$0xff]
        %v1435 = vld [vmem:[#allocation5 + $0x18d0] sm:$0xff]
        %v1436 = vld [vmem:[#allocation5 + $0x18d8] sm:$0xff]
        %v1437 = vld [vmem:[#allocation5 + $0x18e0] sm:$0xff]
        %v1438 = vld [vmem:[#allocation5 + $0x18e8] sm:$0xff]
        %v1439 = vld [vmem:[#allocation5 + $0x18f0] sm:$0xff]
        %v1440 = vld [vmem:[#allocation5 + $0x18f8] sm:$0xff]
        %v1441 = vld [vmem:[#allocation5 + $0x1900] sm:$0xff]
        %v1442 = vld [vmem:[#allocation5 + $0x1908] sm:$0xff]
        %v1443 = vld [vmem:[#allocation5 + $0x1910] sm:$0xff]
        %v1444 = vld [vmem:[#allocation5 + $0x1918] sm:$0xff]
        %v1445 = vld [vmem:[#allocation5 + $0x1920] sm:$0xff]
        %v1446 = vld [vmem:[#allocation5 + $0x1928] sm:$0xff]
        %v1447 = vld [vmem:[#allocation5 + $0x1930] sm:$0xff]
        %v1448 = vld [vmem:[#allocation5 + $0x1938] sm:$0xff]
        %v1449 = vld [vmem:[#allocation5 + $0x1940] sm:$0xff]
        %v1450 = vld [vmem:[#allocation5 + $0x1948] sm:$0xff]
        %v1451 = vld [vmem:[#allocation5 + $0x1950] sm:$0xff]
        %v1452 = vld [vmem:[#allocation5 + $0x1958] sm:$0xff]
        %v1453 = vld [vmem:[#allocation5 + $0x1960] sm:$0xff]
        %v1454 = vld [vmem:[#allocation5 + $0x1968] sm:$0xff]
        %v1455 = vld [vmem:[#allocation5 + $0x1970] sm:$0xff]
        %v1456 = vld [vmem:[#allocation5 + $0x1978] sm:$0xff]
        %v1457 = vld [vmem:[#allocation5 + $0x1980] sm:$0xff]
        %v1458 = vld [vmem:[#allocation5 + $0x1988] sm:$0xff]
        %v1459 = vld [vmem:[#allocation5 + $0x1990] sm:$0xff]
        %v1460 = vld [vmem:[#allocation5 + $0x1998] sm:$0xff]
        %v1461 = vld [vmem:[#allocation5 + $0x19a0] sm:$0xff]
        %v1462 = vld [vmem:[#allocation5 + $0x19a8] sm:$0xff]
        %v1463 = vld [vmem:[#allocation5 + $0x19b0] sm:$0xff]
        %v1464 = vld [vmem:[#allocation5 + $0x19b8] sm:$0xff]
        %v1465 = vld [vmem:[#allocation5 + $0x19c0] sm:$0xff]
        %v1466 = vld [vmem:[#allocation5 + $0x19c8] sm:$0xff]
        %v1467 = vld [vmem:[#allocation5 + $0x19d0] sm:$0xff]
        %v1468 = vld [vmem:[#allocation5 + $0x19d8] sm:$0xff]
        %v1469 = vld [vmem:[#allocation5 + $0x19e0] sm:$0xff]
        %v1470 = vld [vmem:[#allocation5 + $0x19e8] sm:$0xff]
        %v1471 = vld [vmem:[#allocation5 + $0x19f0] sm:$0xff]
        %v1472 = vld [vmem:[#allocation5 + $0x19f8] sm:$0xff]
        %v1473 = vld [vmem:[#allocation5 + $0x1a00] sm:$0xff]
        %v1474 = vld [vmem:[#allocation5 + $0x1a08] sm:$0xff]
        %v1475 = vld [vmem:[#allocation5 + $0x1a10] sm:$0xff]
        %v1476 = vld [vmem:[#allocation5 + $0x1a18] sm:$0xff]
        %v1477 = vld [vmem:[#allocation5 + $0x1a20] sm:$0xff]
        %v1478 = vld [vmem:[#allocation5 + $0x1a28] sm:$0xff]
        %v1479 = vld [vmem:[#allocation5 + $0x1a30] sm:$0xff]
        %v1480 = vld [vmem:[#allocation5 + $0x1a38] sm:$0xff]
        %v1481 = vld [vmem:[#allocation5 + $0x1a40] sm:$0xff]
        %v1482 = vld [vmem:[#allocation5 + $0x1a48] sm:$0xff]
        %v1483 = vld [vmem:[#allocation5 + $0x1a50] sm:$0xff]
        %v1484 = vld [vmem:[#allocation5 + $0x1a58] sm:$0xff]
        %v1485 = vld [vmem:[#allocation5 + $0x1a60] sm:$0xff]
        %v1486 = vld [vmem:[#allocation5 + $0x1a68] sm:$0xff]
        %v1487 = vld [vmem:[#allocation5 + $0x1a70] sm:$0xff]
        %v1488 = vld [vmem:[#allocation5 + $0x1a78] sm:$0xff]
        %v1489 = vld [vmem:[#allocation5 + $0x1a80] sm:$0xff]
        %v1490 = vld [vmem:[#allocation5 + $0x1a88] sm:$0xff]
        %v1491 = vld [vmem:[#allocation5 + $0x1a90] sm:$0xff]
        %v1492 = vld [vmem:[#allocation5 + $0x1a98] sm:$0xff]
        %v1493 = vld [vmem:[#allocation5 + $0x1aa0] sm:$0xff]
        %v1494 = vld [vmem:[#allocation5 + $0x1aa8] sm:$0xff]
        %v1495 = vld [vmem:[#allocation5 + $0x1ab0] sm:$0xff]
        %v1496 = vld [vmem:[#allocation5 + $0x1ab8] sm:$0xff]
        %v1497 = vld [vmem:[#allocation5 + $0x1ac0] sm:$0xff]
        %v1498 = vld [vmem:[#allocation5 + $0x1ac8] sm:$0xff]
        %v1499 = vld [vmem:[#allocation5 + $0x1ad0] sm:$0xff]
        %v1500 = vld [vmem:[#allocation5 + $0x1ad8] sm:$0xff]
        %v1501 = vld [vmem:[#allocation5 + $0x1ae0] sm:$0xff]
        %v1502 = vld [vmem:[#allocation5 + $0x1ae8] sm:$0xff]
        %v1503 = vld [vmem:[#allocation5 + $0x1af0] sm:$0xff]
        %v1504 = vld [vmem:[#allocation5 + $0x1af8] sm:$0xff]
        %v1505 = vld [vmem:[#allocation5 + $0x1b00] sm:$0xff]
        %v1506 = vld [vmem:[#allocation5 + $0x1b08] sm:$0xff]
        %v1507 = vld [vmem:[#allocation5 + $0x1b10] sm:$0xff]
        %v1508 = vld [vmem:[#allocation5 + $0x1b18] sm:$0xff]
        %v1509 = vld [vmem:[#allocation5 + $0x1b20] sm:$0xff]
        %v1510 = vld [vmem:[#allocation5 + $0x1b28] sm:$0xff]
        %v1511 = vld [vmem:[#allocation5 + $0x1b30] sm:$0xff]
        %v1512 = vld [vmem:[#allocation5 + $0x1b38] sm:$0xff]
        %v1513 = vld [vmem:[#allocation5 + $0x1b40] sm:$0xff]
        %v1514 = vld [vmem:[#allocation5 + $0x1b48] sm:$0xff]
        %v1515 = vld [vmem:[#allocation5 + $0x1b50] sm:$0xff]
        %v1516 = vld [vmem:[#allocation5 + $0x1b58] sm:$0xff]
        %v1517 = vld [vmem:[#allocation5 + $0x1b60] sm:$0xff]
        %v1518 = vld [vmem:[#allocation5 + $0x1b68] sm:$0xff]
        %v1519 = vld [vmem:[#allocation5 + $0x1b70] sm:$0xff]
        %v1520 = vld [vmem:[#allocation5 + $0x1b78] sm:$0xff]
        %v1521 = vld [vmem:[#allocation5 + $0x1b80] sm:$0xff]
        %v1522 = vld [vmem:[#allocation5 + $0x1b88] sm:$0xff]
        %v1523 = vld [vmem:[#allocation5 + $0x1b90] sm:$0xff]
        %v1524 = vld [vmem:[#allocation5 + $0x1b98] sm:$0xff]
        %v1525 = vld [vmem:[#allocation5 + $0x1ba0] sm:$0xff]
        %v1526 = vld [vmem:[#allocation5 + $0x1ba8] sm:$0xff]
        %v1527 = vld [vmem:[#allocation5 + $0x1bb0] sm:$0xff]
        %v1528 = vld [vmem:[#allocation5 + $0x1bb8] sm:$0xff]
        %v1529 = vld [vmem:[#allocation5 + $0x1bc0] sm:$0xff]
        %v1530 = vld [vmem:[#allocation5 + $0x1bc8] sm:$0xff]
        %v1531 = vld [vmem:[#allocation5 + $0x1bd0] sm:$0xff]
        %v1532 = vld [vmem:[#allocation5 + $0x1bd8] sm:$0xff]
        %v1533 = vld [vmem:[#allocation5 + $0x1be0] sm:$0xff]
        %v1534 = vld [vmem:[#allocation5 + $0x1be8] sm:$0xff]
        %v1535 = vld [vmem:[#allocation5 + $0x1bf0] sm:$0xff]
        %v1536 = vld [vmem:[#allocation5 + $0x1bf8] sm:$0xff]
        %v1537 = vld [vmem:[#allocation5 + $0x1c00] sm:$0xff]
        %v1538 = vld [vmem:[#allocation5 + $0x1c08] sm:$0xff]
        %v1539 = vld [vmem:[#allocation5 + $0x1c10] sm:$0xff]
        %v1540 = vld [vmem:[#allocation5 + $0x1c18] sm:$0xff]
        %v1541 = vld [vmem:[#allocation5 + $0x1c20] sm:$0xff]
        %v1542 = vld [vmem:[#allocation5 + $0x1c28] sm:$0xff]
        %v1543 = vld [vmem:[#allocation5 + $0x1c30] sm:$0xff]
        %v1544 = vld [vmem:[#allocation5 + $0x1c38] sm:$0xff]
        %v1545 = vld [vmem:[#allocation5 + $0x1c40] sm:$0xff]
        %v1546 = vld [vmem:[#allocation5 + $0x1c48] sm:$0xff]
        %v1547 = vld [vmem:[#allocation5 + $0x1c50] sm:$0xff]
        %v1548 = vld [vmem:[#allocation5 + $0x1c58] sm:$0xff]
        %v1549 = vld [vmem:[#allocation5 + $0x1c60] sm:$0xff]
        %v1550 = vld [vmem:[#allocation5 + $0x1c68] sm:$0xff]
        %v1551 = vld [vmem:[#allocation5 + $0x1c70] sm:$0xff]
        %v1552 = vld [vmem:[#allocation5 + $0x1c78] sm:$0xff]
        %v1553 = vld [vmem:[#allocation5 + $0x1c80] sm:$0xff]
        %v1554 = vld [vmem:[#allocation5 + $0x1c88] sm:$0xff]
        %v1555 = vld [vmem:[#allocation5 + $0x1c90] sm:$0xff]
        %v1556 = vld [vmem:[#allocation5 + $0x1c98] sm:$0xff]
        %v1557 = vld [vmem:[#allocation5 + $0x1ca0] sm:$0xff]
        %v1558 = vld [vmem:[#allocation5 + $0x1ca8] sm:$0xff]
        %v1559 = vld [vmem:[#allocation5 + $0x1cb0] sm:$0xff]
        %v1560 = vld [vmem:[#allocation5 + $0x1cb8] sm:$0xff]
        %v1561 = vld [vmem:[#allocation5 + $0x1cc0] sm:$0xff]
        %v1562 = vld [vmem:[#allocation5 + $0x1cc8] sm:$0xff]
        %v1563 = vld [vmem:[#allocation5 + $0x1cd0] sm:$0xff]
        %v1564 = vld [vmem:[#allocation5 + $0x1cd8] sm:$0xff]
        %v1565 = vld [vmem:[#allocation5 + $0x1ce0] sm:$0xff]
        %v1566 = vld [vmem:[#allocation5 + $0x1ce8] sm:$0xff]
        %v1567 = vld [vmem:[#allocation5 + $0x1cf0] sm:$0xff]
        %v1568 = vld [vmem:[#allocation5 + $0x1cf8] sm:$0xff]
        %v1569 = vld [vmem:[#allocation5 + $0x1d00] sm:$0xff]
        %v1570 = vld [vmem:[#allocation5 + $0x1d08] sm:$0xff]
        %v1571 = vld [vmem:[#allocation5 + $0x1d10] sm:$0xff]
        %v1572 = vld [vmem:[#allocation5 + $0x1d18] sm:$0xff]
        %v1573 = vld [vmem:[#allocation5 + $0x1d20] sm:$0xff]
        %v1574 = vld [vmem:[#allocation5 + $0x1d28] sm:$0xff]
        %v1575 = vld [vmem:[#allocation5 + $0x1d30] sm:$0xff]
        %v1576 = vld [vmem:[#allocation5 + $0x1d38] sm:$0xff]
        %v1577 = vld [vmem:[#allocation5 + $0x1d40] sm:$0xff]
        %v1578 = vld [vmem:[#allocation5 + $0x1d48] sm:$0xff]
        %v1579 = vld [vmem:[#allocation5 + $0x1d50] sm:$0xff]
        %v1580 = vld [vmem:[#allocation5 + $0x1d58] sm:$0xff]
        %v1581 = vld [vmem:[#allocation5 + $0x1d60] sm:$0xff]
        %v1582 = vld [vmem:[#allocation5 + $0x1d68] sm:$0xff]
        %v1583 = vld [vmem:[#allocation5 + $0x1d70] sm:$0xff]
        %v1584 = vld [vmem:[#allocation5 + $0x1d78] sm:$0xff]
        %v1585 = vld [vmem:[#allocation5 + $0x1d80] sm:$0xff]
        %v1586 = vld [vmem:[#allocation5 + $0x1d88] sm:$0xff]
        %v1587 = vld [vmem:[#allocation5 + $0x1d90] sm:$0xff]
        %v1588 = vld [vmem:[#allocation5 + $0x1d98] sm:$0xff]
        %v1589 = vld [vmem:[#allocation5 + $0x1da0] sm:$0xff]
        %v1590 = vld [vmem:[#allocation5 + $0x1da8] sm:$0xff]
        %v1591 = vld [vmem:[#allocation5 + $0x1db0] sm:$0xff]
        %v1592 = vld [vmem:[#allocation5 + $0x1db8] sm:$0xff]
        %v1593 = vld [vmem:[#allocation5 + $0x1dc0] sm:$0xff]
        %v1594 = vld [vmem:[#allocation5 + $0x1dc8] sm:$0xff]
        %v1595 = vld [vmem:[#allocation5 + $0x1dd0] sm:$0xff]
        %v1596 = vld [vmem:[#allocation5 + $0x1dd8] sm:$0xff]
        %v1597 = vld [vmem:[#allocation5 + $0x1de0] sm:$0xff]
        %v1598 = vld [vmem:[#allocation5 + $0x1de8] sm:$0xff]
        %v1599 = vld [vmem:[#allocation5 + $0x1df0] sm:$0xff]
        %v1600 = vld [vmem:[#allocation5 + $0x1df8] sm:$0xff]
        %v1601 = vld [vmem:[#allocation5 + $0x1e00] sm:$0xff]
        %v1602 = vld [vmem:[#allocation5 + $0x1e08] sm:$0xff]
        %v1603 = vld [vmem:[#allocation5 + $0x1e10] sm:$0xff]
        %v1604 = vld [vmem:[#allocation5 + $0x1e18] sm:$0xff]
        %v1605 = vld [vmem:[#allocation5 + $0x1e20] sm:$0xff]
        %v1606 = vld [vmem:[#allocation5 + $0x1e28] sm:$0xff]
        %v1607 = vld [vmem:[#allocation5 + $0x1e30] sm:$0xff]
        %v1608 = vld [vmem:[#allocation5 + $0x1e38] sm:$0xff]
        %v1609 = vld [vmem:[#allocation5 + $0x1e40] sm:$0xff]
        %v1610 = vld [vmem:[#allocation5 + $0x1e48] sm:$0xff]
        %v1611 = vld [vmem:[#allocation5 + $0x1e50] sm:$0xff]
        %v1612 = vld [vmem:[#allocation5 + $0x1e58] sm:$0xff]
        %v1613 = vld [vmem:[#allocation5 + $0x1e60] sm:$0xff]
        %v1614 = vld [vmem:[#allocation5 + $0x1e68] sm:$0xff]
        %v1615 = vld [vmem:[#allocation5 + $0x1e70] sm:$0xff]
        %v1616 = vld [vmem:[#allocation5 + $0x1e78] sm:$0xff]
        %v1617 = vld [vmem:[#allocation5 + $0x1e80] sm:$0xff]
        %v1618 = vld [vmem:[#allocation5 + $0x1e88] sm:$0xff]
        %v1619 = vld [vmem:[#allocation5 + $0x1e90] sm:$0xff]
        %v1620 = vld [vmem:[#allocation5 + $0x1e98] sm:$0xff]
        %v1621 = vld [vmem:[#allocation5 + $0x1ea0] sm:$0xff]
        %v1622 = vld [vmem:[#allocation5 + $0x1ea8] sm:$0xff]
        %v1623 = vld [vmem:[#allocation5 + $0x1eb0] sm:$0xff]
        %v1624 = vld [vmem:[#allocation5 + $0x1eb8] sm:$0xff]
        %v1625 = vld [vmem:[#allocation5 + $0x1ec0] sm:$0xff]
        %v1626 = vld [vmem:[#allocation5 + $0x1ec8] sm:$0xff]
        %v1627 = vld [vmem:[#allocation5 + $0x1ed0] sm:$0xff]
        %v1628 = vld [vmem:[#allocation5 + $0x1ed8] sm:$0xff]
        %v1629 = vld [vmem:[#allocation5 + $0x1ee0] sm:$0xff]
        %v1630 = vld [vmem:[#allocation5 + $0x1ee8] sm:$0xff]
        %v1631 = vld [vmem:[#allocation5 + $0x1ef0] sm:$0xff]
        %v1632 = vld [vmem:[#allocation5 + $0x1ef8] sm:$0xff]
        %v1633 = vld [vmem:[#allocation5 + $0x1f00] sm:$0xff]
        %v1634 = vld [vmem:[#allocation5 + $0x1f08] sm:$0xff]
        %v1635 = vld [vmem:[#allocation5 + $0x1f10] sm:$0xff]
        %v1636 = vld [vmem:[#allocation5 + $0x1f18] sm:$0xff]
        %v1637 = vld [vmem:[#allocation5 + $0x1f20] sm:$0xff]
        %v1638 = vld [vmem:[#allocation5 + $0x1f28] sm:$0xff]
        %v1639 = vld [vmem:[#allocation5 + $0x1f30] sm:$0xff]
        %v1640 = vld [vmem:[#allocation5 + $0x1f38] sm:$0xff]
        %v1641 = vld [vmem:[#allocation5 + $0x1f40] sm:$0xff]
        %v1642 = vld [vmem:[#allocation5 + $0x1f48] sm:$0xff]
        %v1643 = vld [vmem:[#allocation5 + $0x1f50] sm:$0xff]
        %v1644 = vld [vmem:[#allocation5 + $0x1f58] sm:$0xff]
        %v1645 = vld [vmem:[#allocation5 + $0x1f60] sm:$0xff]
        %v1646 = vld [vmem:[#allocation5 + $0x1f68] sm:$0xff]
        %v1647 = vld [vmem:[#allocation5 + $0x1f70] sm:$0xff]
        %v1648 = vld [vmem:[#allocation5 + $0x1f78] sm:$0xff]
        %v1649 = vld [vmem:[#allocation5 + $0x1f80] sm:$0xff]
        %v1650 = vld [vmem:[#allocation5 + $0x1f88] sm:$0xff]
        %v1651 = vld [vmem:[#allocation5 + $0x1f90] sm:$0xff]
        %v1652 = vld [vmem:[#allocation5 + $0x1f98] sm:$0xff]
        %v1653 = vld [vmem:[#allocation5 + $0x1fa0] sm:$0xff]
        %v1654 = vld [vmem:[#allocation5 + $0x1fa8] sm:$0xff]
        %v1655 = vld [vmem:[#allocation5 + $0x1fb0] sm:$0xff]
        %v1656 = vld [vmem:[#allocation5 + $0x1fb8] sm:$0xff]
        %v1657 = vld [vmem:[#allocation5 + $0x1fc0] sm:$0xff]
        %v1658 = vld [vmem:[#allocation5 + $0x1fc8] sm:$0xff]
        %v1659 = vld [vmem:[#allocation5 + $0x1fd0] sm:$0xff]
        %v1660 = vld [vmem:[#allocation5 + $0x1fd8] sm:$0xff]
        %v1661 = vld [vmem:[#allocation5 + $0x1fe0] sm:$0xff]
        %v1662 = vld [vmem:[#allocation5 + $0x1fe8] sm:$0xff]
        %v1663 = vld [vmem:[#allocation5 + $0x1ff0] sm:$0xff]
        %v1664 = vld [vmem:[#allocation5 + $0x1ff8] sm:$0xff]
        %v1665 = vld [vmem:[#allocation7] sm:$0xf]
        %v1667 = vlaneseq
        %v1668 = vshrl.u32 %v1667, 7
        %v1669 = vsub.s32 0, %v1668
        %v1670 = vrot.slane %v1665, %v1669
        %v1671 = vlaneseq
        %v1672 = vshrl.u32 %v1671, 7
        %v1673 = vsub.s32 1, %v1672
        %v1674 = vrot.slane %v1665, %v1673
        %v1675 = vlaneseq
        %v1676 = vshrl.u32 %v1675, 7
        %v1677 = vsub.s32 2, %v1676
        %v1678 = vrot.slane %v1665, %v1677
        %v1679 = vlaneseq
        %v1680 = vshrl.u32 %v1679, 7
        %v1681 = vsub.s32 3, %v1680
        %v1682 = vrot.slane %v1665, %v1681
        %1687 = vmatprep.subr.mxu0 %v702
        %1688 = vmatpush1.msra.mxu0 %v701
        %1689 = vmatprep.subr.mxu0 %v698
        %1690 = vmatpush1.msra.mxu0 %v697
        %1691 = vmatprep.subr.mxu0 %v694
        %1692 = vmatpush1.msra.mxu0 %v693
        %1693 = vmatprep.subr.mxu0 %v690
        %1694 = vmatpush1.msra.mxu0 %v689
        %1695 = vmatprep.subr.mxu0 %v686
        %1696 = vmatpush1.msra.mxu0 %v685
        %1697 = vmatprep.subr.mxu0 %v682
        %1698 = vmatpush1.msra.mxu0 %v681
        %1699 = vmatprep.subr.mxu0 %v678
        %1700 = vmatpush1.msra.mxu0 %v677
        %1701 = vmatprep.subr.mxu0 %v674
        %1702 = vmatpush1.msra.mxu0 %v673
        %1703 = vmatprep.subr.mxu0 %v670
        %1704 = vmatpush1.msra.mxu0 %v669
        %1705 = vmatprep.subr.mxu0 %v666
        %1706 = vmatpush1.msra.mxu0 %v665
        %1707 = vmatprep.subr.mxu0 %v662
        %1708 = vmatpush1.msra.mxu0 %v661
        %1709 = vmatprep.subr.mxu0 %v658
        %1710 = vmatpush1.msra.mxu0 %v657
        %1711 = vmatprep.subr.mxu0 %v654
        %1712 = vmatpush1.msra.mxu0 %v653
        %1713 = vmatprep.subr.mxu0 %v650
        %1714 = vmatpush1.msra.mxu0 %v649
        %1715 = vmatprep.subr.mxu0 %v646
        %1716 = vmatpush1.msra.mxu0 %v645
        %1717 = vmatprep.subr.mxu0 %v642
        %1718 = vmatpush1.msra.mxu0 %v641
        %1719 = vmatprep.subr.mxu0 %v766
        %1720 = vmatpush2.msra.mxu0 %v765
        %1721 = vmatprep.subr.mxu0 %v762
        %1722 = vmatpush2.msra.mxu0 %v761
        %1723 = vmatprep.subr.mxu0 %v758
        %1724 = vmatpush2.msra.mxu0 %v757
        %1725 = vmatprep.subr.mxu0 %v754
        %1726 = vmatpush2.msra.mxu0 %v753
        %1727 = vmatprep.subr.mxu0 %v750
        %1728 = vmatpush2.msra.mxu0 %v749
        %1729 = vmatprep.subr.mxu0 %v746
        %1730 = vmatpush2.msra.mxu0 %v745
        %1731 = vmatprep.subr.mxu0 %v742
        %1732 = vmatpush2.msra.mxu0 %v741
        %1733 = vmatprep.subr.mxu0 %v738
        %1734 = vmatpush2.msra.mxu0 %v737
        %1735 = vmatprep.subr.mxu0 %v734
        %1736 = vmatpush2.msra.mxu0 %v733
        %1737 = vmatprep.subr.mxu0 %v730
        %1738 = vmatpush2.msra.mxu0 %v729
        %1739 = vmatprep.subr.mxu0 %v726
        %1740 = vmatpush2.msra.mxu0 %v725
        %1741 = vmatprep.subr.mxu0 %v722
        %1742 = vmatpush2.msra.mxu0 %v721
        %1743 = vmatprep.subr.mxu0 %v718
        %1744 = vmatpush2.msra.mxu0 %v717
        %1745 = vmatprep.subr.mxu0 %v714
        %1746 = vmatpush2.msra.mxu0 %v713
        %1747 = vmatprep.subr.mxu0 %v710
        %1748 = vmatpush2.msra.mxu0 %v709
        %1749 = vmatprep.subr.mxu0 %v706
        %1750 = vmatpush2.msra.mxu0 %v705
        %1751 = vmatprep.mubr.f32.mxu0 %v386
        %1752 = vmatmul.mubr.f32.gmra.mxu0 %v385
        %v1753 = vpop.f32.mrf.mxu0
        %v1754 = vadd.f32 %v1670, %v1753
        %v1755 = vpop.f32.mrf.mxu0
        %v1756 = vadd.f32 %v1674, %v1755
        %1757 = vmatprep.mubr.f32.mxu0 %v402
        %1758 = vmatmul.mubr.f32.gmra.mxu0 %v401
        %v1759 = vpop.f32.mrf.mxu0
        %v1760 = vadd.f32 %v1670, %v1759
        %v1761 = vpop.f32.mrf.mxu0
        %v1762 = vadd.f32 %v1674, %v1761
        %1763 = vmatprep.mubr.f32.mxu0 %v418
        %1764 = vmatmul.mubr.f32.gmra.mxu0 %v417
        %v1765 = vpop.f32.mrf.mxu0
        %v1766 = vadd.f32 %v1670, %v1765
        %v1767 = vpop.f32.mrf.mxu0
        %v1768 = vadd.f32 %v1674, %v1767
        %1769 = vmatprep.mubr.f32.mxu0 %v434
        %1770 = vmatmul.mubr.f32.gmra.mxu0 %v433
        %v1771 = vpop.f32.mrf.mxu0
        %v1772 = vadd.f32 %v1670, %v1771
        %v1773 = vpop.f32.mrf.mxu0
        %v1774 = vadd.f32 %v1674, %v1773
        %1775 = vmatprep.mubr.f32.mxu0 %v450
        %1776 = vmatmul.mubr.f32.gmra.mxu0 %v449
        %v1777 = vpop.f32.mrf.mxu0
        %v1778 = vadd.f32 %v1670, %v1777
        %v1779 = vpop.f32.mrf.mxu0
        %v1780 = vadd.f32 %v1674, %v1779
        %1781 = vmatprep.mubr.f32.mxu0 %v466
        %1782 = vmatmul.mubr.f32.gmra.mxu0 %v465
        %v1783 = vpop.f32.mrf.mxu0
        %v1784 = vadd.f32 %v1670, %v1783
        %v1785 = vpop.f32.mrf.mxu0
        %v1786 = vadd.f32 %v1674, %v1785
        %1787 = vmatprep.mubr.f32.mxu0 %v482
        %1788 = vmatmul.mubr.f32.gmra.mxu0 %v481
        %v1789 = vpop.f32.mrf.mxu0
        %v1790 = vadd.f32 %v1670, %v1789
        %v1791 = vpop.f32.mrf.mxu0
        %v1792 = vadd.f32 %v1674, %v1791
        %1793 = vmatprep.mubr.f32.mxu0 %v498
        %1794 = vmatmul.mubr.f32.gmra.mxu0 %v497
        %v1795 = vpop.f32.mrf.mxu0
        %v1796 = vadd.f32 %v1670, %v1795
        %v1797 = vpop.f32.mrf.mxu0
        %v1798 = vadd.f32 %v1674, %v1797
        %1799 = vmatprep.mubr.f32.mxu0 %v514
        %1800 = vmatmul.mubr.f32.gmra.mxu0 %v513
        %v1801 = vpop.f32.mrf.mxu0
        %v1802 = vadd.f32 %v1670, %v1801
        %v1803 = vpop.f32.mrf.mxu0
        %v1804 = vadd.f32 %v1674, %v1803
        %1805 = vmatprep.mubr.f32.mxu0 %v530
        %1806 = vmatmul.mubr.f32.gmra.mxu0 %v529
        %v1807 = vpop.f32.mrf.mxu0
        %v1808 = vadd.f32 %v1670, %v1807
        %v1809 = vpop.f32.mrf.mxu0
        %v1810 = vadd.f32 %v1674, %v1809
        %1811 = vmatprep.mubr.f32.mxu0 %v546
        %1812 = vmatmul.mubr.f32.gmra.mxu0 %v545
        %v1813 = vpop.f32.mrf.mxu0
        %v1814 = vadd.f32 %v1670, %v1813
        %v1815 = vpop.f32.mrf.mxu0
        %v1816 = vadd.f32 %v1674, %v1815
        %1817 = vmatprep.mubr.f32.mxu0 %v562
        %1818 = vmatmul.mubr.f32.gmra.mxu0 %v561
        %v1819 = vpop.f32.mrf.mxu0
        %v1820 = vadd.f32 %v1670, %v1819
        %v1821 = vpop.f32.mrf.mxu0
        %v1822 = vadd.f32 %v1674, %v1821
        %1823 = vmatprep.mubr.f32.mxu0 %v578
        %1824 = vmatmul.mubr.f32.gmra.mxu0 %v577
        %v1825 = vpop.f32.mrf.mxu0
        %v1826 = vadd.f32 %v1670, %v1825
        %v1827 = vpop.f32.mrf.mxu0
        %v1828 = vadd.f32 %v1674, %v1827
        %1829 = vmatprep.mubr.f32.mxu0 %v594
        %1830 = vmatmul.mubr.f32.gmra.mxu0 %v593
        %v1831 = vpop.f32.mrf.mxu0
        %v1832 = vadd.f32 %v1670, %v1831
        %v1833 = vpop.f32.mrf.mxu0
        %v1834 = vadd.f32 %v1674, %v1833
        %1835 = vmatprep.mubr.f32.mxu0 %v610
        %1836 = vmatmul.mubr.f32.gmra.mxu0 %v609
        %v1837 = vpop.f32.mrf.mxu0
        %v1838 = vadd.f32 %v1670, %v1837
        %v1839 = vpop.f32.mrf.mxu0
        %v1840 = vadd.f32 %v1674, %v1839
        %1841 = vmatprep.mubr.f32.mxu0 %v626
        %1842 = vmatmul.mubr.f32.gmra.mxu0 %v625
        %v1843 = vpop.f32.mrf.mxu0
        %v1844 = vadd.f32 %v1670, %v1843
        %v1845 = vpop.f32.mrf.mxu0
        %v1846 = vadd.f32 %v1674, %v1845
        %1847 = vdwg.mxu0
        %1848 = vmatprep.subr.mxu0 %v830
        %1849 = vmatpush1.msra.mxu0 %v829
        %1850 = vmatprep.subr.mxu0 %v826
        %1851 = vmatpush1.msra.mxu0 %v825
        %1852 = vmatprep.subr.mxu0 %v822
        %1853 = vmatpush1.msra.mxu0 %v821
        %1854 = vmatprep.subr.mxu0 %v818
        %1855 = vmatpush1.msra.mxu0 %v817
        %1856 = vmatprep.subr.mxu0 %v814
        %1857 = vmatpush1.msra.mxu0 %v813
        %1858 = vmatprep.subr.mxu0 %v810
        %1859 = vmatpush1.msra.mxu0 %v809
        %1860 = vmatprep.subr.mxu0 %v806
        %1861 = vmatpush1.msra.mxu0 %v805
        %1862 = vmatprep.subr.mxu0 %v802
        %1863 = vmatpush1.msra.mxu0 %v801
        %1864 = vmatprep.subr.mxu0 %v798
        %1865 = vmatpush1.msra.mxu0 %v797
        %1866 = vmatprep.subr.mxu0 %v794
        %1867 = vmatpush1.msra.mxu0 %v793
        %1868 = vmatprep.subr.mxu0 %v790
        %1869 = vmatpush1.msra.mxu0 %v789
        %1870 = vmatprep.subr.mxu0 %v786
        %1871 = vmatpush1.msra.mxu0 %v785
        %1872 = vmatprep.subr.mxu0 %v782
        %1873 = vmatpush1.msra.mxu0 %v781
        %1874 = vmatprep.subr.mxu0 %v778
        %1875 = vmatpush1.msra.mxu0 %v777
        %1876 = vmatprep.subr.mxu0 %v774
        %1877 = vmatpush1.msra.mxu0 %v773
        %1878 = vmatprep.subr.mxu0 %v770
        %1879 = vmatpush1.msra.mxu0 %v769
        %1880 = vmatprep.subr.mxu0 %v894
        %1881 = vmatpush2.msra.mxu0 %v893
        %1882 = vmatprep.subr.mxu0 %v890
        %1883 = vmatpush2.msra.mxu0 %v889
        %1884 = vmatprep.subr.mxu0 %v886
        %1885 = vmatpush2.msra.mxu0 %v885
        %1886 = vmatprep.subr.mxu0 %v882
        %1887 = vmatpush2.msra.mxu0 %v881
        %1888 = vmatprep.subr.mxu0 %v878
        %1889 = vmatpush2.msra.mxu0 %v877
        %1890 = vmatprep.subr.mxu0 %v874
        %1891 = vmatpush2.msra.mxu0 %v873
        %1892 = vmatprep.subr.mxu0 %v870
        %1893 = vmatpush2.msra.mxu0 %v869
        %1894 = vmatprep.subr.mxu0 %v866
        %1895 = vmatpush2.msra.mxu0 %v865
        %1896 = vmatprep.subr.mxu0 %v862
        %1897 = vmatpush2.msra.mxu0 %v861
        %1898 = vmatprep.subr.mxu0 %v858
        %1899 = vmatpush2.msra.mxu0 %v857
        %1900 = vmatprep.subr.mxu0 %v854
        %1901 = vmatpush2.msra.mxu0 %v853
        %1902 = vmatprep.subr.mxu0 %v850
        %1903 = vmatpush2.msra.mxu0 %v849
        %1904 = vmatprep.subr.mxu0 %v846
        %1905 = vmatpush2.msra.mxu0 %v845
        %1906 = vmatprep.subr.mxu0 %v842
        %1907 = vmatpush2.msra.mxu0 %v841
        %1908 = vmatprep.subr.mxu0 %v838
        %1909 = vmatpush2.msra.mxu0 %v837
        %1910 = vmatprep.subr.mxu0 %v834
        %1911 = vmatpush2.msra.mxu0 %v833
        %1912 = vmatprep.mubr.f32.mxu0 %v388
        %1913 = vmatmul.mubr.f32.gmra.mxu0 %v387
        %v1914 = vpop.f32.mrf.mxu0
        %v1915 = vadd.f32 %v1754, %v1914
        %v1916 = vpop.f32.mrf.mxu0
        %v1917 = vadd.f32 %v1756, %v1916
        %1918 = vmatprep.mubr.f32.mxu0 %v404
        %1919 = vmatmul.mubr.f32.gmra.mxu0 %v403
        %v1920 = vpop.f32.mrf.mxu0
        %v1921 = vadd.f32 %v1760, %v1920
        %v1922 = vpop.f32.mrf.mxu0
        %v1923 = vadd.f32 %v1762, %v1922
        %1924 = vmatprep.mubr.f32.mxu0 %v420
        %1925 = vmatmul.mubr.f32.gmra.mxu0 %v419
        %v1926 = vpop.f32.mrf.mxu0
        %v1927 = vadd.f32 %v1766, %v1926
        %v1928 = vpop.f32.mrf.mxu0
        %v1929 = vadd.f32 %v1768, %v1928
        %1930 = vmatprep.mubr.f32.mxu0 %v436
        %1931 = vmatmul.mubr.f32.gmra.mxu0 %v435
        %v1932 = vpop.f32.mrf.mxu0
        %v1933 = vadd.f32 %v1772, %v1932
        %v1934 = vpop.f32.mrf.mxu0
        %v1935 = vadd.f32 %v1774, %v1934
        %1936 = vmatprep.mubr.f32.mxu0 %v452
        %1937 = vmatmul.mubr.f32.gmra.mxu0 %v451
        %v1938 = vpop.f32.mrf.mxu0
        %v1939 = vadd.f32 %v1778, %v1938
        %v1940 = vpop.f32.mrf.mxu0
        %v1941 = vadd.f32 %v1780, %v1940
        %1942 = vmatprep.mubr.f32.mxu0 %v468
        %1943 = vmatmul.mubr.f32.gmra.mxu0 %v467
        %v1944 = vpop.f32.mrf.mxu0
        %v1945 = vadd.f32 %v1784, %v1944
        %v1946 = vpop.f32.mrf.mxu0
        %v1947 = vadd.f32 %v1786, %v1946
        %1948 = vmatprep.mubr.f32.mxu0 %v484
        %1949 = vmatmul.mubr.f32.gmra.mxu0 %v483
        %v1950 = vpop.f32.mrf.mxu0
        %v1951 = vadd.f32 %v1790, %v1950
        %v1952 = vpop.f32.mrf.mxu0
        %v1953 = vadd.f32 %v1792, %v1952
        %1954 = vmatprep.mubr.f32.mxu0 %v500
        %1955 = vmatmul.mubr.f32.gmra.mxu0 %v499
        %v1956 = vpop.f32.mrf.mxu0
        %v1957 = vadd.f32 %v1796, %v1956
        %v1958 = vpop.f32.mrf.mxu0
        %v1959 = vadd.f32 %v1798, %v1958
        %1960 = vmatprep.mubr.f32.mxu0 %v516
        %1961 = vmatmul.mubr.f32.gmra.mxu0 %v515
        %v1962 = vpop.f32.mrf.mxu0
        %v1963 = vadd.f32 %v1802, %v1962
        %v1964 = vpop.f32.mrf.mxu0
        %v1965 = vadd.f32 %v1804, %v1964
        %1966 = vmatprep.mubr.f32.mxu0 %v532
        %1967 = vmatmul.mubr.f32.gmra.mxu0 %v531
        %v1968 = vpop.f32.mrf.mxu0
        %v1969 = vadd.f32 %v1808, %v1968
        %v1970 = vpop.f32.mrf.mxu0
        %v1971 = vadd.f32 %v1810, %v1970
        %1972 = vmatprep.mubr.f32.mxu0 %v548
        %1973 = vmatmul.mubr.f32.gmra.mxu0 %v547
        %v1974 = vpop.f32.mrf.mxu0
        %v1975 = vadd.f32 %v1814, %v1974
        %v1976 = vpop.f32.mrf.mxu0
        %v1977 = vadd.f32 %v1816, %v1976
        %1978 = vmatprep.mubr.f32.mxu0 %v564
        %1979 = vmatmul.mubr.f32.gmra.mxu0 %v563
        %v1980 = vpop.f32.mrf.mxu0
        %v1981 = vadd.f32 %v1820, %v1980
        %v1982 = vpop.f32.mrf.mxu0
        %v1983 = vadd.f32 %v1822, %v1982
        %1984 = vmatprep.mubr.f32.mxu0 %v580
        %1985 = vmatmul.mubr.f32.gmra.mxu0 %v579
        %v1986 = vpop.f32.mrf.mxu0
        %v1987 = vadd.f32 %v1826, %v1986
        %v1988 = vpop.f32.mrf.mxu0
        %v1989 = vadd.f32 %v1828, %v1988
        %1990 = vmatprep.mubr.f32.mxu0 %v596
        %1991 = vmatmul.mubr.f32.gmra.mxu0 %v595
        %v1992 = vpop.f32.mrf.mxu0
        %v1993 = vadd.f32 %v1832, %v1992
        %v1994 = vpop.f32.mrf.mxu0
        %v1995 = vadd.f32 %v1834, %v1994
        %1996 = vmatprep.mubr.f32.mxu0 %v612
        %1997 = vmatmul.mubr.f32.gmra.mxu0 %v611
        %v1998 = vpop.f32.mrf.mxu0
        %v1999 = vadd.f32 %v1838, %v1998
        %v2000 = vpop.f32.mrf.mxu0
        %v2001 = vadd.f32 %v1840, %v2000
        %2002 = vmatprep.mubr.f32.mxu0 %v628
        %2003 = vmatmul.mubr.f32.gmra.mxu0 %v627
        %v2004 = vpop.f32.mrf.mxu0
        %v2005 = vadd.f32 %v1844, %v2004
        %v2006 = vpop.f32.mrf.mxu0
        %v2007 = vadd.f32 %v1846, %v2006
        %2008 = vdwg.mxu0
        %2009 = vmatprep.subr.mxu0 %v958
        %2010 = vmatpush1.msra.mxu0 %v957
        %2011 = vmatprep.subr.mxu0 %v954
        %2012 = vmatpush1.msra.mxu0 %v953
        %2013 = vmatprep.subr.mxu0 %v950
        %2014 = vmatpush1.msra.mxu0 %v949
        %2015 = vmatprep.subr.mxu0 %v946
        %2016 = vmatpush1.msra.mxu0 %v945
        %2017 = vmatprep.subr.mxu0 %v942
        %2018 = vmatpush1.msra.mxu0 %v941
        %2019 = vmatprep.subr.mxu0 %v938
        %2020 = vmatpush1.msra.mxu0 %v937
        %2021 = vmatprep.subr.mxu0 %v934
        %2022 = vmatpush1.msra.mxu0 %v933
        %2023 = vmatprep.subr.mxu0 %v930
        %2024 = vmatpush1.msra.mxu0 %v929
        %2025 = vmatprep.subr.mxu0 %v926
        %2026 = vmatpush1.msra.mxu0 %v925
        %2027 = vmatprep.subr.mxu0 %v922
        %2028 = vmatpush1.msra.mxu0 %v921
        %2029 = vmatprep.subr.mxu0 %v918
        %2030 = vmatpush1.msra.mxu0 %v917
        %2031 = vmatprep.subr.mxu0 %v914
        %2032 = vmatpush1.msra.mxu0 %v913
        %2033 = vmatprep.subr.mxu0 %v910
        %2034 = vmatpush1.msra.mxu0 %v909
        %2035 = vmatprep.subr.mxu0 %v906
        %2036 = vmatpush1.msra.mxu0 %v905
        %2037 = vmatprep.subr.mxu0 %v902
        %2038 = vmatpush1.msra.mxu0 %v901
        %2039 = vmatprep.subr.mxu0 %v898
        %2040 = vmatpush1.msra.mxu0 %v897
        %2041 = vmatprep.subr.mxu0 %v1022
        %2042 = vmatpush2.msra.mxu0 %v1021
        %2043 = vmatprep.subr.mxu0 %v1018
        %2044 = vmatpush2.msra.mxu0 %v1017
        %2045 = vmatprep.subr.mxu0 %v1014
        %2046 = vmatpush2.msra.mxu0 %v1013
        %2047 = vmatprep.subr.mxu0 %v1010
        %2048 = vmatpush2.msra.mxu0 %v1009
        %2049 = vmatprep.subr.mxu0 %v1006
        %2050 = vmatpush2.msra.mxu0 %v1005
        %2051 = vmatprep.subr.mxu0 %v1002
        %2052 = vmatpush2.msra.mxu0 %v1001
        %2053 = vmatprep.subr.mxu0 %v998
        %2054 = vmatpush2.msra.mxu0 %v997
        %2055 = vmatprep.subr.mxu0 %v994
        %2056 = vmatpush2.msra.mxu0 %v993
        %2057 = vmatprep.subr.mxu0 %v990
        %2058 = vmatpush2.msra.mxu0 %v989
        %2059 = vmatprep.subr.mxu0 %v986
        %2060 = vmatpush2.msra.mxu0 %v985
        %2061 = vmatprep.subr.mxu0 %v982
        %2062 = vmatpush2.msra.mxu0 %v981
        %2063 = vmatprep.subr.mxu0 %v978
        %2064 = vmatpush2.msra.mxu0 %v977
        %2065 = vmatprep.subr.mxu0 %v974
        %2066 = vmatpush2.msra.mxu0 %v973
        %2067 = vmatprep.subr.mxu0 %v970
        %2068 = vmatpush2.msra.mxu0 %v969
        %2069 = vmatprep.subr.mxu0 %v966
        %2070 = vmatpush2.msra.mxu0 %v965
        %2071 = vmatprep.subr.mxu0 %v962
        %2072 = vmatpush2.msra.mxu0 %v961
        %2073 = vmatprep.mubr.f32.mxu0 %v390
        %2074 = vmatmul.mubr.f32.gmra.mxu0 %v389
        %v2075 = vpop.f32.mrf.mxu0
        %v2076 = vadd.f32 %v1915, %v2075
        %v2077 = vpop.f32.mrf.mxu0
        %v2078 = vadd.f32 %v1917, %v2077
        %2079 = vmatprep.mubr.f32.mxu0 %v406
        %2080 = vmatmul.mubr.f32.gmra.mxu0 %v405
        %v2081 = vpop.f32.mrf.mxu0
        %v2082 = vadd.f32 %v1921, %v2081
        %v2083 = vpop.f32.mrf.mxu0
        %v2084 = vadd.f32 %v1923, %v2083
        %2085 = vmatprep.mubr.f32.mxu0 %v422
        %2086 = vmatmul.mubr.f32.gmra.mxu0 %v421
        %v2087 = vpop.f32.mrf.mxu0
        %v2088 = vadd.f32 %v1927, %v2087
        %v2089 = vpop.f32.mrf.mxu0
        %v2090 = vadd.f32 %v1929, %v2089
        %2091 = vmatprep.mubr.f32.mxu0 %v438
        %2092 = vmatmul.mubr.f32.gmra.mxu0 %v437
        %v2093 = vpop.f32.mrf.mxu0
        %v2094 = vadd.f32 %v1933, %v2093
        %v2095 = vpop.f32.mrf.mxu0
        %v2096 = vadd.f32 %v1935, %v2095
        %2097 = vmatprep.mubr.f32.mxu0 %v454
        %2098 = vmatmul.mubr.f32.gmra.mxu0 %v453
        %v2099 = vpop.f32.mrf.mxu0
        %v2100 = vadd.f32 %v1939, %v2099
        %v2101 = vpop.f32.mrf.mxu0
        %v2102 = vadd.f32 %v1941, %v2101
        %2103 = vmatprep.mubr.f32.mxu0 %v470
        %2104 = vmatmul.mubr.f32.gmra.mxu0 %v469
        %v2105 = vpop.f32.mrf.mxu0
        %v2106 = vadd.f32 %v1945, %v2105
        %v2107 = vpop.f32.mrf.mxu0
        %v2108 = vadd.f32 %v1947, %v2107
        %2109 = vmatprep.mubr.f32.mxu0 %v486
        %2110 = vmatmul.mubr.f32.gmra.mxu0 %v485
        %v2111 = vpop.f32.mrf.mxu0
        %v2112 = vadd.f32 %v1951, %v2111
        %v2113 = vpop.f32.mrf.mxu0
        %v2114 = vadd.f32 %v1953, %v2113
        %2115 = vmatprep.mubr.f32.mxu0 %v502
        %2116 = vmatmul.mubr.f32.gmra.mxu0 %v501
        %v2117 = vpop.f32.mrf.mxu0
        %v2118 = vadd.f32 %v1957, %v2117
        %v2119 = vpop.f32.mrf.mxu0
        %v2120 = vadd.f32 %v1959, %v2119
        %2121 = vmatprep.mubr.f32.mxu0 %v518
        %2122 = vmatmul.mubr.f32.gmra.mxu0 %v517
        %v2123 = vpop.f32.mrf.mxu0
        %v2124 = vadd.f32 %v1963, %v2123
        %v2125 = vpop.f32.mrf.mxu0
        %v2126 = vadd.f32 %v1965, %v2125
        %2127 = vmatprep.mubr.f32.mxu0 %v534
        %2128 = vmatmul.mubr.f32.gmra.mxu0 %v533
        %v2129 = vpop.f32.mrf.mxu0
        %v2130 = vadd.f32 %v1969, %v2129
        %v2131 = vpop.f32.mrf.mxu0
        %v2132 = vadd.f32 %v1971, %v2131
        %2133 = vmatprep.mubr.f32.mxu0 %v550
        %2134 = vmatmul.mubr.f32.gmra.mxu0 %v549
        %v2135 = vpop.f32.mrf.mxu0
        %v2136 = vadd.f32 %v1975, %v2135
        %v2137 = vpop.f32.mrf.mxu0
        %v2138 = vadd.f32 %v1977, %v2137
        %2139 = vmatprep.mubr.f32.mxu0 %v566
        %2140 = vmatmul.mubr.f32.gmra.mxu0 %v565
        %v2141 = vpop.f32.mrf.mxu0
        %v2142 = vadd.f32 %v1981, %v2141
        %v2143 = vpop.f32.mrf.mxu0
        %v2144 = vadd.f32 %v1983, %v2143
        %2145 = vmatprep.mubr.f32.mxu0 %v582
        %2146 = vmatmul.mubr.f32.gmra.mxu0 %v581
        %v2147 = vpop.f32.mrf.mxu0
        %v2148 = vadd.f32 %v1987, %v2147
        %v2149 = vpop.f32.mrf.mxu0
        %v2150 = vadd.f32 %v1989, %v2149
        %2151 = vmatprep.mubr.f32.mxu0 %v598
        %2152 = vmatmul.mubr.f32.gmra.mxu0 %v597
        %v2153 = vpop.f32.mrf.mxu0
        %v2154 = vadd.f32 %v1993, %v2153
        %v2155 = vpop.f32.mrf.mxu0
        %v2156 = vadd.f32 %v1995, %v2155
        %2157 = vmatprep.mubr.f32.mxu0 %v614
        %2158 = vmatmul.mubr.f32.gmra.mxu0 %v613
        %v2159 = vpop.f32.mrf.mxu0
        %v2160 = vadd.f32 %v1999, %v2159
        %v2161 = vpop.f32.mrf.mxu0
        %v2162 = vadd.f32 %v2001, %v2161
        %2163 = vmatprep.mubr.f32.mxu0 %v630
        %2164 = vmatmul.mubr.f32.gmra.mxu0 %v629
        %v2165 = vpop.f32.mrf.mxu0
        %v2166 = vadd.f32 %v2005, %v2165
        %v2167 = vpop.f32.mrf.mxu0
        %v2168 = vadd.f32 %v2007, %v2167
        %2169 = vdwg.mxu0
        %2170 = vmatprep.subr.mxu0 %v1086
        %2171 = vmatpush1.msra.mxu0 %v1085
        %2172 = vmatprep.subr.mxu0 %v1082
        %2173 = vmatpush1.msra.mxu0 %v1081
        %2174 = vmatprep.subr.mxu0 %v1078
        %2175 = vmatpush1.msra.mxu0 %v1077
        %2176 = vmatprep.subr.mxu0 %v1074
        %2177 = vmatpush1.msra.mxu0 %v1073
        %2178 = vmatprep.subr.mxu0 %v1070
        %2179 = vmatpush1.msra.mxu0 %v1069
        %2180 = vmatprep.subr.mxu0 %v1066
        %2181 = vmatpush1.msra.mxu0 %v1065
        %2182 = vmatprep.subr.mxu0 %v1062
        %2183 = vmatpush1.msra.mxu0 %v1061
        %2184 = vmatprep.subr.mxu0 %v1058
        %2185 = vmatpush1.msra.mxu0 %v1057
        %2186 = vmatprep.subr.mxu0 %v1054
        %2187 = vmatpush1.msra.mxu0 %v1053
        %2188 = vmatprep.subr.mxu0 %v1050
        %2189 = vmatpush1.msra.mxu0 %v1049
        %2190 = vmatprep.subr.mxu0 %v1046
        %2191 = vmatpush1.msra.mxu0 %v1045
        %2192 = vmatprep.subr.mxu0 %v1042
        %2193 = vmatpush1.msra.mxu0 %v1041
        %2194 = vmatprep.subr.mxu0 %v1038
        %2195 = vmatpush1.msra.mxu0 %v1037
        %2196 = vmatprep.subr.mxu0 %v1034
        %2197 = vmatpush1.msra.mxu0 %v1033
        %2198 = vmatprep.subr.mxu0 %v1030
        %2199 = vmatpush1.msra.mxu0 %v1029
        %2200 = vmatprep.subr.mxu0 %v1026
        %2201 = vmatpush1.msra.mxu0 %v1025
        %2202 = vmatprep.subr.mxu0 %v1150
        %2203 = vmatpush2.msra.mxu0 %v1149
        %2204 = vmatprep.subr.mxu0 %v1146
        %2205 = vmatpush2.msra.mxu0 %v1145
        %2206 = vmatprep.subr.mxu0 %v1142
        %2207 = vmatpush2.msra.mxu0 %v1141
        %2208 = vmatprep.subr.mxu0 %v1138
        %2209 = vmatpush2.msra.mxu0 %v1137
        %2210 = vmatprep.subr.mxu0 %v1134
        %2211 = vmatpush2.msra.mxu0 %v1133
        %2212 = vmatprep.subr.mxu0 %v1130
        %2213 = vmatpush2.msra.mxu0 %v1129
        %2214 = vmatprep.subr.mxu0 %v1126
        %2215 = vmatpush2.msra.mxu0 %v1125
        %2216 = vmatprep.subr.mxu0 %v1122
        %2217 = vmatpush2.msra.mxu0 %v1121
        %2218 = vmatprep.subr.mxu0 %v1118
        %2219 = vmatpush2.msra.mxu0 %v1117
        %2220 = vmatprep.subr.mxu0 %v1114
        %2221 = vmatpush2.msra.mxu0 %v1113
        %2222 = vmatprep.subr.mxu0 %v1110
        %2223 = vmatpush2.msra.mxu0 %v1109
        %2224 = vmatprep.subr.mxu0 %v1106
        %2225 = vmatpush2.msra.mxu0 %v1105
        %2226 = vmatprep.subr.mxu0 %v1102
        %2227 = vmatpush2.msra.mxu0 %v1101
        %2228 = vmatprep.subr.mxu0 %v1098
        %2229 = vmatpush2.msra.mxu0 %v1097
        %2230 = vmatprep.subr.mxu0 %v1094
        %2231 = vmatpush2.msra.mxu0 %v1093
        %2232 = vmatprep.subr.mxu0 %v1090
        %2233 = vmatpush2.msra.mxu0 %v1089
        %2234 = vmatprep.mubr.f32.mxu0 %v392
        %2235 = vmatmul.mubr.f32.gmra.mxu0 %v391
        %v2236 = vpop.f32.mrf.mxu0
        %v2237 = vadd.f32 %v2076, %v2236
        %v2238 = vpop.f32.mrf.mxu0
        %v2239 = vadd.f32 %v2078, %v2238
        %2240 = vmatprep.mubr.f32.mxu0 %v408
        %2241 = vmatmul.mubr.f32.gmra.mxu0 %v407
        %v2242 = vpop.f32.mrf.mxu0
        %v2243 = vadd.f32 %v2082, %v2242
        %v2244 = vpop.f32.mrf.mxu0
        %v2245 = vadd.f32 %v2084, %v2244
        %2246 = vmatprep.mubr.f32.mxu0 %v424
        %2247 = vmatmul.mubr.f32.gmra.mxu0 %v423
        %v2248 = vpop.f32.mrf.mxu0
        %v2249 = vadd.f32 %v2088, %v2248
        %v2250 = vpop.f32.mrf.mxu0
        %v2251 = vadd.f32 %v2090, %v2250
        %2252 = vmatprep.mubr.f32.mxu0 %v440
        %2253 = vmatmul.mubr.f32.gmra.mxu0 %v439
        %v2254 = vpop.f32.mrf.mxu0
        %v2255 = vadd.f32 %v2094, %v2254
        %v2256 = vpop.f32.mrf.mxu0
        %v2257 = vadd.f32 %v2096, %v2256
        %2258 = vmatprep.mubr.f32.mxu0 %v456
        %2259 = vmatmul.mubr.f32.gmra.mxu0 %v455
        %v2260 = vpop.f32.mrf.mxu0
        %v2261 = vadd.f32 %v2100, %v2260
        %v2262 = vpop.f32.mrf.mxu0
        %v2263 = vadd.f32 %v2102, %v2262
        %2264 = vmatprep.mubr.f32.mxu0 %v472
        %2265 = vmatmul.mubr.f32.gmra.mxu0 %v471
        %v2266 = vpop.f32.mrf.mxu0
        %v2267 = vadd.f32 %v2106, %v2266
        %v2268 = vpop.f32.mrf.mxu0
        %v2269 = vadd.f32 %v2108, %v2268
        %2270 = vmatprep.mubr.f32.mxu0 %v488
        %2271 = vmatmul.mubr.f32.gmra.mxu0 %v487
        %v2272 = vpop.f32.mrf.mxu0
        %v2273 = vadd.f32 %v2112, %v2272
        %v2274 = vpop.f32.mrf.mxu0
        %v2275 = vadd.f32 %v2114, %v2274
        %2276 = vmatprep.mubr.f32.mxu0 %v504
        %2277 = vmatmul.mubr.f32.gmra.mxu0 %v503
        %v2278 = vpop.f32.mrf.mxu0
        %v2279 = vadd.f32 %v2118, %v2278
        %v2280 = vpop.f32.mrf.mxu0
        %v2281 = vadd.f32 %v2120, %v2280
        %2282 = vmatprep.mubr.f32.mxu0 %v520
        %2283 = vmatmul.mubr.f32.gmra.mxu0 %v519
        %v2284 = vpop.f32.mrf.mxu0
        %v2285 = vadd.f32 %v2124, %v2284
        %v2286 = vpop.f32.mrf.mxu0
        %v2287 = vadd.f32 %v2126, %v2286
        %2288 = vmatprep.mubr.f32.mxu0 %v536
        %2289 = vmatmul.mubr.f32.gmra.mxu0 %v535
        %v2290 = vpop.f32.mrf.mxu0
        %v2291 = vadd.f32 %v2130, %v2290
        %v2292 = vpop.f32.mrf.mxu0
        %v2293 = vadd.f32 %v2132, %v2292
        %2294 = vmatprep.mubr.f32.mxu0 %v552
        %2295 = vmatmul.mubr.f32.gmra.mxu0 %v551
        %v2296 = vpop.f32.mrf.mxu0
        %v2297 = vadd.f32 %v2136, %v2296
        %v2298 = vpop.f32.mrf.mxu0
        %v2299 = vadd.f32 %v2138, %v2298
        %2300 = vmatprep.mubr.f32.mxu0 %v568
        %2301 = vmatmul.mubr.f32.gmra.mxu0 %v567
        %v2302 = vpop.f32.mrf.mxu0
        %v2303 = vadd.f32 %v2142, %v2302
        %v2304 = vpop.f32.mrf.mxu0
        %v2305 = vadd.f32 %v2144, %v2304
        %2306 = vmatprep.mubr.f32.mxu0 %v584
        %2307 = vmatmul.mubr.f32.gmra.mxu0 %v583
        %v2308 = vpop.f32.mrf.mxu0
        %v2309 = vadd.f32 %v2148, %v2308
        %v2310 = vpop.f32.mrf.mxu0
        %v2311 = vadd.f32 %v2150, %v2310
        %2312 = vmatprep.mubr.f32.mxu0 %v600
        %2313 = vmatmul.mubr.f32.gmra.mxu0 %v599
        %v2314 = vpop.f32.mrf.mxu0
        %v2315 = vadd.f32 %v2154, %v2314
        %v2316 = vpop.f32.mrf.mxu0
        %v2317 = vadd.f32 %v2156, %v2316
        %2318 = vmatprep.mubr.f32.mxu0 %v616
        %2319 = vmatmul.mubr.f32.gmra.mxu0 %v615
        %v2320 = vpop.f32.mrf.mxu0
        %v2321 = vadd.f32 %v2160, %v2320
        %v2322 = vpop.f32.mrf.mxu0
        %v2323 = vadd.f32 %v2162, %v2322
        %2324 = vmatprep.mubr.f32.mxu0 %v632
        %2325 = vmatmul.mubr.f32.gmra.mxu0 %v631
        %v2326 = vpop.f32.mrf.mxu0
        %v2327 = vadd.f32 %v2166, %v2326
        %v2328 = vpop.f32.mrf.mxu0
        %v2329 = vadd.f32 %v2168, %v2328
        %2330 = vdwg.mxu0
        %2331 = vmatprep.subr.mxu0 %v1214
        %2332 = vmatpush1.msra.mxu0 %v1213
        %2333 = vmatprep.subr.mxu0 %v1210
        %2334 = vmatpush1.msra.mxu0 %v1209
        %2335 = vmatprep.subr.mxu0 %v1206
        %2336 = vmatpush1.msra.mxu0 %v1205
        %2337 = vmatprep.subr.mxu0 %v1202
        %2338 = vmatpush1.msra.mxu0 %v1201
        %2339 = vmatprep.subr.mxu0 %v1198
        %2340 = vmatpush1.msra.mxu0 %v1197
        %2341 = vmatprep.subr.mxu0 %v1194
        %2342 = vmatpush1.msra.mxu0 %v1193
        %2343 = vmatprep.subr.mxu0 %v1190
        %2344 = vmatpush1.msra.mxu0 %v1189
        %2345 = vmatprep.subr.mxu0 %v1186
        %2346 = vmatpush1.msra.mxu0 %v1185
        %2347 = vmatprep.subr.mxu0 %v1182
        %2348 = vmatpush1.msra.mxu0 %v1181
        %2349 = vmatprep.subr.mxu0 %v1178
        %2350 = vmatpush1.msra.mxu0 %v1177
        %2351 = vmatprep.subr.mxu0 %v1174
        %2352 = vmatpush1.msra.mxu0 %v1173
        %2353 = vmatprep.subr.mxu0 %v1170
        %2354 = vmatpush1.msra.mxu0 %v1169
        %2355 = vmatprep.subr.mxu0 %v1166
        %2356 = vmatpush1.msra.mxu0 %v1165
        %2357 = vmatprep.subr.mxu0 %v1162
        %2358 = vmatpush1.msra.mxu0 %v1161
        %2359 = vmatprep.subr.mxu0 %v1158
        %2360 = vmatpush1.msra.mxu0 %v1157
        %2361 = vmatprep.subr.mxu0 %v1154
        %2362 = vmatpush1.msra.mxu0 %v1153
        %2363 = vmatprep.subr.mxu0 %v1278
        %2364 = vmatpush2.msra.mxu0 %v1277
        %2365 = vmatprep.subr.mxu0 %v1274
        %2366 = vmatpush2.msra.mxu0 %v1273
        %2367 = vmatprep.subr.mxu0 %v1270
        %2368 = vmatpush2.msra.mxu0 %v1269
        %2369 = vmatprep.subr.mxu0 %v1266
        %2370 = vmatpush2.msra.mxu0 %v1265
        %2371 = vmatprep.subr.mxu0 %v1262
        %2372 = vmatpush2.msra.mxu0 %v1261
        %2373 = vmatprep.subr.mxu0 %v1258
        %2374 = vmatpush2.msra.mxu0 %v1257
        %2375 = vmatprep.subr.mxu0 %v1254
        %2376 = vmatpush2.msra.mxu0 %v1253
        %2377 = vmatprep.subr.mxu0 %v1250
        %2378 = vmatpush2.msra.mxu0 %v1249
        %2379 = vmatprep.subr.mxu0 %v1246
        %2380 = vmatpush2.msra.mxu0 %v1245
        %2381 = vmatprep.subr.mxu0 %v1242
        %2382 = vmatpush2.msra.mxu0 %v1241
        %2383 = vmatprep.subr.mxu0 %v1238
        %2384 = vmatpush2.msra.mxu0 %v1237
        %2385 = vmatprep.subr.mxu0 %v1234
        %2386 = vmatpush2.msra.mxu0 %v1233
        %2387 = vmatprep.subr.mxu0 %v1230
        %2388 = vmatpush2.msra.mxu0 %v1229
        %2389 = vmatprep.subr.mxu0 %v1226
        %2390 = vmatpush2.msra.mxu0 %v1225
        %2391 = vmatprep.subr.mxu0 %v1222
        %2392 = vmatpush2.msra.mxu0 %v1221
        %2393 = vmatprep.subr.mxu0 %v1218
        %2394 = vmatpush2.msra.mxu0 %v1217
        %2395 = vmatprep.mubr.f32.mxu0 %v394
        %2396 = vmatmul.mubr.f32.gmra.mxu0 %v393
        %v2397 = vpop.f32.mrf.mxu0
        %v2398 = vadd.f32 %v2237, %v2397
        %v2399 = vpop.f32.mrf.mxu0
        %v2400 = vadd.f32 %v2239, %v2399
        %2401 = vmatprep.mubr.f32.mxu0 %v410
        %2402 = vmatmul.mubr.f32.gmra.mxu0 %v409
        %v2403 = vpop.f32.mrf.mxu0
        %v2404 = vadd.f32 %v2243, %v2403
        %v2405 = vpop.f32.mrf.mxu0
        %v2406 = vadd.f32 %v2245, %v2405
        %2407 = vmatprep.mubr.f32.mxu0 %v426
        %2408 = vmatmul.mubr.f32.gmra.mxu0 %v425
        %v2409 = vpop.f32.mrf.mxu0
        %v2410 = vadd.f32 %v2249, %v2409
        %v2411 = vpop.f32.mrf.mxu0
        %v2412 = vadd.f32 %v2251, %v2411
        %2413 = vmatprep.mubr.f32.mxu0 %v442
        %2414 = vmatmul.mubr.f32.gmra.mxu0 %v441
        %v2415 = vpop.f32.mrf.mxu0
        %v2416 = vadd.f32 %v2255, %v2415
        %v2417 = vpop.f32.mrf.mxu0
        %v2418 = vadd.f32 %v2257, %v2417
        %2419 = vmatprep.mubr.f32.mxu0 %v458
        %2420 = vmatmul.mubr.f32.gmra.mxu0 %v457
        %v2421 = vpop.f32.mrf.mxu0
        %v2422 = vadd.f32 %v2261, %v2421
        %v2423 = vpop.f32.mrf.mxu0
        %v2424 = vadd.f32 %v2263, %v2423
        %2425 = vmatprep.mubr.f32.mxu0 %v474
        %2426 = vmatmul.mubr.f32.gmra.mxu0 %v473
        %v2427 = vpop.f32.mrf.mxu0
        %v2428 = vadd.f32 %v2267, %v2427
        %v2429 = vpop.f32.mrf.mxu0
        %v2430 = vadd.f32 %v2269, %v2429
        %2431 = vmatprep.mubr.f32.mxu0 %v490
        %2432 = vmatmul.mubr.f32.gmra.mxu0 %v489
        %v2433 = vpop.f32.mrf.mxu0
        %v2434 = vadd.f32 %v2273, %v2433
        %v2435 = vpop.f32.mrf.mxu0
        %v2436 = vadd.f32 %v2275, %v2435
        %2437 = vmatprep.mubr.f32.mxu0 %v506
        %2438 = vmatmul.mubr.f32.gmra.mxu0 %v505
        %v2439 = vpop.f32.mrf.mxu0
        %v2440 = vadd.f32 %v2279, %v2439
        %v2441 = vpop.f32.mrf.mxu0
        %v2442 = vadd.f32 %v2281, %v2441
        %2443 = vmatprep.mubr.f32.mxu0 %v522
        %2444 = vmatmul.mubr.f32.gmra.mxu0 %v521
        %v2445 = vpop.f32.mrf.mxu0
        %v2446 = vadd.f32 %v2285, %v2445
        %v2447 = vpop.f32.mrf.mxu0
        %v2448 = vadd.f32 %v2287, %v2447
        %2449 = vmatprep.mubr.f32.mxu0 %v538
        %2450 = vmatmul.mubr.f32.gmra.mxu0 %v537
        %v2451 = vpop.f32.mrf.mxu0
        %v2452 = vadd.f32 %v2291, %v2451
        %v2453 = vpop.f32.mrf.mxu0
        %v2454 = vadd.f32 %v2293, %v2453
        %2455 = vmatprep.mubr.f32.mxu0 %v554
        %2456 = vmatmul.mubr.f32.gmra.mxu0 %v553
        %v2457 = vpop.f32.mrf.mxu0
        %v2458 = vadd.f32 %v2297, %v2457
        %v2459 = vpop.f32.mrf.mxu0
        %v2460 = vadd.f32 %v2299, %v2459
        %2461 = vmatprep.mubr.f32.mxu0 %v570
        %2462 = vmatmul.mubr.f32.gmra.mxu0 %v569
        %v2463 = vpop.f32.mrf.mxu0
        %v2464 = vadd.f32 %v2303, %v2463
        %v2465 = vpop.f32.mrf.mxu0
        %v2466 = vadd.f32 %v2305, %v2465
        %2467 = vmatprep.mubr.f32.mxu0 %v586
        %2468 = vmatmul.mubr.f32.gmra.mxu0 %v585
        %v2469 = vpop.f32.mrf.mxu0
        %v2470 = vadd.f32 %v2309, %v2469
        %v2471 = vpop.f32.mrf.mxu0
        %v2472 = vadd.f32 %v2311, %v2471
        %2473 = vmatprep.mubr.f32.mxu0 %v602
        %2474 = vmatmul.mubr.f32.gmra.mxu0 %v601
        %v2475 = vpop.f32.mrf.mxu0
        %v2476 = vadd.f32 %v2315, %v2475
        %v2477 = vpop.f32.mrf.mxu0
        %v2478 = vadd.f32 %v2317, %v2477
        %2479 = vmatprep.mubr.f32.mxu0 %v618
        %2480 = vmatmul.mubr.f32.gmra.mxu0 %v617
        %v2481 = vpop.f32.mrf.mxu0
        %v2482 = vadd.f32 %v2321, %v2481
        %v2483 = vpop.f32.mrf.mxu0
        %v2484 = vadd.f32 %v2323, %v2483
        %2485 = vmatprep.mubr.f32.mxu0 %v634
        %2486 = vmatmul.mubr.f32.gmra.mxu0 %v633
        %v2487 = vpop.f32.mrf.mxu0
        %v2488 = vadd.f32 %v2327, %v2487
        %v2489 = vpop.f32.mrf.mxu0
        %v2490 = vadd.f32 %v2329, %v2489
        %2491 = vdwg.mxu0
        %2492 = vmatprep.subr.mxu0 %v1342
        %2493 = vmatpush1.msra.mxu0 %v1341
        %2494 = vmatprep.subr.mxu0 %v1338
        %2495 = vmatpush1.msra.mxu0 %v1337
        %2496 = vmatprep.subr.mxu0 %v1334
        %2497 = vmatpush1.msra.mxu0 %v1333
        %2498 = vmatprep.subr.mxu0 %v1330
        %2499 = vmatpush1.msra.mxu0 %v1329
        %2500 = vmatprep.subr.mxu0 %v1326
        %2501 = vmatpush1.msra.mxu0 %v1325
        %2502 = vmatprep.subr.mxu0 %v1322
        %2503 = vmatpush1.msra.mxu0 %v1321
        %2504 = vmatprep.subr.mxu0 %v1318
        %2505 = vmatpush1.msra.mxu0 %v1317
        %2506 = vmatprep.subr.mxu0 %v1314
        %2507 = vmatpush1.msra.mxu0 %v1313
        %2508 = vmatprep.subr.mxu0 %v1310
        %2509 = vmatpush1.msra.mxu0 %v1309
        %2510 = vmatprep.subr.mxu0 %v1306
        %2511 = vmatpush1.msra.mxu0 %v1305
        %2512 = vmatprep.subr.mxu0 %v1302
        %2513 = vmatpush1.msra.mxu0 %v1301
        %2514 = vmatprep.subr.mxu0 %v1298
        %2515 = vmatpush1.msra.mxu0 %v1297
        %2516 = vmatprep.subr.mxu0 %v1294
        %2517 = vmatpush1.msra.mxu0 %v1293
        %2518 = vmatprep.subr.mxu0 %v1290
        %2519 = vmatpush1.msra.mxu0 %v1289
        %2520 = vmatprep.subr.mxu0 %v1286
        %2521 = vmatpush1.msra.mxu0 %v1285
        %2522 = vmatprep.subr.mxu0 %v1282
        %2523 = vmatpush1.msra.mxu0 %v1281
        %2524 = vmatprep.subr.mxu0 %v1406
        %2525 = vmatpush2.msra.mxu0 %v1405
        %2526 = vmatprep.subr.mxu0 %v1402
        %2527 = vmatpush2.msra.mxu0 %v1401
        %2528 = vmatprep.subr.mxu0 %v1398
        %2529 = vmatpush2.msra.mxu0 %v1397
        %2530 = vmatprep.subr.mxu0 %v1394
        %2531 = vmatpush2.msra.mxu0 %v1393
        %2532 = vmatprep.subr.mxu0 %v1390
        %2533 = vmatpush2.msra.mxu0 %v1389
        %2534 = vmatprep.subr.mxu0 %v1386
        %2535 = vmatpush2.msra.mxu0 %v1385
        %2536 = vmatprep.subr.mxu0 %v1382
        %2537 = vmatpush2.msra.mxu0 %v1381
        %2538 = vmatprep.subr.mxu0 %v1378
        %2539 = vmatpush2.msra.mxu0 %v1377
        %2540 = vmatprep.subr.mxu0 %v1374
        %2541 = vmatpush2.msra.mxu0 %v1373
        %2542 = vmatprep.subr.mxu0 %v1370
        %2543 = vmatpush2.msra.mxu0 %v1369
        %2544 = vmatprep.subr.mxu0 %v1366
        %2545 = vmatpush2.msra.mxu0 %v1365
        %2546 = vmatprep.subr.mxu0 %v1362
        %2547 = vmatpush2.msra.mxu0 %v1361
        %2548 = vmatprep.subr.mxu0 %v1358
        %2549 = vmatpush2.msra.mxu0 %v1357
        %2550 = vmatprep.subr.mxu0 %v1354
        %2551 = vmatpush2.msra.mxu0 %v1353
        %2552 = vmatprep.subr.mxu0 %v1350
        %2553 = vmatpush2.msra.mxu0 %v1349
        %2554 = vmatprep.subr.mxu0 %v1346
        %2555 = vmatpush2.msra.mxu0 %v1345
        %2556 = vmatprep.mubr.f32.mxu0 %v396
        %2557 = vmatmul.mubr.f32.gmra.mxu0 %v395
        %v2558 = vpop.f32.mrf.mxu0
        %v2559 = vadd.f32 %v2398, %v2558
        %v2560 = vpop.f32.mrf.mxu0
        %v2561 = vadd.f32 %v2400, %v2560
        %2562 = vmatprep.mubr.f32.mxu0 %v412
        %2563 = vmatmul.mubr.f32.gmra.mxu0 %v411
        %v2564 = vpop.f32.mrf.mxu0
        %v2565 = vadd.f32 %v2404, %v2564
        %v2566 = vpop.f32.mrf.mxu0
        %v2567 = vadd.f32 %v2406, %v2566
        %2568 = vmatprep.mubr.f32.mxu0 %v428
        %2569 = vmatmul.mubr.f32.gmra.mxu0 %v427
        %v2570 = vpop.f32.mrf.mxu0
        %v2571 = vadd.f32 %v2410, %v2570
        %v2572 = vpop.f32.mrf.mxu0
        %v2573 = vadd.f32 %v2412, %v2572
        %2574 = vmatprep.mubr.f32.mxu0 %v444
        %2575 = vmatmul.mubr.f32.gmra.mxu0 %v443
        %v2576 = vpop.f32.mrf.mxu0
        %v2577 = vadd.f32 %v2416, %v2576
        %v2578 = vpop.f32.mrf.mxu0
        %v2579 = vadd.f32 %v2418, %v2578
        %2580 = vmatprep.mubr.f32.mxu0 %v460
        %2581 = vmatmul.mubr.f32.gmra.mxu0 %v459
        %v2582 = vpop.f32.mrf.mxu0
        %v2583 = vadd.f32 %v2422, %v2582
        %v2584 = vpop.f32.mrf.mxu0
        %v2585 = vadd.f32 %v2424, %v2584
        %2586 = vmatprep.mubr.f32.mxu0 %v476
        %2587 = vmatmul.mubr.f32.gmra.mxu0 %v475
        %v2588 = vpop.f32.mrf.mxu0
        %v2589 = vadd.f32 %v2428, %v2588
        %v2590 = vpop.f32.mrf.mxu0
        %v2591 = vadd.f32 %v2430, %v2590
        %2592 = vmatprep.mubr.f32.mxu0 %v492
        %2593 = vmatmul.mubr.f32.gmra.mxu0 %v491
        %v2594 = vpop.f32.mrf.mxu0
        %v2595 = vadd.f32 %v2434, %v2594
        %v2596 = vpop.f32.mrf.mxu0
        %v2597 = vadd.f32 %v2436, %v2596
        %2598 = vmatprep.mubr.f32.mxu0 %v508
        %2599 = vmatmul.mubr.f32.gmra.mxu0 %v507
        %v2600 = vpop.f32.mrf.mxu0
        %v2601 = vadd.f32 %v2440, %v2600
        %v2602 = vpop.f32.mrf.mxu0
        %v2603 = vadd.f32 %v2442, %v2602
        %2604 = vmatprep.mubr.f32.mxu0 %v524
        %2605 = vmatmul.mubr.f32.gmra.mxu0 %v523
        %v2606 = vpop.f32.mrf.mxu0
        %v2607 = vadd.f32 %v2446, %v2606
        %v2608 = vpop.f32.mrf.mxu0
        %v2609 = vadd.f32 %v2448, %v2608
        %2610 = vmatprep.mubr.f32.mxu0 %v540
        %2611 = vmatmul.mubr.f32.gmra.mxu0 %v539
        %v2612 = vpop.f32.mrf.mxu0
        %v2613 = vadd.f32 %v2452, %v2612
        %v2614 = vpop.f32.mrf.mxu0
        %v2615 = vadd.f32 %v2454, %v2614
        %2616 = vmatprep.mubr.f32.mxu0 %v556
        %2617 = vmatmul.mubr.f32.gmra.mxu0 %v555
        %v2618 = vpop.f32.mrf.mxu0
        %v2619 = vadd.f32 %v2458, %v2618
        %v2620 = vpop.f32.mrf.mxu0
        %v2621 = vadd.f32 %v2460, %v2620
        %2622 = vmatprep.mubr.f32.mxu0 %v572
        %2623 = vmatmul.mubr.f32.gmra.mxu0 %v571
        %v2624 = vpop.f32.mrf.mxu0
        %v2625 = vadd.f32 %v2464, %v2624
        %v2626 = vpop.f32.mrf.mxu0
        %v2627 = vadd.f32 %v2466, %v2626
        %2628 = vmatprep.mubr.f32.mxu0 %v588
        %2629 = vmatmul.mubr.f32.gmra.mxu0 %v587
        %v2630 = vpop.f32.mrf.mxu0
        %v2631 = vadd.f32 %v2470, %v2630
        %v2632 = vpop.f32.mrf.mxu0
        %v2633 = vadd.f32 %v2472, %v2632
        %2634 = vmatprep.mubr.f32.mxu0 %v604
        %2635 = vmatmul.mubr.f32.gmra.mxu0 %v603
        %v2636 = vpop.f32.mrf.mxu0
        %v2637 = vadd.f32 %v2476, %v2636
        %v2638 = vpop.f32.mrf.mxu0
        %v2639 = vadd.f32 %v2478, %v2638
        %2640 = vmatprep.mubr.f32.mxu0 %v620
        %2641 = vmatmul.mubr.f32.gmra.mxu0 %v619
        %v2642 = vpop.f32.mrf.mxu0
        %v2643 = vadd.f32 %v2482, %v2642
        %v2644 = vpop.f32.mrf.mxu0
        %v2645 = vadd.f32 %v2484, %v2644
        %2646 = vmatprep.mubr.f32.mxu0 %v636
        %2647 = vmatmul.mubr.f32.gmra.mxu0 %v635
        %v2648 = vpop.f32.mrf.mxu0
        %v2649 = vadd.f32 %v2488, %v2648
        %v2650 = vpop.f32.mrf.mxu0
        %v2651 = vadd.f32 %v2490, %v2650
        %2652 = vdwg.mxu0
        %2653 = vmatprep.subr.mxu0 %v1470
        %2654 = vmatpush1.msra.mxu0 %v1469
        %2655 = vmatprep.subr.mxu0 %v1466
        %2656 = vmatpush1.msra.mxu0 %v1465
        %2657 = vmatprep.subr.mxu0 %v1462
        %2658 = vmatpush1.msra.mxu0 %v1461
        %2659 = vmatprep.subr.mxu0 %v1458
        %2660 = vmatpush1.msra.mxu0 %v1457
        %2661 = vmatprep.subr.mxu0 %v1454
        %2662 = vmatpush1.msra.mxu0 %v1453
        %2663 = vmatprep.subr.mxu0 %v1450
        %2664 = vmatpush1.msra.mxu0 %v1449
        %2665 = vmatprep.subr.mxu0 %v1446
        %2666 = vmatpush1.msra.mxu0 %v1445
        %2667 = vmatprep.subr.mxu0 %v1442
        %2668 = vmatpush1.msra.mxu0 %v1441
        %2669 = vmatprep.subr.mxu0 %v1438
        %2670 = vmatpush1.msra.mxu0 %v1437
        %2671 = vmatprep.subr.mxu0 %v1434
        %2672 = vmatpush1.msra.mxu0 %v1433
        %2673 = vmatprep.subr.mxu0 %v1430
        %2674 = vmatpush1.msra.mxu0 %v1429
        %2675 = vmatprep.subr.mxu0 %v1426
        %2676 = vmatpush1.msra.mxu0 %v1425
        %2677 = vmatprep.subr.mxu0 %v1422
        %2678 = vmatpush1.msra.mxu0 %v1421
        %2679 = vmatprep.subr.mxu0 %v1418
        %2680 = vmatpush1.msra.mxu0 %v1417
        %2681 = vmatprep.subr.mxu0 %v1414
        %2682 = vmatpush1.msra.mxu0 %v1413
        %2683 = vmatprep.subr.mxu0 %v1410
        %2684 = vmatpush1.msra.mxu0 %v1409
        %2685 = vmatprep.subr.mxu0 %v1534
        %2686 = vmatpush2.msra.mxu0 %v1533
        %2687 = vmatprep.subr.mxu0 %v1530
        %2688 = vmatpush2.msra.mxu0 %v1529
        %2689 = vmatprep.subr.mxu0 %v1526
        %2690 = vmatpush2.msra.mxu0 %v1525
        %2691 = vmatprep.subr.mxu0 %v1522
        %2692 = vmatpush2.msra.mxu0 %v1521
        %2693 = vmatprep.subr.mxu0 %v1518
        %2694 = vmatpush2.msra.mxu0 %v1517
        %2695 = vmatprep.subr.mxu0 %v1514
        %2696 = vmatpush2.msra.mxu0 %v1513
        %2697 = vmatprep.subr.mxu0 %v1510
        %2698 = vmatpush2.msra.mxu0 %v1509
        %2699 = vmatprep.subr.mxu0 %v1506
        %2700 = vmatpush2.msra.mxu0 %v1505
        %2701 = vmatprep.subr.mxu0 %v1502
        %2702 = vmatpush2.msra.mxu0 %v1501
        %2703 = vmatprep.subr.mxu0 %v1498
        %2704 = vmatpush2.msra.mxu0 %v1497
        %2705 = vmatprep.subr.mxu0 %v1494
        %2706 = vmatpush2.msra.mxu0 %v1493
        %2707 = vmatprep.subr.mxu0 %v1490
        %2708 = vmatpush2.msra.mxu0 %v1489
        %2709 = vmatprep.subr.mxu0 %v1486
        %2710 = vmatpush2.msra.mxu0 %v1485
        %2711 = vmatprep.subr.mxu0 %v1482
        %2712 = vmatpush2.msra.mxu0 %v1481
        %2713 = vmatprep.subr.mxu0 %v1478
        %2714 = vmatpush2.msra.mxu0 %v1477
        %2715 = vmatprep.subr.mxu0 %v1474
        %2716 = vmatpush2.msra.mxu0 %v1473
        %2717 = vmatprep.mubr.f32.mxu0 %v398
        %2718 = vmatmul.mubr.f32.gmra.mxu0 %v397
        %v2719 = vpop.f32.mrf.mxu0
        %v2720 = vadd.f32 %v2559, %v2719
        %v2721 = vpop.f32.mrf.mxu0
        %v2722 = vadd.f32 %v2561, %v2721
        %2723 = vmatprep.mubr.f32.mxu0 %v414
        %2724 = vmatmul.mubr.f32.gmra.mxu0 %v413
        %v2725 = vpop.f32.mrf.mxu0
        %v2726 = vadd.f32 %v2565, %v2725
        %v2727 = vpop.f32.mrf.mxu0
        %v2728 = vadd.f32 %v2567, %v2727
        %2729 = vmatprep.mubr.f32.mxu0 %v430
        %2730 = vmatmul.mubr.f32.gmra.mxu0 %v429
        %v2731 = vpop.f32.mrf.mxu0
        %v2732 = vadd.f32 %v2571, %v2731
        %v2733 = vpop.f32.mrf.mxu0
        %v2734 = vadd.f32 %v2573, %v2733
        %2735 = vmatprep.mubr.f32.mxu0 %v446
        %2736 = vmatmul.mubr.f32.gmra.mxu0 %v445
        %v2737 = vpop.f32.mrf.mxu0
        %v2738 = vadd.f32 %v2577, %v2737
        %v2739 = vpop.f32.mrf.mxu0
        %v2740 = vadd.f32 %v2579, %v2739
        %2741 = vmatprep.mubr.f32.mxu0 %v462
        %2742 = vmatmul.mubr.f32.gmra.mxu0 %v461
        %v2743 = vpop.f32.mrf.mxu0
        %v2744 = vadd.f32 %v2583, %v2743
        %v2745 = vpop.f32.mrf.mxu0
        %v2746 = vadd.f32 %v2585, %v2745
        %2747 = vmatprep.mubr.f32.mxu0 %v478
        %2748 = vmatmul.mubr.f32.gmra.mxu0 %v477
        %v2749 = vpop.f32.mrf.mxu0
        %v2750 = vadd.f32 %v2589, %v2749
        %v2751 = vpop.f32.mrf.mxu0
        %v2752 = vadd.f32 %v2591, %v2751
        %2753 = vmatprep.mubr.f32.mxu0 %v494
        %2754 = vmatmul.mubr.f32.gmra.mxu0 %v493
        %v2755 = vpop.f32.mrf.mxu0
        %v2756 = vadd.f32 %v2595, %v2755
        %v2757 = vpop.f32.mrf.mxu0
        %v2758 = vadd.f32 %v2597, %v2757
        %2759 = vmatprep.mubr.f32.mxu0 %v510
        %2760 = vmatmul.mubr.f32.gmra.mxu0 %v509
        %v2761 = vpop.f32.mrf.mxu0
        %v2762 = vadd.f32 %v2601, %v2761
        %v2763 = vpop.f32.mrf.mxu0
        %v2764 = vadd.f32 %v2603, %v2763
        %2765 = vmatprep.mubr.f32.mxu0 %v526
        %2766 = vmatmul.mubr.f32.gmra.mxu0 %v525
        %v2767 = vpop.f32.mrf.mxu0
        %v2768 = vadd.f32 %v2607, %v2767
        %v2769 = vpop.f32.mrf.mxu0
        %v2770 = vadd.f32 %v2609, %v2769
        %2771 = vmatprep.mubr.f32.mxu0 %v542
        %2772 = vmatmul.mubr.f32.gmra.mxu0 %v541
        %v2773 = vpop.f32.mrf.mxu0
        %v2774 = vadd.f32 %v2613, %v2773
        %v2775 = vpop.f32.mrf.mxu0
        %v2776 = vadd.f32 %v2615, %v2775
        %2777 = vmatprep.mubr.f32.mxu0 %v558
        %2778 = vmatmul.mubr.f32.gmra.mxu0 %v557
        %v2779 = vpop.f32.mrf.mxu0
        %v2780 = vadd.f32 %v2619, %v2779
        %v2781 = vpop.f32.mrf.mxu0
        %v2782 = vadd.f32 %v2621, %v2781
        %2783 = vmatprep.mubr.f32.mxu0 %v574
        %2784 = vmatmul.mubr.f32.gmra.mxu0 %v573
        %v2785 = vpop.f32.mrf.mxu0
        %v2786 = vadd.f32 %v2625, %v2785
        %v2787 = vpop.f32.mrf.mxu0
        %v2788 = vadd.f32 %v2627, %v2787
        %2789 = vmatprep.mubr.f32.mxu0 %v590
        %2790 = vmatmul.mubr.f32.gmra.mxu0 %v589
        %v2791 = vpop.f32.mrf.mxu0
        %v2792 = vadd.f32 %v2631, %v2791
        %v2793 = vpop.f32.mrf.mxu0
        %v2794 = vadd.f32 %v2633, %v2793
        %2795 = vmatprep.mubr.f32.mxu0 %v606
        %2796 = vmatmul.mubr.f32.gmra.mxu0 %v605
        %v2797 = vpop.f32.mrf.mxu0
        %v2798 = vadd.f32 %v2637, %v2797
        %v2799 = vpop.f32.mrf.mxu0
        %v2800 = vadd.f32 %v2639, %v2799
        %2801 = vmatprep.mubr.f32.mxu0 %v622
        %2802 = vmatmul.mubr.f32.gmra.mxu0 %v621
        %v2803 = vpop.f32.mrf.mxu0
        %v2804 = vadd.f32 %v2643, %v2803
        %v2805 = vpop.f32.mrf.mxu0
        %v2806 = vadd.f32 %v2645, %v2805
        %2807 = vmatprep.mubr.f32.mxu0 %v638
        %2808 = vmatmul.mubr.f32.gmra.mxu0 %v637
        %v2809 = vpop.f32.mrf.mxu0
        %v2810 = vadd.f32 %v2649, %v2809
        %v2811 = vpop.f32.mrf.mxu0
        %v2812 = vadd.f32 %v2651, %v2811
        %2813 = vdwg.mxu0
        %2814 = vmatprep.subr.mxu0 %v1598
        %2815 = vmatpush1.msra.mxu0 %v1597
        %2816 = vmatprep.subr.mxu0 %v1594
        %2817 = vmatpush1.msra.mxu0 %v1593
        %2818 = vmatprep.subr.mxu0 %v1590
        %2819 = vmatpush1.msra.mxu0 %v1589
        %2820 = vmatprep.subr.mxu0 %v1586
        %2821 = vmatpush1.msra.mxu0 %v1585
        %2822 = vmatprep.subr.mxu0 %v1582
        %2823 = vmatpush1.msra.mxu0 %v1581
        %2824 = vmatprep.subr.mxu0 %v1578
        %2825 = vmatpush1.msra.mxu0 %v1577
        %2826 = vmatprep.subr.mxu0 %v1574
        %2827 = vmatpush1.msra.mxu0 %v1573
        %2828 = vmatprep.subr.mxu0 %v1570
        %2829 = vmatpush1.msra.mxu0 %v1569
        %2830 = vmatprep.subr.mxu0 %v1566
        %2831 = vmatpush1.msra.mxu0 %v1565
        %2832 = vmatprep.subr.mxu0 %v1562
        %2833 = vmatpush1.msra.mxu0 %v1561
        %2834 = vmatprep.subr.mxu0 %v1558
        %2835 = vmatpush1.msra.mxu0 %v1557
        %2836 = vmatprep.subr.mxu0 %v1554
        %2837 = vmatpush1.msra.mxu0 %v1553
        %2838 = vmatprep.subr.mxu0 %v1550
        %2839 = vmatpush1.msra.mxu0 %v1549
        %2840 = vmatprep.subr.mxu0 %v1546
        %2841 = vmatpush1.msra.mxu0 %v1545
        %2842 = vmatprep.subr.mxu0 %v1542
        %2843 = vmatpush1.msra.mxu0 %v1541
        %2844 = vmatprep.subr.mxu0 %v1538
        %2845 = vmatpush1.msra.mxu0 %v1537
        %2846 = vmatprep.subr.mxu0 %v1662
        %2847 = vmatpush2.msra.mxu0 %v1661
        %2848 = vmatprep.subr.mxu0 %v1658
        %2849 = vmatpush2.msra.mxu0 %v1657
        %2850 = vmatprep.subr.mxu0 %v1654
        %2851 = vmatpush2.msra.mxu0 %v1653
        %2852 = vmatprep.subr.mxu0 %v1650
        %2853 = vmatpush2.msra.mxu0 %v1649
        %2854 = vmatprep.subr.mxu0 %v1646
        %2855 = vmatpush2.msra.mxu0 %v1645
        %2856 = vmatprep.subr.mxu0 %v1642
        %2857 = vmatpush2.msra.mxu0 %v1641
        %2858 = vmatprep.subr.mxu0 %v1638
        %2859 = vmatpush2.msra.mxu0 %v1637
        %2860 = vmatprep.subr.mxu0 %v1634
        %2861 = vmatpush2.msra.mxu0 %v1633
        %2862 = vmatprep.subr.mxu0 %v1630
        %2863 = vmatpush2.msra.mxu0 %v1629
        %2864 = vmatprep.subr.mxu0 %v1626
        %2865 = vmatpush2.msra.mxu0 %v1625
        %2866 = vmatprep.subr.mxu0 %v1622
        %2867 = vmatpush2.msra.mxu0 %v1621
        %2868 = vmatprep.subr.mxu0 %v1618
        %2869 = vmatpush2.msra.mxu0 %v1617
        %2870 = vmatprep.subr.mxu0 %v1614
        %2871 = vmatpush2.msra.mxu0 %v1613
        %2872 = vmatprep.subr.mxu0 %v1610
        %2873 = vmatpush2.msra.mxu0 %v1609
        %2874 = vmatprep.subr.mxu0 %v1606
        %2875 = vmatpush2.msra.mxu0 %v1605
        %2876 = vmatprep.subr.mxu0 %v1602
        %2877 = vmatpush2.msra.mxu0 %v1601
        %2878 = vmatprep.mubr.f32.mxu0 %v400
        %2879 = vmatmul.mubr.f32.gmra.mxu0 %v399
        %v2880 = vpop.f32.mrf.mxu0
        %v2881 = vadd.f32 %v2720, %v2880
        %v2882 = vpop.f32.mrf.mxu0
        %v2883 = vadd.f32 %v2722, %v2882
        %2884 = vmatprep.mubr.f32.mxu0 %v416
        %2885 = vmatmul.mubr.f32.gmra.mxu0 %v415
        %v2886 = vpop.f32.mrf.mxu0
        %v2887 = vadd.f32 %v2726, %v2886
        %v2888 = vpop.f32.mrf.mxu0
        %v2889 = vadd.f32 %v2728, %v2888
        %2890 = vmatprep.mubr.f32.mxu0 %v432
        %2891 = vmatmul.mubr.f32.gmra.mxu0 %v431
        %v2892 = vpop.f32.mrf.mxu0
        %v2893 = vadd.f32 %v2732, %v2892
        %v2894 = vpop.f32.mrf.mxu0
        %v2895 = vadd.f32 %v2734, %v2894
        %2896 = vmatprep.mubr.f32.mxu0 %v448
        %2897 = vmatmul.mubr.f32.gmra.mxu0 %v447
        %v2898 = vpop.f32.mrf.mxu0
        %v2899 = vadd.f32 %v2738, %v2898
        %v2900 = vpop.f32.mrf.mxu0
        %v2901 = vadd.f32 %v2740, %v2900
        %2902 = vmatprep.mubr.f32.mxu0 %v464
        %2903 = vmatmul.mubr.f32.gmra.mxu0 %v463
        %v2904 = vpop.f32.mrf.mxu0
        %v2905 = vadd.f32 %v2744, %v2904
        %v2906 = vpop.f32.mrf.mxu0
        %v2907 = vadd.f32 %v2746, %v2906
        %2908 = vmatprep.mubr.f32.mxu0 %v480
        %2909 = vmatmul.mubr.f32.gmra.mxu0 %v479
        %v2910 = vpop.f32.mrf.mxu0
        %v2911 = vadd.f32 %v2750, %v2910
        %v2912 = vpop.f32.mrf.mxu0
        %v2913 = vadd.f32 %v2752, %v2912
        %2914 = vmatprep.mubr.f32.mxu0 %v496
        %2915 = vmatmul.mubr.f32.gmra.mxu0 %v495
        %v2916 = vpop.f32.mrf.mxu0
        %v2917 = vadd.f32 %v2756, %v2916
        %v2918 = vpop.f32.mrf.mxu0
        %v2919 = vadd.f32 %v2758, %v2918
        %2920 = vmatprep.mubr.f32.mxu0 %v512
        %2921 = vmatmul.mubr.f32.gmra.mxu0 %v511
        %v2922 = vpop.f32.mrf.mxu0
        %v2923 = vadd.f32 %v2762, %v2922
        %v2924 = vpop.f32.mrf.mxu0
        %v2925 = vadd.f32 %v2764, %v2924
        %2926 = vmatprep.mubr.f32.mxu0 %v528
        %2927 = vmatmul.mubr.f32.gmra.mxu0 %v527
        %v2928 = vpop.f32.mrf.mxu0
        %v2929 = vadd.f32 %v2768, %v2928
        %v2930 = vpop.f32.mrf.mxu0
        %v2931 = vadd.f32 %v2770, %v2930
        %2932 = vmatprep.mubr.f32.mxu0 %v544
        %2933 = vmatmul.mubr.f32.gmra.mxu0 %v543
        %v2934 = vpop.f32.mrf.mxu0
        %v2935 = vadd.f32 %v2774, %v2934
        %v2936 = vpop.f32.mrf.mxu0
        %v2937 = vadd.f32 %v2776, %v2936
        %2938 = vmatprep.mubr.f32.mxu0 %v560
        %2939 = vmatmul.mubr.f32.gmra.mxu0 %v559
        %v2940 = vpop.f32.mrf.mxu0
        %v2941 = vadd.f32 %v2780, %v2940
        %v2942 = vpop.f32.mrf.mxu0
        %v2943 = vadd.f32 %v2782, %v2942
        %2944 = vmatprep.mubr.f32.mxu0 %v576
        %2945 = vmatmul.mubr.f32.gmra.mxu0 %v575
        %v2946 = vpop.f32.mrf.mxu0
        %v2947 = vadd.f32 %v2786, %v2946
        %v2948 = vpop.f32.mrf.mxu0
        %v2949 = vadd.f32 %v2788, %v2948
        %2950 = vmatprep.mubr.f32.mxu0 %v592
        %2951 = vmatmul.mubr.f32.gmra.mxu0 %v591
        %v2952 = vpop.f32.mrf.mxu0
        %v2953 = vadd.f32 %v2792, %v2952
        %v2954 = vpop.f32.mrf.mxu0
        %v2955 = vadd.f32 %v2794, %v2954
        %2956 = vmatprep.mubr.f32.mxu0 %v608
        %2957 = vmatmul.mubr.f32.gmra.mxu0 %v607
        %v2958 = vpop.f32.mrf.mxu0
        %v2959 = vadd.f32 %v2798, %v2958
        %v2960 = vpop.f32.mrf.mxu0
        %v2961 = vadd.f32 %v2800, %v2960
        %2962 = vmatprep.mubr.f32.mxu0 %v624
        %2963 = vmatmul.mubr.f32.gmra.mxu0 %v623
        %v2964 = vpop.f32.mrf.mxu0
        %v2965 = vadd.f32 %v2804, %v2964
        %v2966 = vpop.f32.mrf.mxu0
        %v2967 = vadd.f32 %v2806, %v2966
        %2968 = vmatprep.mubr.f32.mxu0 %v640
        %2969 = vmatmul.mubr.f32.gmra.mxu0 %v639
        %v2970 = vpop.f32.mrf.mxu0
        %v2971 = vadd.f32 %v2810, %v2970
        %v2972 = vpop.f32.mrf.mxu0
        %v2973 = vadd.f32 %v2812, %v2972
        %2974 = vdwg.mxu0
        %2975 = vmatprep.subr.mxu0 %v704
        %2976 = vmatpush1.msra.mxu0 %v703
        %2977 = vmatprep.subr.mxu0 %v700
        %2978 = vmatpush1.msra.mxu0 %v699
        %2979 = vmatprep.subr.mxu0 %v696
        %2980 = vmatpush1.msra.mxu0 %v695
        %2981 = vmatprep.subr.mxu0 %v692
        %2982 = vmatpush1.msra.mxu0 %v691
        %2983 = vmatprep.subr.mxu0 %v688
        %2984 = vmatpush1.msra.mxu0 %v687
        %2985 = vmatprep.subr.mxu0 %v684
        %2986 = vmatpush1.msra.mxu0 %v683
        %2987 = vmatprep.subr.mxu0 %v680
        %2988 = vmatpush1.msra.mxu0 %v679
        %2989 = vmatprep.subr.mxu0 %v676
        %2990 = vmatpush1.msra.mxu0 %v675
        %2991 = vmatprep.subr.mxu0 %v672
        %2992 = vmatpush1.msra.mxu0 %v671
        %2993 = vmatprep.subr.mxu0 %v668
        %2994 = vmatpush1.msra.mxu0 %v667
        %2995 = vmatprep.subr.mxu0 %v664
        %2996 = vmatpush1.msra.mxu0 %v663
        %2997 = vmatprep.subr.mxu0 %v660
        %2998 = vmatpush1.msra.mxu0 %v659
        %2999 = vmatprep.subr.mxu0 %v656
        %3000 = vmatpush1.msra.mxu0 %v655
        %3001 = vmatprep.subr.mxu0 %v652
        %3002 = vmatpush1.msra.mxu0 %v651
        %3003 = vmatprep.subr.mxu0 %v648
        %3004 = vmatpush1.msra.mxu0 %v647
        %3005 = vmatprep.subr.mxu0 %v644
        %3006 = vmatpush1.msra.mxu0 %v643
        %3007 = vmatprep.subr.mxu0 %v768
        %3008 = vmatpush2.msra.mxu0 %v767
        %3009 = vmatprep.subr.mxu0 %v764
        %3010 = vmatpush2.msra.mxu0 %v763
        %3011 = vmatprep.subr.mxu0 %v760
        %3012 = vmatpush2.msra.mxu0 %v759
        %3013 = vmatprep.subr.mxu0 %v756
        %3014 = vmatpush2.msra.mxu0 %v755
        %3015 = vmatprep.subr.mxu0 %v752
        %3016 = vmatpush2.msra.mxu0 %v751
        %3017 = vmatprep.subr.mxu0 %v748
        %3018 = vmatpush2.msra.mxu0 %v747
        %3019 = vmatprep.subr.mxu0 %v744
        %3020 = vmatpush2.msra.mxu0 %v743
        %3021 = vmatprep.subr.mxu0 %v740
        %3022 = vmatpush2.msra.mxu0 %v739
        %3023 = vmatprep.subr.mxu0 %v736
        %3024 = vmatpush2.msra.mxu0 %v735
        %3025 = vmatprep.subr.mxu0 %v732
        %3026 = vmatpush2.msra.mxu0 %v731
        %3027 = vmatprep.subr.mxu0 %v728
        %3028 = vmatpush2.msra.mxu0 %v727
        %3029 = vmatprep.subr.mxu0 %v724
        %3030 = vmatpush2.msra.mxu0 %v723
        %3031 = vmatprep.subr.mxu0 %v720
        %3032 = vmatpush2.msra.mxu0 %v719
        %3033 = vmatprep.subr.mxu0 %v716
        %3034 = vmatpush2.msra.mxu0 %v715
        %3035 = vmatprep.subr.mxu0 %v712
        %3036 = vmatpush2.msra.mxu0 %v711
        %3037 = vmatprep.subr.mxu0 %v708
        %3038 = vmatpush2.msra.mxu0 %v707
        %3039 = vmatprep.mubr.f32.mxu0 %v386
        %3040 = vmatmul.mubr.f32.gmra.mxu0 %v385
        %v3041 = vpop.f32.mrf.mxu0
        %v3042 = vadd.f32 %v1678, %v3041
        %v3043 = vpop.f32.mrf.mxu0
        %v3044 = vadd.f32 %v1682, %v3043
        %3045 = vmatprep.mubr.f32.mxu0 %v402
        %3046 = vmatmul.mubr.f32.gmra.mxu0 %v401
        %v3047 = vpop.f32.mrf.mxu0
        %v3048 = vadd.f32 %v1678, %v3047
        %v3049 = vpop.f32.mrf.mxu0
        %v3050 = vadd.f32 %v1682, %v3049
        %3051 = vmatprep.mubr.f32.mxu0 %v418
        %3052 = vmatmul.mubr.f32.gmra.mxu0 %v417
        %v3053 = vpop.f32.mrf.mxu0
        %v3054 = vadd.f32 %v1678, %v3053
        %v3055 = vpop.f32.mrf.mxu0
        %v3056 = vadd.f32 %v1682, %v3055
        %3057 = vmatprep.mubr.f32.mxu0 %v434
        %3058 = vmatmul.mubr.f32.gmra.mxu0 %v433
        %v3059 = vpop.f32.mrf.mxu0
        %v3060 = vadd.f32 %v1678, %v3059
        %v3061 = vpop.f32.mrf.mxu0
        %v3062 = vadd.f32 %v1682, %v3061
        %3063 = vmatprep.mubr.f32.mxu0 %v450
        %3064 = vmatmul.mubr.f32.gmra.mxu0 %v449
        %v3065 = vpop.f32.mrf.mxu0
        %v3066 = vadd.f32 %v1678, %v3065
        %v3067 = vpop.f32.mrf.mxu0
        %v3068 = vadd.f32 %v1682, %v3067
        %3069 = vmatprep.mubr.f32.mxu0 %v466
        %3070 = vmatmul.mubr.f32.gmra.mxu0 %v465
        %v3071 = vpop.f32.mrf.mxu0
        %v3072 = vadd.f32 %v1678, %v3071
        %v3073 = vpop.f32.mrf.mxu0
        %v3074 = vadd.f32 %v1682, %v3073
        %3075 = vmatprep.mubr.f32.mxu0 %v482
        %3076 = vmatmul.mubr.f32.gmra.mxu0 %v481
        %v3077 = vpop.f32.mrf.mxu0
        %v3078 = vadd.f32 %v1678, %v3077
        %v3079 = vpop.f32.mrf.mxu0
        %v3080 = vadd.f32 %v1682, %v3079
        %3081 = vmatprep.mubr.f32.mxu0 %v498
        %3082 = vmatmul.mubr.f32.gmra.mxu0 %v497
        %v3083 = vpop.f32.mrf.mxu0
        %v3084 = vadd.f32 %v1678, %v3083
        %v3085 = vpop.f32.mrf.mxu0
        %v3086 = vadd.f32 %v1682, %v3085
        %3087 = vmatprep.mubr.f32.mxu0 %v514
        %3088 = vmatmul.mubr.f32.gmra.mxu0 %v513
        %v3089 = vpop.f32.mrf.mxu0
        %v3090 = vadd.f32 %v1678, %v3089
        %v3091 = vpop.f32.mrf.mxu0
        %v3092 = vadd.f32 %v1682, %v3091
        %3093 = vmatprep.mubr.f32.mxu0 %v530
        %3094 = vmatmul.mubr.f32.gmra.mxu0 %v529
        %v3095 = vpop.f32.mrf.mxu0
        %v3096 = vadd.f32 %v1678, %v3095
        %v3097 = vpop.f32.mrf.mxu0
        %v3098 = vadd.f32 %v1682, %v3097
        %3099 = vmatprep.mubr.f32.mxu0 %v546
        %3100 = vmatmul.mubr.f32.gmra.mxu0 %v545
        %v3101 = vpop.f32.mrf.mxu0
        %v3102 = vadd.f32 %v1678, %v3101
        %v3103 = vpop.f32.mrf.mxu0
        %v3104 = vadd.f32 %v1682, %v3103
        %3105 = vmatprep.mubr.f32.mxu0 %v562
        %3106 = vmatmul.mubr.f32.gmra.mxu0 %v561
        %v3107 = vpop.f32.mrf.mxu0
        %v3108 = vadd.f32 %v1678, %v3107
        %v3109 = vpop.f32.mrf.mxu0
        %v3110 = vadd.f32 %v1682, %v3109
        %3111 = vmatprep.mubr.f32.mxu0 %v578
        %3112 = vmatmul.mubr.f32.gmra.mxu0 %v577
        %v3113 = vpop.f32.mrf.mxu0
        %v3114 = vadd.f32 %v1678, %v3113
        %v3115 = vpop.f32.mrf.mxu0
        %v3116 = vadd.f32 %v1682, %v3115
        %3117 = vmatprep.mubr.f32.mxu0 %v594
        %3118 = vmatmul.mubr.f32.gmra.mxu0 %v593
        %v3119 = vpop.f32.mrf.mxu0
        %v3120 = vadd.f32 %v1678, %v3119
        %v3121 = vpop.f32.mrf.mxu0
        %v3122 = vadd.f32 %v1682, %v3121
        %3123 = vmatprep.mubr.f32.mxu0 %v610
        %3124 = vmatmul.mubr.f32.gmra.mxu0 %v609
        %v3125 = vpop.f32.mrf.mxu0
        %v3126 = vadd.f32 %v1678, %v3125
        %v3127 = vpop.f32.mrf.mxu0
        %v3128 = vadd.f32 %v1682, %v3127
        %3129 = vmatprep.mubr.f32.mxu0 %v626
        %3130 = vmatmul.mubr.f32.gmra.mxu0 %v625
        %v3131 = vpop.f32.mrf.mxu0
        %v3132 = vadd.f32 %v1678, %v3131
        %v3133 = vpop.f32.mrf.mxu0
        %v3134 = vadd.f32 %v1682, %v3133
        %3135 = vdwg.mxu0
        %3136 = vmatprep.subr.mxu0 %v832
        %3137 = vmatpush1.msra.mxu0 %v831
        %3138 = vmatprep.subr.mxu0 %v828
        %3139 = vmatpush1.msra.mxu0 %v827
        %3140 = vmatprep.subr.mxu0 %v824
        %3141 = vmatpush1.msra.mxu0 %v823
        %3142 = vmatprep.subr.mxu0 %v820
        %3143 = vmatpush1.msra.mxu0 %v819
        %3144 = vmatprep.subr.mxu0 %v816
        %3145 = vmatpush1.msra.mxu0 %v815
        %3146 = vmatprep.subr.mxu0 %v812
        %3147 = vmatpush1.msra.mxu0 %v811
        %3148 = vmatprep.subr.mxu0 %v808
        %3149 = vmatpush1.msra.mxu0 %v807
        %3150 = vmatprep.subr.mxu0 %v804
        %3151 = vmatpush1.msra.mxu0 %v803
        %3152 = vmatprep.subr.mxu0 %v800
        %3153 = vmatpush1.msra.mxu0 %v799
        %3154 = vmatprep.subr.mxu0 %v796
        %3155 = vmatpush1.msra.mxu0 %v795
        %3156 = vmatprep.subr.mxu0 %v792
        %3157 = vmatpush1.msra.mxu0 %v791
        %3158 = vmatprep.subr.mxu0 %v788
        %3159 = vmatpush1.msra.mxu0 %v787
        %3160 = vmatprep.subr.mxu0 %v784
        %3161 = vmatpush1.msra.mxu0 %v783
        %3162 = vmatprep.subr.mxu0 %v780
        %3163 = vmatpush1.msra.mxu0 %v779
        %3164 = vmatprep.subr.mxu0 %v776
        %3165 = vmatpush1.msra.mxu0 %v775
        %3166 = vmatprep.subr.mxu0 %v772
        %3167 = vmatpush1.msra.mxu0 %v771
        %3168 = vmatprep.subr.mxu0 %v896
        %3169 = vmatpush2.msra.mxu0 %v895
        %3170 = vmatprep.subr.mxu0 %v892
        %3171 = vmatpush2.msra.mxu0 %v891
        %3172 = vmatprep.subr.mxu0 %v888
        %3173 = vmatpush2.msra.mxu0 %v887
        %3174 = vmatprep.subr.mxu0 %v884
        %3175 = vmatpush2.msra.mxu0 %v883
        %3176 = vmatprep.subr.mxu0 %v880
        %3177 = vmatpush2.msra.mxu0 %v879
        %3178 = vmatprep.subr.mxu0 %v876
        %3179 = vmatpush2.msra.mxu0 %v875
        %3180 = vmatprep.subr.mxu0 %v872
        %3181 = vmatpush2.msra.mxu0 %v871
        %3182 = vmatprep.subr.mxu0 %v868
        %3183 = vmatpush2.msra.mxu0 %v867
        %3184 = vmatprep.subr.mxu0 %v864
        %3185 = vmatpush2.msra.mxu0 %v863
        %3186 = vmatprep.subr.mxu0 %v860
        %3187 = vmatpush2.msra.mxu0 %v859
        %3188 = vmatprep.subr.mxu0 %v856
        %3189 = vmatpush2.msra.mxu0 %v855
        %3190 = vmatprep.subr.mxu0 %v852
        %3191 = vmatpush2.msra.mxu0 %v851
        %3192 = vmatprep.subr.mxu0 %v848
        %3193 = vmatpush2.msra.mxu0 %v847
        %3194 = vmatprep.subr.mxu0 %v844
        %3195 = vmatpush2.msra.mxu0 %v843
        %3196 = vmatprep.subr.mxu0 %v840
        %3197 = vmatpush2.msra.mxu0 %v839
        %3198 = vmatprep.subr.mxu0 %v836
        %3199 = vmatpush2.msra.mxu0 %v835
        %3200 = vmatprep.mubr.f32.mxu0 %v388
        %3201 = vmatmul.mubr.f32.gmra.mxu0 %v387
        %v3202 = vpop.f32.mrf.mxu0
        %v3203 = vadd.f32 %v3042, %v3202
        %v3204 = vpop.f32.mrf.mxu0
        %v3205 = vadd.f32 %v3044, %v3204
        %3206 = vmatprep.mubr.f32.mxu0 %v404
        %3207 = vmatmul.mubr.f32.gmra.mxu0 %v403
        %v3208 = vpop.f32.mrf.mxu0
        %v3209 = vadd.f32 %v3048, %v3208
        %v3210 = vpop.f32.mrf.mxu0
        %v3211 = vadd.f32 %v3050, %v3210
        %3212 = vmatprep.mubr.f32.mxu0 %v420
        %3213 = vmatmul.mubr.f32.gmra.mxu0 %v419
        %v3214 = vpop.f32.mrf.mxu0
        %v3215 = vadd.f32 %v3054, %v3214
        %v3216 = vpop.f32.mrf.mxu0
        %v3217 = vadd.f32 %v3056, %v3216
        %3218 = vmatprep.mubr.f32.mxu0 %v436
        %3219 = vmatmul.mubr.f32.gmra.mxu0 %v435
        %v3220 = vpop.f32.mrf.mxu0
        %v3221 = vadd.f32 %v3060, %v3220
        %v3222 = vpop.f32.mrf.mxu0
        %v3223 = vadd.f32 %v3062, %v3222
        %3224 = vmatprep.mubr.f32.mxu0 %v452
        %3225 = vmatmul.mubr.f32.gmra.mxu0 %v451
        %v3226 = vpop.f32.mrf.mxu0
        %v3227 = vadd.f32 %v3066, %v3226
        %v3228 = vpop.f32.mrf.mxu0
        %v3229 = vadd.f32 %v3068, %v3228
        %3230 = vmatprep.mubr.f32.mxu0 %v468
        %3231 = vmatmul.mubr.f32.gmra.mxu0 %v467
        %v3232 = vpop.f32.mrf.mxu0
        %v3233 = vadd.f32 %v3072, %v3232
        %v3234 = vpop.f32.mrf.mxu0
        %v3235 = vadd.f32 %v3074, %v3234
        %3236 = vmatprep.mubr.f32.mxu0 %v484
        %3237 = vmatmul.mubr.f32.gmra.mxu0 %v483
        %v3238 = vpop.f32.mrf.mxu0
        %v3239 = vadd.f32 %v3078, %v3238
        %v3240 = vpop.f32.mrf.mxu0
        %v3241 = vadd.f32 %v3080, %v3240
        %3242 = vmatprep.mubr.f32.mxu0 %v500
        %3243 = vmatmul.mubr.f32.gmra.mxu0 %v499
        %v3244 = vpop.f32.mrf.mxu0
        %v3245 = vadd.f32 %v3084, %v3244
        %v3246 = vpop.f32.mrf.mxu0
        %v3247 = vadd.f32 %v3086, %v3246
        %3248 = vmatprep.mubr.f32.mxu0 %v516
        %3249 = vmatmul.mubr.f32.gmra.mxu0 %v515
        %v3250 = vpop.f32.mrf.mxu0
        %v3251 = vadd.f32 %v3090, %v3250
        %v3252 = vpop.f32.mrf.mxu0
        %v3253 = vadd.f32 %v3092, %v3252
        %3254 = vmatprep.mubr.f32.mxu0 %v532
        %3255 = vmatmul.mubr.f32.gmra.mxu0 %v531
        %v3256 = vpop.f32.mrf.mxu0
        %v3257 = vadd.f32 %v3096, %v3256
        %v3258 = vpop.f32.mrf.mxu0
        %v3259 = vadd.f32 %v3098, %v3258
        %3260 = vmatprep.mubr.f32.mxu0 %v548
        %3261 = vmatmul.mubr.f32.gmra.mxu0 %v547
        %v3262 = vpop.f32.mrf.mxu0
        %v3263 = vadd.f32 %v3102, %v3262
        %v3264 = vpop.f32.mrf.mxu0
        %v3265 = vadd.f32 %v3104, %v3264
        %3266 = vmatprep.mubr.f32.mxu0 %v564
        %3267 = vmatmul.mubr.f32.gmra.mxu0 %v563
        %v3268 = vpop.f32.mrf.mxu0
        %v3269 = vadd.f32 %v3108, %v3268
        %v3270 = vpop.f32.mrf.mxu0
        %v3271 = vadd.f32 %v3110, %v3270
        %3272 = vmatprep.mubr.f32.mxu0 %v580
        %3273 = vmatmul.mubr.f32.gmra.mxu0 %v579
        %v3274 = vpop.f32.mrf.mxu0
        %v3275 = vadd.f32 %v3114, %v3274
        %v3276 = vpop.f32.mrf.mxu0
        %v3277 = vadd.f32 %v3116, %v3276
        %3278 = vmatprep.mubr.f32.mxu0 %v596
        %3279 = vmatmul.mubr.f32.gmra.mxu0 %v595
        %v3280 = vpop.f32.mrf.mxu0
        %v3281 = vadd.f32 %v3120, %v3280
        %v3282 = vpop.f32.mrf.mxu0
        %v3283 = vadd.f32 %v3122, %v3282
        %3284 = vmatprep.mubr.f32.mxu0 %v612
        %3285 = vmatmul.mubr.f32.gmra.mxu0 %v611
        %v3286 = vpop.f32.mrf.mxu0
        %v3287 = vadd.f32 %v3126, %v3286
        %v3288 = vpop.f32.mrf.mxu0
        %v3289 = vadd.f32 %v3128, %v3288
        %3290 = vmatprep.mubr.f32.mxu0 %v628
        %3291 = vmatmul.mubr.f32.gmra.mxu0 %v627
        %v3292 = vpop.f32.mrf.mxu0
        %v3293 = vadd.f32 %v3132, %v3292
        %v3294 = vpop.f32.mrf.mxu0
        %v3295 = vadd.f32 %v3134, %v3294
        %3296 = vdwg.mxu0
        %3297 = vmatprep.subr.mxu0 %v960
        %3298 = vmatpush1.msra.mxu0 %v959
        %3299 = vmatprep.subr.mxu0 %v956
        %3300 = vmatpush1.msra.mxu0 %v955
        %3301 = vmatprep.subr.mxu0 %v952
        %3302 = vmatpush1.msra.mxu0 %v951
        %3303 = vmatprep.subr.mxu0 %v948
        %3304 = vmatpush1.msra.mxu0 %v947
        %3305 = vmatprep.subr.mxu0 %v944
        %3306 = vmatpush1.msra.mxu0 %v943
        %3307 = vmatprep.subr.mxu0 %v940
        %3308 = vmatpush1.msra.mxu0 %v939
        %3309 = vmatprep.subr.mxu0 %v936
        %3310 = vmatpush1.msra.mxu0 %v935
        %3311 = vmatprep.subr.mxu0 %v932
        %3312 = vmatpush1.msra.mxu0 %v931
        %3313 = vmatprep.subr.mxu0 %v928
        %3314 = vmatpush1.msra.mxu0 %v927
        %3315 = vmatprep.subr.mxu0 %v924
        %3316 = vmatpush1.msra.mxu0 %v923
        %3317 = vmatprep.subr.mxu0 %v920
        %3318 = vmatpush1.msra.mxu0 %v919
        %3319 = vmatprep.subr.mxu0 %v916
        %3320 = vmatpush1.msra.mxu0 %v915
        %3321 = vmatprep.subr.mxu0 %v912
        %3322 = vmatpush1.msra.mxu0 %v911
        %3323 = vmatprep.subr.mxu0 %v908
        %3324 = vmatpush1.msra.mxu0 %v907
        %3325 = vmatprep.subr.mxu0 %v904
        %3326 = vmatpush1.msra.mxu0 %v903
        %3327 = vmatprep.subr.mxu0 %v900
        %3328 = vmatpush1.msra.mxu0 %v899
        %3329 = vmatprep.subr.mxu0 %v1024
        %3330 = vmatpush2.msra.mxu0 %v1023
        %3331 = vmatprep.subr.mxu0 %v1020
        %3332 = vmatpush2.msra.mxu0 %v1019
        %3333 = vmatprep.subr.mxu0 %v1016
        %3334 = vmatpush2.msra.mxu0 %v1015
        %3335 = vmatprep.subr.mxu0 %v1012
        %3336 = vmatpush2.msra.mxu0 %v1011
        %3337 = vmatprep.subr.mxu0 %v1008
        %3338 = vmatpush2.msra.mxu0 %v1007
        %3339 = vmatprep.subr.mxu0 %v1004
        %3340 = vmatpush2.msra.mxu0 %v1003
        %3341 = vmatprep.subr.mxu0 %v1000
        %3342 = vmatpush2.msra.mxu0 %v999
        %3343 = vmatprep.subr.mxu0 %v996
        %3344 = vmatpush2.msra.mxu0 %v995
        %3345 = vmatprep.subr.mxu0 %v992
        %3346 = vmatpush2.msra.mxu0 %v991
        %3347 = vmatprep.subr.mxu0 %v988
        %3348 = vmatpush2.msra.mxu0 %v987
        %3349 = vmatprep.subr.mxu0 %v984
        %3350 = vmatpush2.msra.mxu0 %v983
        %3351 = vmatprep.subr.mxu0 %v980
        %3352 = vmatpush2.msra.mxu0 %v979
        %3353 = vmatprep.subr.mxu0 %v976
        %3354 = vmatpush2.msra.mxu0 %v975
        %3355 = vmatprep.subr.mxu0 %v972
        %3356 = vmatpush2.msra.mxu0 %v971
        %3357 = vmatprep.subr.mxu0 %v968
        %3358 = vmatpush2.msra.mxu0 %v967
        %3359 = vmatprep.subr.mxu0 %v964
        %3360 = vmatpush2.msra.mxu0 %v963
        %3361 = vmatprep.mubr.f32.mxu0 %v390
        %3362 = vmatmul.mubr.f32.gmra.mxu0 %v389
        %v3363 = vpop.f32.mrf.mxu0
        %v3364 = vadd.f32 %v3203, %v3363
        %v3365 = vpop.f32.mrf.mxu0
        %v3366 = vadd.f32 %v3205, %v3365
        %3367 = vmatprep.mubr.f32.mxu0 %v406
        %3368 = vmatmul.mubr.f32.gmra.mxu0 %v405
        %v3369 = vpop.f32.mrf.mxu0
        %v3370 = vadd.f32 %v3209, %v3369
        %v3371 = vpop.f32.mrf.mxu0
        %v3372 = vadd.f32 %v3211, %v3371
        %3373 = vmatprep.mubr.f32.mxu0 %v422
        %3374 = vmatmul.mubr.f32.gmra.mxu0 %v421
        %v3375 = vpop.f32.mrf.mxu0
        %v3376 = vadd.f32 %v3215, %v3375
        %v3377 = vpop.f32.mrf.mxu0
        %v3378 = vadd.f32 %v3217, %v3377
        %3379 = vmatprep.mubr.f32.mxu0 %v438
        %3380 = vmatmul.mubr.f32.gmra.mxu0 %v437
        %v3381 = vpop.f32.mrf.mxu0
        %v3382 = vadd.f32 %v3221, %v3381
        %v3383 = vpop.f32.mrf.mxu0
        %v3384 = vadd.f32 %v3223, %v3383
        %3385 = vmatprep.mubr.f32.mxu0 %v454
        %3386 = vmatmul.mubr.f32.gmra.mxu0 %v453
        %v3387 = vpop.f32.mrf.mxu0
        %v3388 = vadd.f32 %v3227, %v3387
        %v3389 = vpop.f32.mrf.mxu0
        %v3390 = vadd.f32 %v3229, %v3389
        %3391 = vmatprep.mubr.f32.mxu0 %v470
        %3392 = vmatmul.mubr.f32.gmra.mxu0 %v469
        %v3393 = vpop.f32.mrf.mxu0
        %v3394 = vadd.f32 %v3233, %v3393
        %v3395 = vpop.f32.mrf.mxu0
        %v3396 = vadd.f32 %v3235, %v3395
        %3397 = vmatprep.mubr.f32.mxu0 %v486
        %3398 = vmatmul.mubr.f32.gmra.mxu0 %v485
        %v3399 = vpop.f32.mrf.mxu0
        %v3400 = vadd.f32 %v3239, %v3399
        %v3401 = vpop.f32.mrf.mxu0
        %v3402 = vadd.f32 %v3241, %v3401
        %3403 = vmatprep.mubr.f32.mxu0 %v502
        %3404 = vmatmul.mubr.f32.gmra.mxu0 %v501
        %v3405 = vpop.f32.mrf.mxu0
        %v3406 = vadd.f32 %v3245, %v3405
        %v3407 = vpop.f32.mrf.mxu0
        %v3408 = vadd.f32 %v3247, %v3407
        %3409 = vmatprep.mubr.f32.mxu0 %v518
        %3410 = vmatmul.mubr.f32.gmra.mxu0 %v517
        %v3411 = vpop.f32.mrf.mxu0
        %v3412 = vadd.f32 %v3251, %v3411
        %v3413 = vpop.f32.mrf.mxu0
        %v3414 = vadd.f32 %v3253, %v3413
        %3415 = vmatprep.mubr.f32.mxu0 %v534
        %3416 = vmatmul.mubr.f32.gmra.mxu0 %v533
        %v3417 = vpop.f32.mrf.mxu0
        %v3418 = vadd.f32 %v3257, %v3417
        %v3419 = vpop.f32.mrf.mxu0
        %v3420 = vadd.f32 %v3259, %v3419
        %3421 = vmatprep.mubr.f32.mxu0 %v550
        %3422 = vmatmul.mubr.f32.gmra.mxu0 %v549
        %v3423 = vpop.f32.mrf.mxu0
        %v3424 = vadd.f32 %v3263, %v3423
        %v3425 = vpop.f32.mrf.mxu0
        %v3426 = vadd.f32 %v3265, %v3425
        %3427 = vmatprep.mubr.f32.mxu0 %v566
        %3428 = vmatmul.mubr.f32.gmra.mxu0 %v565
        %v3429 = vpop.f32.mrf.mxu0
        %v3430 = vadd.f32 %v3269, %v3429
        %v3431 = vpop.f32.mrf.mxu0
        %v3432 = vadd.f32 %v3271, %v3431
        %3433 = vmatprep.mubr.f32.mxu0 %v582
        %3434 = vmatmul.mubr.f32.gmra.mxu0 %v581
        %v3435 = vpop.f32.mrf.mxu0
        %v3436 = vadd.f32 %v3275, %v3435
        %v3437 = vpop.f32.mrf.mxu0
        %v3438 = vadd.f32 %v3277, %v3437
        %3439 = vmatprep.mubr.f32.mxu0 %v598
        %3440 = vmatmul.mubr.f32.gmra.mxu0 %v597
        %v3441 = vpop.f32.mrf.mxu0
        %v3442 = vadd.f32 %v3281, %v3441
        %v3443 = vpop.f32.mrf.mxu0
        %v3444 = vadd.f32 %v3283, %v3443
        %3445 = vmatprep.mubr.f32.mxu0 %v614
        %3446 = vmatmul.mubr.f32.gmra.mxu0 %v613
        %v3447 = vpop.f32.mrf.mxu0
        %v3448 = vadd.f32 %v3287, %v3447
        %v3449 = vpop.f32.mrf.mxu0
        %v3450 = vadd.f32 %v3289, %v3449
        %3451 = vmatprep.mubr.f32.mxu0 %v630
        %3452 = vmatmul.mubr.f32.gmra.mxu0 %v629
        %v3453 = vpop.f32.mrf.mxu0
        %v3454 = vadd.f32 %v3293, %v3453
        %v3455 = vpop.f32.mrf.mxu0
        %v3456 = vadd.f32 %v3295, %v3455
        %3457 = vdwg.mxu0
        %3458 = vmatprep.subr.mxu0 %v1088
        %3459 = vmatpush1.msra.mxu0 %v1087
        %3460 = vmatprep.subr.mxu0 %v1084
        %3461 = vmatpush1.msra.mxu0 %v1083
        %3462 = vmatprep.subr.mxu0 %v1080
        %3463 = vmatpush1.msra.mxu0 %v1079
        %3464 = vmatprep.subr.mxu0 %v1076
        %3465 = vmatpush1.msra.mxu0 %v1075
        %3466 = vmatprep.subr.mxu0 %v1072
        %3467 = vmatpush1.msra.mxu0 %v1071
        %3468 = vmatprep.subr.mxu0 %v1068
        %3469 = vmatpush1.msra.mxu0 %v1067
        %3470 = vmatprep.subr.mxu0 %v1064
        %3471 = vmatpush1.msra.mxu0 %v1063
        %3472 = vmatprep.subr.mxu0 %v1060
        %3473 = vmatpush1.msra.mxu0 %v1059
        %3474 = vmatprep.subr.mxu0 %v1056
        %3475 = vmatpush1.msra.mxu0 %v1055
        %3476 = vmatprep.subr.mxu0 %v1052
        %3477 = vmatpush1.msra.mxu0 %v1051
        %3478 = vmatprep.subr.mxu0 %v1048
        %3479 = vmatpush1.msra.mxu0 %v1047
        %3480 = vmatprep.subr.mxu0 %v1044
        %3481 = vmatpush1.msra.mxu0 %v1043
        %3482 = vmatprep.subr.mxu0 %v1040
        %3483 = vmatpush1.msra.mxu0 %v1039
        %3484 = vmatprep.subr.mxu0 %v1036
        %3485 = vmatpush1.msra.mxu0 %v1035
        %3486 = vmatprep.subr.mxu0 %v1032
        %3487 = vmatpush1.msra.mxu0 %v1031
        %3488 = vmatprep.subr.mxu0 %v1028
        %3489 = vmatpush1.msra.mxu0 %v1027
        %3490 = vmatprep.subr.mxu0 %v1152
        %3491 = vmatpush2.msra.mxu0 %v1151
        %3492 = vmatprep.subr.mxu0 %v1148
        %3493 = vmatpush2.msra.mxu0 %v1147
        %3494 = vmatprep.subr.mxu0 %v1144
        %3495 = vmatpush2.msra.mxu0 %v1143
        %3496 = vmatprep.subr.mxu0 %v1140
        %3497 = vmatpush2.msra.mxu0 %v1139
        %3498 = vmatprep.subr.mxu0 %v1136
        %3499 = vmatpush2.msra.mxu0 %v1135
        %3500 = vmatprep.subr.mxu0 %v1132
        %3501 = vmatpush2.msra.mxu0 %v1131
        %3502 = vmatprep.subr.mxu0 %v1128
        %3503 = vmatpush2.msra.mxu0 %v1127
        %3504 = vmatprep.subr.mxu0 %v1124
        %3505 = vmatpush2.msra.mxu0 %v1123
        %3506 = vmatprep.subr.mxu0 %v1120
        %3507 = vmatpush2.msra.mxu0 %v1119
        %3508 = vmatprep.subr.mxu0 %v1116
        %3509 = vmatpush2.msra.mxu0 %v1115
        %3510 = vmatprep.subr.mxu0 %v1112
        %3511 = vmatpush2.msra.mxu0 %v1111
        %3512 = vmatprep.subr.mxu0 %v1108
        %3513 = vmatpush2.msra.mxu0 %v1107
        %3514 = vmatprep.subr.mxu0 %v1104
        %3515 = vmatpush2.msra.mxu0 %v1103
        %3516 = vmatprep.subr.mxu0 %v1100
        %3517 = vmatpush2.msra.mxu0 %v1099
        %3518 = vmatprep.subr.mxu0 %v1096
        %3519 = vmatpush2.msra.mxu0 %v1095
        %3520 = vmatprep.subr.mxu0 %v1092
        %3521 = vmatpush2.msra.mxu0 %v1091
        %3522 = vmatprep.mubr.f32.mxu0 %v392
        %3523 = vmatmul.mubr.f32.gmra.mxu0 %v391
        %v3524 = vpop.f32.mrf.mxu0
        %v3525 = vadd.f32 %v3364, %v3524
        %v3526 = vpop.f32.mrf.mxu0
        %v3527 = vadd.f32 %v3366, %v3526
        %3528 = vmatprep.mubr.f32.mxu0 %v408
        %3529 = vmatmul.mubr.f32.gmra.mxu0 %v407
        %v3530 = vpop.f32.mrf.mxu0
        %v3531 = vadd.f32 %v3370, %v3530
        %v3532 = vpop.f32.mrf.mxu0
        %v3533 = vadd.f32 %v3372, %v3532
        %3534 = vmatprep.mubr.f32.mxu0 %v424
        %3535 = vmatmul.mubr.f32.gmra.mxu0 %v423
        %v3536 = vpop.f32.mrf.mxu0
        %v3537 = vadd.f32 %v3376, %v3536
        %v3538 = vpop.f32.mrf.mxu0
        %v3539 = vadd.f32 %v3378, %v3538
        %3540 = vmatprep.mubr.f32.mxu0 %v440
        %3541 = vmatmul.mubr.f32.gmra.mxu0 %v439
        %v3542 = vpop.f32.mrf.mxu0
        %v3543 = vadd.f32 %v3382, %v3542
        %v3544 = vpop.f32.mrf.mxu0
        %v3545 = vadd.f32 %v3384, %v3544
        %3546 = vmatprep.mubr.f32.mxu0 %v456
        %3547 = vmatmul.mubr.f32.gmra.mxu0 %v455
        %v3548 = vpop.f32.mrf.mxu0
        %v3549 = vadd.f32 %v3388, %v3548
        %v3550 = vpop.f32.mrf.mxu0
        %v3551 = vadd.f32 %v3390, %v3550
        %3552 = vmatprep.mubr.f32.mxu0 %v472
        %3553 = vmatmul.mubr.f32.gmra.mxu0 %v471
        %v3554 = vpop.f32.mrf.mxu0
        %v3555 = vadd.f32 %v3394, %v3554
        %v3556 = vpop.f32.mrf.mxu0
        %v3557 = vadd.f32 %v3396, %v3556
        %3558 = vmatprep.mubr.f32.mxu0 %v488
        %3559 = vmatmul.mubr.f32.gmra.mxu0 %v487
        %v3560 = vpop.f32.mrf.mxu0
        %v3561 = vadd.f32 %v3400, %v3560
        %v3562 = vpop.f32.mrf.mxu0
        %v3563 = vadd.f32 %v3402, %v3562
        %3564 = vmatprep.mubr.f32.mxu0 %v504
        %3565 = vmatmul.mubr.f32.gmra.mxu0 %v503
        %v3566 = vpop.f32.mrf.mxu0
        %v3567 = vadd.f32 %v3406, %v3566
        %v3568 = vpop.f32.mrf.mxu0
        %v3569 = vadd.f32 %v3408, %v3568
        %3570 = vmatprep.mubr.f32.mxu0 %v520
        %3571 = vmatmul.mubr.f32.gmra.mxu0 %v519
        %v3572 = vpop.f32.mrf.mxu0
        %v3573 = vadd.f32 %v3412, %v3572
        %v3574 = vpop.f32.mrf.mxu0
        %v3575 = vadd.f32 %v3414, %v3574
        %3576 = vmatprep.mubr.f32.mxu0 %v536
        %3577 = vmatmul.mubr.f32.gmra.mxu0 %v535
        %v3578 = vpop.f32.mrf.mxu0
        %v3579 = vadd.f32 %v3418, %v3578
        %v3580 = vpop.f32.mrf.mxu0
        %v3581 = vadd.f32 %v3420, %v3580
        %3582 = vmatprep.mubr.f32.mxu0 %v552
        %3583 = vmatmul.mubr.f32.gmra.mxu0 %v551
        %v3584 = vpop.f32.mrf.mxu0
        %v3585 = vadd.f32 %v3424, %v3584
        %v3586 = vpop.f32.mrf.mxu0
        %v3587 = vadd.f32 %v3426, %v3586
        %3588 = vmatprep.mubr.f32.mxu0 %v568
        %3589 = vmatmul.mubr.f32.gmra.mxu0 %v567
        %v3590 = vpop.f32.mrf.mxu0
        %v3591 = vadd.f32 %v3430, %v3590
        %v3592 = vpop.f32.mrf.mxu0
        %v3593 = vadd.f32 %v3432, %v3592
        %3594 = vmatprep.mubr.f32.mxu0 %v584
        %3595 = vmatmul.mubr.f32.gmra.mxu0 %v583
        %v3596 = vpop.f32.mrf.mxu0
        %v3597 = vadd.f32 %v3436, %v3596
        %v3598 = vpop.f32.mrf.mxu0
        %v3599 = vadd.f32 %v3438, %v3598
        %3600 = vmatprep.mubr.f32.mxu0 %v600
        %3601 = vmatmul.mubr.f32.gmra.mxu0 %v599
        %v3602 = vpop.f32.mrf.mxu0
        %v3603 = vadd.f32 %v3442, %v3602
        %v3604 = vpop.f32.mrf.mxu0
        %v3605 = vadd.f32 %v3444, %v3604
        %3606 = vmatprep.mubr.f32.mxu0 %v616
        %3607 = vmatmul.mubr.f32.gmra.mxu0 %v615
        %v3608 = vpop.f32.mrf.mxu0
        %v3609 = vadd.f32 %v3448, %v3608
        %v3610 = vpop.f32.mrf.mxu0
        %v3611 = vadd.f32 %v3450, %v3610
        %3612 = vmatprep.mubr.f32.mxu0 %v632
        %3613 = vmatmul.mubr.f32.gmra.mxu0 %v631
        %v3614 = vpop.f32.mrf.mxu0
        %v3615 = vadd.f32 %v3454, %v3614
        %v3616 = vpop.f32.mrf.mxu0
        %v3617 = vadd.f32 %v3456, %v3616
        %3618 = vdwg.mxu0
        %3619 = vmatprep.subr.mxu0 %v1216
        %3620 = vmatpush1.msra.mxu0 %v1215
        %3621 = vmatprep.subr.mxu0 %v1212
        %3622 = vmatpush1.msra.mxu0 %v1211
        %3623 = vmatprep.subr.mxu0 %v1208
        %3624 = vmatpush1.msra.mxu0 %v1207
        %3625 = vmatprep.subr.mxu0 %v1204
        %3626 = vmatpush1.msra.mxu0 %v1203
        %3627 = vmatprep.subr.mxu0 %v1200
        %3628 = vmatpush1.msra.mxu0 %v1199
        %3629 = vmatprep.subr.mxu0 %v1196
        %3630 = vmatpush1.msra.mxu0 %v1195
        %3631 = vmatprep.subr.mxu0 %v1192
        %3632 = vmatpush1.msra.mxu0 %v1191
        %3633 = vmatprep.subr.mxu0 %v1188
        %3634 = vmatpush1.msra.mxu0 %v1187
        %3635 = vmatprep.subr.mxu0 %v1184
        %3636 = vmatpush1.msra.mxu0 %v1183
        %3637 = vmatprep.subr.mxu0 %v1180
        %3638 = vmatpush1.msra.mxu0 %v1179
        %3639 = vmatprep.subr.mxu0 %v1176
        %3640 = vmatpush1.msra.mxu0 %v1175
        %3641 = vmatprep.subr.mxu0 %v1172
        %3642 = vmatpush1.msra.mxu0 %v1171
        %3643 = vmatprep.subr.mxu0 %v1168
        %3644 = vmatpush1.msra.mxu0 %v1167
        %3645 = vmatprep.subr.mxu0 %v1164
        %3646 = vmatpush1.msra.mxu0 %v1163
        %3647 = vmatprep.subr.mxu0 %v1160
        %3648 = vmatpush1.msra.mxu0 %v1159
        %3649 = vmatprep.subr.mxu0 %v1156
        %3650 = vmatpush1.msra.mxu0 %v1155
        %3651 = vmatprep.subr.mxu0 %v1280
        %3652 = vmatpush2.msra.mxu0 %v1279
        %3653 = vmatprep.subr.mxu0 %v1276
        %3654 = vmatpush2.msra.mxu0 %v1275
        %3655 = vmatprep.subr.mxu0 %v1272
        %3656 = vmatpush2.msra.mxu0 %v1271
        %3657 = vmatprep.subr.mxu0 %v1268
        %3658 = vmatpush2.msra.mxu0 %v1267
        %3659 = vmatprep.subr.mxu0 %v1264
        %3660 = vmatpush2.msra.mxu0 %v1263
        %3661 = vmatprep.subr.mxu0 %v1260
        %3662 = vmatpush2.msra.mxu0 %v1259
        %3663 = vmatprep.subr.mxu0 %v1256
        %3664 = vmatpush2.msra.mxu0 %v1255
        %3665 = vmatprep.subr.mxu0 %v1252
        %3666 = vmatpush2.msra.mxu0 %v1251
        %3667 = vmatprep.subr.mxu0 %v1248
        %3668 = vmatpush2.msra.mxu0 %v1247
        %3669 = vmatprep.subr.mxu0 %v1244
        %3670 = vmatpush2.msra.mxu0 %v1243
        %3671 = vmatprep.subr.mxu0 %v1240
        %3672 = vmatpush2.msra.mxu0 %v1239
        %3673 = vmatprep.subr.mxu0 %v1236
        %3674 = vmatpush2.msra.mxu0 %v1235
        %3675 = vmatprep.subr.mxu0 %v1232
        %3676 = vmatpush2.msra.mxu0 %v1231
        %3677 = vmatprep.subr.mxu0 %v1228
        %3678 = vmatpush2.msra.mxu0 %v1227
        %3679 = vmatprep.subr.mxu0 %v1224
        %3680 = vmatpush2.msra.mxu0 %v1223
        %3681 = vmatprep.subr.mxu0 %v1220
        %3682 = vmatpush2.msra.mxu0 %v1219
        %3683 = vmatprep.mubr.f32.mxu0 %v394
        %3684 = vmatmul.mubr.f32.gmra.mxu0 %v393
        %v3685 = vpop.f32.mrf.mxu0
        %v3686 = vadd.f32 %v3525, %v3685
        %v3687 = vpop.f32.mrf.mxu0
        %v3688 = vadd.f32 %v3527, %v3687
        %3689 = vmatprep.mubr.f32.mxu0 %v410
        %3690 = vmatmul.mubr.f32.gmra.mxu0 %v409
        %v3691 = vpop.f32.mrf.mxu0
        %v3692 = vadd.f32 %v3531, %v3691
        %v3693 = vpop.f32.mrf.mxu0
        %v3694 = vadd.f32 %v3533, %v3693
        %3695 = vmatprep.mubr.f32.mxu0 %v426
        %3696 = vmatmul.mubr.f32.gmra.mxu0 %v425
        %v3697 = vpop.f32.mrf.mxu0
        %v3698 = vadd.f32 %v3537, %v3697
        %v3699 = vpop.f32.mrf.mxu0
        %v3700 = vadd.f32 %v3539, %v3699
        %3701 = vmatprep.mubr.f32.mxu0 %v442
        %3702 = vmatmul.mubr.f32.gmra.mxu0 %v441
        %v3703 = vpop.f32.mrf.mxu0
        %v3704 = vadd.f32 %v3543, %v3703
        %v3705 = vpop.f32.mrf.mxu0
        %v3706 = vadd.f32 %v3545, %v3705
        %3707 = vmatprep.mubr.f32.mxu0 %v458
        %3708 = vmatmul.mubr.f32.gmra.mxu0 %v457
        %v3709 = vpop.f32.mrf.mxu0
        %v3710 = vadd.f32 %v3549, %v3709
        %v3711 = vpop.f32.mrf.mxu0
        %v3712 = vadd.f32 %v3551, %v3711
        %3713 = vmatprep.mubr.f32.mxu0 %v474
        %3714 = vmatmul.mubr.f32.gmra.mxu0 %v473
        %v3715 = vpop.f32.mrf.mxu0
        %v3716 = vadd.f32 %v3555, %v3715
        %v3717 = vpop.f32.mrf.mxu0
        %v3718 = vadd.f32 %v3557, %v3717
        %3719 = vmatprep.mubr.f32.mxu0 %v490
        %3720 = vmatmul.mubr.f32.gmra.mxu0 %v489
        %v3721 = vpop.f32.mrf.mxu0
        %v3722 = vadd.f32 %v3561, %v3721
        %v3723 = vpop.f32.mrf.mxu0
        %v3724 = vadd.f32 %v3563, %v3723
        %3725 = vmatprep.mubr.f32.mxu0 %v506
        %3726 = vmatmul.mubr.f32.gmra.mxu0 %v505
        %v3727 = vpop.f32.mrf.mxu0
        %v3728 = vadd.f32 %v3567, %v3727
        %v3729 = vpop.f32.mrf.mxu0
        %v3730 = vadd.f32 %v3569, %v3729
        %3731 = vmatprep.mubr.f32.mxu0 %v522
        %3732 = vmatmul.mubr.f32.gmra.mxu0 %v521
        %v3733 = vpop.f32.mrf.mxu0
        %v3734 = vadd.f32 %v3573, %v3733
        %v3735 = vpop.f32.mrf.mxu0
        %v3736 = vadd.f32 %v3575, %v3735
        %3737 = vmatprep.mubr.f32.mxu0 %v538
        %3738 = vmatmul.mubr.f32.gmra.mxu0 %v537
        %v3739 = vpop.f32.mrf.mxu0
        %v3740 = vadd.f32 %v3579, %v3739
        %v3741 = vpop.f32.mrf.mxu0
        %v3742 = vadd.f32 %v3581, %v3741
        %3743 = vmatprep.mubr.f32.mxu0 %v554
        %3744 = vmatmul.mubr.f32.gmra.mxu0 %v553
        %v3745 = vpop.f32.mrf.mxu0
        %v3746 = vadd.f32 %v3585, %v3745
        %v3747 = vpop.f32.mrf.mxu0
        %v3748 = vadd.f32 %v3587, %v3747
        %3749 = vmatprep.mubr.f32.mxu0 %v570
        %3750 = vmatmul.mubr.f32.gmra.mxu0 %v569
        %v3751 = vpop.f32.mrf.mxu0
        %v3752 = vadd.f32 %v3591, %v3751
        %v3753 = vpop.f32.mrf.mxu0
        %v3754 = vadd.f32 %v3593, %v3753
        %3755 = vmatprep.mubr.f32.mxu0 %v586
        %3756 = vmatmul.mubr.f32.gmra.mxu0 %v585
        %v3757 = vpop.f32.mrf.mxu0
        %v3758 = vadd.f32 %v3597, %v3757
        %v3759 = vpop.f32.mrf.mxu0
        %v3760 = vadd.f32 %v3599, %v3759
        %3761 = vmatprep.mubr.f32.mxu0 %v602
        %3762 = vmatmul.mubr.f32.gmra.mxu0 %v601
        %v3763 = vpop.f32.mrf.mxu0
        %v3764 = vadd.f32 %v3603, %v3763
        %v3765 = vpop.f32.mrf.mxu0
        %v3766 = vadd.f32 %v3605, %v3765
        %3767 = vmatprep.mubr.f32.mxu0 %v618
        %3768 = vmatmul.mubr.f32.gmra.mxu0 %v617
        %v3769 = vpop.f32.mrf.mxu0
        %v3770 = vadd.f32 %v3609, %v3769
        %v3771 = vpop.f32.mrf.mxu0
        %v3772 = vadd.f32 %v3611, %v3771
        %3773 = vmatprep.mubr.f32.mxu0 %v634
        %3774 = vmatmul.mubr.f32.gmra.mxu0 %v633
        %v3775 = vpop.f32.mrf.mxu0
        %v3776 = vadd.f32 %v3615, %v3775
        %v3777 = vpop.f32.mrf.mxu0
        %v3778 = vadd.f32 %v3617, %v3777
        %3779 = vdwg.mxu0
        %3780 = vmatprep.subr.mxu0 %v1344
        %3781 = vmatpush1.msra.mxu0 %v1343
        %3782 = vmatprep.subr.mxu0 %v1340
        %3783 = vmatpush1.msra.mxu0 %v1339
        %3784 = vmatprep.subr.mxu0 %v1336
        %3785 = vmatpush1.msra.mxu0 %v1335
        %3786 = vmatprep.subr.mxu0 %v1332
        %3787 = vmatpush1.msra.mxu0 %v1331
        %3788 = vmatprep.subr.mxu0 %v1328
        %3789 = vmatpush1.msra.mxu0 %v1327
        %3790 = vmatprep.subr.mxu0 %v1324
        %3791 = vmatpush1.msra.mxu0 %v1323
        %3792 = vmatprep.subr.mxu0 %v1320
        %3793 = vmatpush1.msra.mxu0 %v1319
        %3794 = vmatprep.subr.mxu0 %v1316
        %3795 = vmatpush1.msra.mxu0 %v1315
        %3796 = vmatprep.subr.mxu0 %v1312
        %3797 = vmatpush1.msra.mxu0 %v1311
        %3798 = vmatprep.subr.mxu0 %v1308
        %3799 = vmatpush1.msra.mxu0 %v1307
        %3800 = vmatprep.subr.mxu0 %v1304
        %3801 = vmatpush1.msra.mxu0 %v1303
        %3802 = vmatprep.subr.mxu0 %v1300
        %3803 = vmatpush1.msra.mxu0 %v1299
        %3804 = vmatprep.subr.mxu0 %v1296
        %3805 = vmatpush1.msra.mxu0 %v1295
        %3806 = vmatprep.subr.mxu0 %v1292
        %3807 = vmatpush1.msra.mxu0 %v1291
        %3808 = vmatprep.subr.mxu0 %v1288
        %3809 = vmatpush1.msra.mxu0 %v1287
        %3810 = vmatprep.subr.mxu0 %v1284
        %3811 = vmatpush1.msra.mxu0 %v1283
        %3812 = vmatprep.subr.mxu0 %v1408
        %3813 = vmatpush2.msra.mxu0 %v1407
        %3814 = vmatprep.subr.mxu0 %v1404
        %3815 = vmatpush2.msra.mxu0 %v1403
        %3816 = vmatprep.subr.mxu0 %v1400
        %3817 = vmatpush2.msra.mxu0 %v1399
        %3818 = vmatprep.subr.mxu0 %v1396
        %3819 = vmatpush2.msra.mxu0 %v1395
        %3820 = vmatprep.subr.mxu0 %v1392
        %3821 = vmatpush2.msra.mxu0 %v1391
        %3822 = vmatprep.subr.mxu0 %v1388
        %3823 = vmatpush2.msra.mxu0 %v1387
        %3824 = vmatprep.subr.mxu0 %v1384
        %3825 = vmatpush2.msra.mxu0 %v1383
        %3826 = vmatprep.subr.mxu0 %v1380
        %3827 = vmatpush2.msra.mxu0 %v1379
        %3828 = vmatprep.subr.mxu0 %v1376
        %3829 = vmatpush2.msra.mxu0 %v1375
        %3830 = vmatprep.subr.mxu0 %v1372
        %3831 = vmatpush2.msra.mxu0 %v1371
        %3832 = vmatprep.subr.mxu0 %v1368
        %3833 = vmatpush2.msra.mxu0 %v1367
        %3834 = vmatprep.subr.mxu0 %v1364
        %3835 = vmatpush2.msra.mxu0 %v1363
        %3836 = vmatprep.subr.mxu0 %v1360
        %3837 = vmatpush2.msra.mxu0 %v1359
        %3838 = vmatprep.subr.mxu0 %v1356
        %3839 = vmatpush2.msra.mxu0 %v1355
        %3840 = vmatprep.subr.mxu0 %v1352
        %3841 = vmatpush2.msra.mxu0 %v1351
        %3842 = vmatprep.subr.mxu0 %v1348
        %3843 = vmatpush2.msra.mxu0 %v1347
        %3844 = vmatprep.mubr.f32.mxu0 %v396
        %3845 = vmatmul.mubr.f32.gmra.mxu0 %v395
        %v3846 = vpop.f32.mrf.mxu0
        %v3847 = vadd.f32 %v3686, %v3846
        %v3848 = vpop.f32.mrf.mxu0
        %v3849 = vadd.f32 %v3688, %v3848
        %3850 = vmatprep.mubr.f32.mxu0 %v412
        %3851 = vmatmul.mubr.f32.gmra.mxu0 %v411
        %v3852 = vpop.f32.mrf.mxu0
        %v3853 = vadd.f32 %v3692, %v3852
        %v3854 = vpop.f32.mrf.mxu0
        %v3855 = vadd.f32 %v3694, %v3854
        %3856 = vmatprep.mubr.f32.mxu0 %v428
        %3857 = vmatmul.mubr.f32.gmra.mxu0 %v427
        %v3858 = vpop.f32.mrf.mxu0
        %v3859 = vadd.f32 %v3698, %v3858
        %v3860 = vpop.f32.mrf.mxu0
        %v3861 = vadd.f32 %v3700, %v3860
        %3862 = vmatprep.mubr.f32.mxu0 %v444
        %3863 = vmatmul.mubr.f32.gmra.mxu0 %v443
        %v3864 = vpop.f32.mrf.mxu0
        %v3865 = vadd.f32 %v3704, %v3864
        %v3866 = vpop.f32.mrf.mxu0
        %v3867 = vadd.f32 %v3706, %v3866
        %3868 = vmatprep.mubr.f32.mxu0 %v460
        %3869 = vmatmul.mubr.f32.gmra.mxu0 %v459
        %v3870 = vpop.f32.mrf.mxu0
        %v3871 = vadd.f32 %v3710, %v3870
        %v3872 = vpop.f32.mrf.mxu0
        %v3873 = vadd.f32 %v3712, %v3872
        %3874 = vmatprep.mubr.f32.mxu0 %v476
        %3875 = vmatmul.mubr.f32.gmra.mxu0 %v475
        %v3876 = vpop.f32.mrf.mxu0
        %v3877 = vadd.f32 %v3716, %v3876
        %v3878 = vpop.f32.mrf.mxu0
        %v3879 = vadd.f32 %v3718, %v3878
        %3880 = vmatprep.mubr.f32.mxu0 %v492
        %3881 = vmatmul.mubr.f32.gmra.mxu0 %v491
        %v3882 = vpop.f32.mrf.mxu0
        %v3883 = vadd.f32 %v3722, %v3882
        %v3884 = vpop.f32.mrf.mxu0
        %v3885 = vadd.f32 %v3724, %v3884
        %3886 = vmatprep.mubr.f32.mxu0 %v508
        %3887 = vmatmul.mubr.f32.gmra.mxu0 %v507
        %v3888 = vpop.f32.mrf.mxu0
        %v3889 = vadd.f32 %v3728, %v3888
        %v3890 = vpop.f32.mrf.mxu0
        %v3891 = vadd.f32 %v3730, %v3890
        %3892 = vmatprep.mubr.f32.mxu0 %v524
        %3893 = vmatmul.mubr.f32.gmra.mxu0 %v523
        %v3894 = vpop.f32.mrf.mxu0
        %v3895 = vadd.f32 %v3734, %v3894
        %v3896 = vpop.f32.mrf.mxu0
        %v3897 = vadd.f32 %v3736, %v3896
        %3898 = vmatprep.mubr.f32.mxu0 %v540
        %3899 = vmatmul.mubr.f32.gmra.mxu0 %v539
        %v3900 = vpop.f32.mrf.mxu0
        %v3901 = vadd.f32 %v3740, %v3900
        %v3902 = vpop.f32.mrf.mxu0
        %v3903 = vadd.f32 %v3742, %v3902
        %3904 = vmatprep.mubr.f32.mxu0 %v556
        %3905 = vmatmul.mubr.f32.gmra.mxu0 %v555
        %v3906 = vpop.f32.mrf.mxu0
        %v3907 = vadd.f32 %v3746, %v3906
        %v3908 = vpop.f32.mrf.mxu0
        %v3909 = vadd.f32 %v3748, %v3908
        %3910 = vmatprep.mubr.f32.mxu0 %v572
        %3911 = vmatmul.mubr.f32.gmra.mxu0 %v571
        %v3912 = vpop.f32.mrf.mxu0
        %v3913 = vadd.f32 %v3752, %v3912
        %v3914 = vpop.f32.mrf.mxu0
        %v3915 = vadd.f32 %v3754, %v3914
        %3916 = vmatprep.mubr.f32.mxu0 %v588
        %3917 = vmatmul.mubr.f32.gmra.mxu0 %v587
        %v3918 = vpop.f32.mrf.mxu0
        %v3919 = vadd.f32 %v3758, %v3918
        %v3920 = vpop.f32.mrf.mxu0
        %v3921 = vadd.f32 %v3760, %v3920
        %3922 = vmatprep.mubr.f32.mxu0 %v604
        %3923 = vmatmul.mubr.f32.gmra.mxu0 %v603
        %v3924 = vpop.f32.mrf.mxu0
        %v3925 = vadd.f32 %v3764, %v3924
        %v3926 = vpop.f32.mrf.mxu0
        %v3927 = vadd.f32 %v3766, %v3926
        %3928 = vmatprep.mubr.f32.mxu0 %v620
        %3929 = vmatmul.mubr.f32.gmra.mxu0 %v619
        %v3930 = vpop.f32.mrf.mxu0
        %v3931 = vadd.f32 %v3770, %v3930
        %v3932 = vpop.f32.mrf.mxu0
        %v3933 = vadd.f32 %v3772, %v3932
        %3934 = vmatprep.mubr.f32.mxu0 %v636
        %3935 = vmatmul.mubr.f32.gmra.mxu0 %v635
        %v3936 = vpop.f32.mrf.mxu0
        %v3937 = vadd.f32 %v3776, %v3936
        %v3938 = vpop.f32.mrf.mxu0
        %v3939 = vadd.f32 %v3778, %v3938
        %3940 = vdwg.mxu0
        %3941 = vmatprep.subr.mxu0 %v1472
        %3942 = vmatpush1.msra.mxu0 %v1471
        %3943 = vmatprep.subr.mxu0 %v1468
        %3944 = vmatpush1.msra.mxu0 %v1467
        %3945 = vmatprep.subr.mxu0 %v1464
        %3946 = vmatpush1.msra.mxu0 %v1463
        %3947 = vmatprep.subr.mxu0 %v1460
        %3948 = vmatpush1.msra.mxu0 %v1459
        %3949 = vmatprep.subr.mxu0 %v1456
        %3950 = vmatpush1.msra.mxu0 %v1455
        %3951 = vmatprep.subr.mxu0 %v1452
        %3952 = vmatpush1.msra.mxu0 %v1451
        %3953 = vmatprep.subr.mxu0 %v1448
        %3954 = vmatpush1.msra.mxu0 %v1447
        %3955 = vmatprep.subr.mxu0 %v1444
        %3956 = vmatpush1.msra.mxu0 %v1443
        %3957 = vmatprep.subr.mxu0 %v1440
        %3958 = vmatpush1.msra.mxu0 %v1439
        %3959 = vmatprep.subr.mxu0 %v1436
        %3960 = vmatpush1.msra.mxu0 %v1435
        %3961 = vmatprep.subr.mxu0 %v1432
        %3962 = vmatpush1.msra.mxu0 %v1431
        %3963 = vmatprep.subr.mxu0 %v1428
        %3964 = vmatpush1.msra.mxu0 %v1427
        %3965 = vmatprep.subr.mxu0 %v1424
        %3966 = vmatpush1.msra.mxu0 %v1423
        %3967 = vmatprep.subr.mxu0 %v1420
        %3968 = vmatpush1.msra.mxu0 %v1419
        %3969 = vmatprep.subr.mxu0 %v1416
        %3970 = vmatpush1.msra.mxu0 %v1415
        %3971 = vmatprep.subr.mxu0 %v1412
        %3972 = vmatpush1.msra.mxu0 %v1411
        %3973 = vmatprep.subr.mxu0 %v1536
        %3974 = vmatpush2.msra.mxu0 %v1535
        %3975 = vmatprep.subr.mxu0 %v1532
        %3976 = vmatpush2.msra.mxu0 %v1531
        %3977 = vmatprep.subr.mxu0 %v1528
        %3978 = vmatpush2.msra.mxu0 %v1527
        %3979 = vmatprep.subr.mxu0 %v1524
        %3980 = vmatpush2.msra.mxu0 %v1523
        %3981 = vmatprep.subr.mxu0 %v1520
        %3982 = vmatpush2.msra.mxu0 %v1519
        %3983 = vmatprep.subr.mxu0 %v1516
        %3984 = vmatpush2.msra.mxu0 %v1515
        %3985 = vmatprep.subr.mxu0 %v1512
        %3986 = vmatpush2.msra.mxu0 %v1511
        %3987 = vmatprep.subr.mxu0 %v1508
        %3988 = vmatpush2.msra.mxu0 %v1507
        %3989 = vmatprep.subr.mxu0 %v1504
        %3990 = vmatpush2.msra.mxu0 %v1503
        %3991 = vmatprep.subr.mxu0 %v1500
        %3992 = vmatpush2.msra.mxu0 %v1499
        %3993 = vmatprep.subr.mxu0 %v1496
        %3994 = vmatpush2.msra.mxu0 %v1495
        %3995 = vmatprep.subr.mxu0 %v1492
        %3996 = vmatpush2.msra.mxu0 %v1491
        %3997 = vmatprep.subr.mxu0 %v1488
        %3998 = vmatpush2.msra.mxu0 %v1487
        %3999 = vmatprep.subr.mxu0 %v1484
        %4000 = vmatpush2.msra.mxu0 %v1483
        %4001 = vmatprep.subr.mxu0 %v1480
        %4002 = vmatpush2.msra.mxu0 %v1479
        %4003 = vmatprep.subr.mxu0 %v1476
        %4004 = vmatpush2.msra.mxu0 %v1475
        %4005 = vmatprep.mubr.f32.mxu0 %v398
        %4006 = vmatmul.mubr.f32.gmra.mxu0 %v397
        %v4007 = vpop.f32.mrf.mxu0
        %v4008 = vadd.f32 %v3847, %v4007
        %v4009 = vpop.f32.mrf.mxu0
        %v4010 = vadd.f32 %v3849, %v4009
        %4011 = vmatprep.mubr.f32.mxu0 %v414
        %4012 = vmatmul.mubr.f32.gmra.mxu0 %v413
        %v4013 = vpop.f32.mrf.mxu0
        %v4014 = vadd.f32 %v3853, %v4013
        %v4015 = vpop.f32.mrf.mxu0
        %v4016 = vadd.f32 %v3855, %v4015
        %4017 = vmatprep.mubr.f32.mxu0 %v430
        %4018 = vmatmul.mubr.f32.gmra.mxu0 %v429
        %v4019 = vpop.f32.mrf.mxu0
        %v4020 = vadd.f32 %v3859, %v4019
        %v4021 = vpop.f32.mrf.mxu0
        %v4022 = vadd.f32 %v3861, %v4021
        %4023 = vmatprep.mubr.f32.mxu0 %v446
        %4024 = vmatmul.mubr.f32.gmra.mxu0 %v445
        %v4025 = vpop.f32.mrf.mxu0
        %v4026 = vadd.f32 %v3865, %v4025
        %v4027 = vpop.f32.mrf.mxu0
        %v4028 = vadd.f32 %v3867, %v4027
        %4029 = vmatprep.mubr.f32.mxu0 %v462
        %4030 = vmatmul.mubr.f32.gmra.mxu0 %v461
        %v4031 = vpop.f32.mrf.mxu0
        %v4032 = vadd.f32 %v3871, %v4031
        %v4033 = vpop.f32.mrf.mxu0
        %v4034 = vadd.f32 %v3873, %v4033
        %4035 = vmatprep.mubr.f32.mxu0 %v478
        %4036 = vmatmul.mubr.f32.gmra.mxu0 %v477
        %v4037 = vpop.f32.mrf.mxu0
        %v4038 = vadd.f32 %v3877, %v4037
        %v4039 = vpop.f32.mrf.mxu0
        %v4040 = vadd.f32 %v3879, %v4039
        %4041 = vmatprep.mubr.f32.mxu0 %v494
        %4042 = vmatmul.mubr.f32.gmra.mxu0 %v493
        %v4043 = vpop.f32.mrf.mxu0
        %v4044 = vadd.f32 %v3883, %v4043
        %v4045 = vpop.f32.mrf.mxu0
        %v4046 = vadd.f32 %v3885, %v4045
        %4047 = vmatprep.mubr.f32.mxu0 %v510
        %4048 = vmatmul.mubr.f32.gmra.mxu0 %v509
        %v4049 = vpop.f32.mrf.mxu0
        %v4050 = vadd.f32 %v3889, %v4049
        %v4051 = vpop.f32.mrf.mxu0
        %v4052 = vadd.f32 %v3891, %v4051
        %4053 = vmatprep.mubr.f32.mxu0 %v526
        %4054 = vmatmul.mubr.f32.gmra.mxu0 %v525
        %v4055 = vpop.f32.mrf.mxu0
        %v4056 = vadd.f32 %v3895, %v4055
        %v4057 = vpop.f32.mrf.mxu0
        %v4058 = vadd.f32 %v3897, %v4057
        %4059 = vmatprep.mubr.f32.mxu0 %v542
        %4060 = vmatmul.mubr.f32.gmra.mxu0 %v541
        %v4061 = vpop.f32.mrf.mxu0
        %v4062 = vadd.f32 %v3901, %v4061
        %v4063 = vpop.f32.mrf.mxu0
        %v4064 = vadd.f32 %v3903, %v4063
        %4065 = vmatprep.mubr.f32.mxu0 %v558
        %4066 = vmatmul.mubr.f32.gmra.mxu0 %v557
        %v4067 = vpop.f32.mrf.mxu0
        %v4068 = vadd.f32 %v3907, %v4067
        %v4069 = vpop.f32.mrf.mxu0
        %v4070 = vadd.f32 %v3909, %v4069
        %4071 = vmatprep.mubr.f32.mxu0 %v574
        %4072 = vmatmul.mubr.f32.gmra.mxu0 %v573
        %v4073 = vpop.f32.mrf.mxu0
        %v4074 = vadd.f32 %v3913, %v4073
        %v4075 = vpop.f32.mrf.mxu0
        %v4076 = vadd.f32 %v3915, %v4075
        %4077 = vmatprep.mubr.f32.mxu0 %v590
        %4078 = vmatmul.mubr.f32.gmra.mxu0 %v589
        %v4079 = vpop.f32.mrf.mxu0
        %v4080 = vadd.f32 %v3919, %v4079
        %v4081 = vpop.f32.mrf.mxu0
        %v4082 = vadd.f32 %v3921, %v4081
        %4083 = vmatprep.mubr.f32.mxu0 %v606
        %4084 = vmatmul.mubr.f32.gmra.mxu0 %v605
        %v4085 = vpop.f32.mrf.mxu0
        %v4086 = vadd.f32 %v3925, %v4085
        %v4087 = vpop.f32.mrf.mxu0
        %v4088 = vadd.f32 %v3927, %v4087
        %4089 = vmatprep.mubr.f32.mxu0 %v622
        %4090 = vmatmul.mubr.f32.gmra.mxu0 %v621
        %v4091 = vpop.f32.mrf.mxu0
        %v4092 = vadd.f32 %v3931, %v4091
        %v4093 = vpop.f32.mrf.mxu0
        %v4094 = vadd.f32 %v3933, %v4093
        %4095 = vmatprep.mubr.f32.mxu0 %v638
        %4096 = vmatmul.mubr.f32.gmra.mxu0 %v637
        %v4097 = vpop.f32.mrf.mxu0
        %v4098 = vadd.f32 %v3937, %v4097
        %v4099 = vpop.f32.mrf.mxu0
        %v4100 = vadd.f32 %v3939, %v4099
        %4101 = vdwg.mxu0
        %4102 = vmatprep.subr.mxu0 %v1600
        %4103 = vmatpush1.msra.mxu0 %v1599
        %4104 = vmatprep.subr.mxu0 %v1596
        %4105 = vmatpush1.msra.mxu0 %v1595
        %4106 = vmatprep.subr.mxu0 %v1592
        %4107 = vmatpush1.msra.mxu0 %v1591
        %4108 = vmatprep.subr.mxu0 %v1588
        %4109 = vmatpush1.msra.mxu0 %v1587
        %4110 = vmatprep.subr.mxu0 %v1584
        %4111 = vmatpush1.msra.mxu0 %v1583
        %4112 = vmatprep.subr.mxu0 %v1580
        %4113 = vmatpush1.msra.mxu0 %v1579
        %4114 = vmatprep.subr.mxu0 %v1576
        %4115 = vmatpush1.msra.mxu0 %v1575
        %4116 = vmatprep.subr.mxu0 %v1572
        %4117 = vmatpush1.msra.mxu0 %v1571
        %4118 = vmatprep.subr.mxu0 %v1568
        %4119 = vmatpush1.msra.mxu0 %v1567
        %4120 = vmatprep.subr.mxu0 %v1564
        %4121 = vmatpush1.msra.mxu0 %v1563
        %4122 = vmatprep.subr.mxu0 %v1560
        %4123 = vmatpush1.msra.mxu0 %v1559
        %4124 = vmatprep.subr.mxu0 %v1556
        %4125 = vmatpush1.msra.mxu0 %v1555
        %4126 = vmatprep.subr.mxu0 %v1552
        %4127 = vmatpush1.msra.mxu0 %v1551
        %4128 = vmatprep.subr.mxu0 %v1548
        %4129 = vmatpush1.msra.mxu0 %v1547
        %4130 = vmatprep.subr.mxu0 %v1544
        %4131 = vmatpush1.msra.mxu0 %v1543
        %4132 = vmatprep.subr.mxu0 %v1540
        %4133 = vmatpush1.msra.mxu0 %v1539
        %4134 = vmatprep.subr.mxu0 %v1664
        %4135 = vmatpush2.msra.mxu0 %v1663
        %4136 = vmatprep.subr.mxu0 %v1660
        %4137 = vmatpush2.msra.mxu0 %v1659
        %4138 = vmatprep.subr.mxu0 %v1656
        %4139 = vmatpush2.msra.mxu0 %v1655
        %4140 = vmatprep.subr.mxu0 %v1652
        %4141 = vmatpush2.msra.mxu0 %v1651
        %4142 = vmatprep.subr.mxu0 %v1648
        %4143 = vmatpush2.msra.mxu0 %v1647
        %4144 = vmatprep.subr.mxu0 %v1644
        %4145 = vmatpush2.msra.mxu0 %v1643
        %4146 = vmatprep.subr.mxu0 %v1640
        %4147 = vmatpush2.msra.mxu0 %v1639
        %4148 = vmatprep.subr.mxu0 %v1636
        %4149 = vmatpush2.msra.mxu0 %v1635
        %4150 = vmatprep.subr.mxu0 %v1632
        %4151 = vmatpush2.msra.mxu0 %v1631
        %4152 = vmatprep.subr.mxu0 %v1628
        %4153 = vmatpush2.msra.mxu0 %v1627
        %4154 = vmatprep.subr.mxu0 %v1624
        %4155 = vmatpush2.msra.mxu0 %v1623
        %4156 = vmatprep.subr.mxu0 %v1620
        %4157 = vmatpush2.msra.mxu0 %v1619
        %4158 = vmatprep.subr.mxu0 %v1616
        %4159 = vmatpush2.msra.mxu0 %v1615
        %4160 = vmatprep.subr.mxu0 %v1612
        %4161 = vmatpush2.msra.mxu0 %v1611
        %4162 = vmatprep.subr.mxu0 %v1608
        %4163 = vmatpush2.msra.mxu0 %v1607
        %4164 = vmatprep.subr.mxu0 %v1604
        %4165 = vmatpush2.msra.mxu0 %v1603
        %4166 = vmatprep.mubr.f32.mxu0 %v400
        %4167 = vmatmul.mubr.f32.gmra.mxu0 %v399
        %v4168 = vpop.f32.mrf.mxu0
        %v4169 = vadd.f32 %v4008, %v4168
        %v4170 = vpop.f32.mrf.mxu0
        %v4171 = vadd.f32 %v4010, %v4170
        %4172 = vmatprep.mubr.f32.mxu0 %v416
        %4173 = vmatmul.mubr.f32.gmra.mxu0 %v415
        %v4174 = vpop.f32.mrf.mxu0
        %v4175 = vadd.f32 %v4014, %v4174
        %v4176 = vpop.f32.mrf.mxu0
        %v4177 = vadd.f32 %v4016, %v4176
        %4178 = vmatprep.mubr.f32.mxu0 %v432
        %4179 = vmatmul.mubr.f32.gmra.mxu0 %v431
        %v4180 = vpop.f32.mrf.mxu0
        %v4181 = vadd.f32 %v4020, %v4180
        %v4182 = vpop.f32.mrf.mxu0
        %v4183 = vadd.f32 %v4022, %v4182
        %4184 = vmatprep.mubr.f32.mxu0 %v448
        %4185 = vmatmul.mubr.f32.gmra.mxu0 %v447
        %v4186 = vpop.f32.mrf.mxu0
        %v4187 = vadd.f32 %v4026, %v4186
        %v4188 = vpop.f32.mrf.mxu0
        %v4189 = vadd.f32 %v4028, %v4188
        %4190 = vmatprep.mubr.f32.mxu0 %v464
        %4191 = vmatmul.mubr.f32.gmra.mxu0 %v463
        %v4192 = vpop.f32.mrf.mxu0
        %v4193 = vadd.f32 %v4032, %v4192
        %v4194 = vpop.f32.mrf.mxu0
        %v4195 = vadd.f32 %v4034, %v4194
        %4196 = vmatprep.mubr.f32.mxu0 %v480
        %4197 = vmatmul.mubr.f32.gmra.mxu0 %v479
        %v4198 = vpop.f32.mrf.mxu0
        %v4199 = vadd.f32 %v4038, %v4198
        %v4200 = vpop.f32.mrf.mxu0
        %v4201 = vadd.f32 %v4040, %v4200
        %4202 = vmatprep.mubr.f32.mxu0 %v496
        %4203 = vmatmul.mubr.f32.gmra.mxu0 %v495
        %v4204 = vpop.f32.mrf.mxu0
        %v4205 = vadd.f32 %v4044, %v4204
        %v4206 = vpop.f32.mrf.mxu0
        %v4207 = vadd.f32 %v4046, %v4206
        %4208 = vmatprep.mubr.f32.mxu0 %v512
        %4209 = vmatmul.mubr.f32.gmra.mxu0 %v511
        %v4210 = vpop.f32.mrf.mxu0
        %v4211 = vadd.f32 %v4050, %v4210
        %v4212 = vpop.f32.mrf.mxu0
        %v4213 = vadd.f32 %v4052, %v4212
        %4214 = vmatprep.mubr.f32.mxu0 %v528
        %4215 = vmatmul.mubr.f32.gmra.mxu0 %v527
        %v4216 = vpop.f32.mrf.mxu0
        %v4217 = vadd.f32 %v4056, %v4216
        %v4218 = vpop.f32.mrf.mxu0
        %v4219 = vadd.f32 %v4058, %v4218
        %4220 = vmatprep.mubr.f32.mxu0 %v544
        %4221 = vmatmul.mubr.f32.gmra.mxu0 %v543
        %v4222 = vpop.f32.mrf.mxu0
        %v4223 = vadd.f32 %v4062, %v4222
        %v4224 = vpop.f32.mrf.mxu0
        %v4225 = vadd.f32 %v4064, %v4224
        %4226 = vmatprep.mubr.f32.mxu0 %v560
        %4227 = vmatmul.mubr.f32.gmra.mxu0 %v559
        %v4228 = vpop.f32.mrf.mxu0
        %v4229 = vadd.f32 %v4068, %v4228
        %v4230 = vpop.f32.mrf.mxu0
        %v4231 = vadd.f32 %v4070, %v4230
        %4232 = vmatprep.mubr.f32.mxu0 %v576
        %4233 = vmatmul.mubr.f32.gmra.mxu0 %v575
        %v4234 = vpop.f32.mrf.mxu0
        %v4235 = vadd.f32 %v4074, %v4234
        %v4236 = vpop.f32.mrf.mxu0
        %v4237 = vadd.f32 %v4076, %v4236
        %4238 = vmatprep.mubr.f32.mxu0 %v592
        %4239 = vmatmul.mubr.f32.gmra.mxu0 %v591
        %v4240 = vpop.f32.mrf.mxu0
        %v4241 = vadd.f32 %v4080, %v4240
        %v4242 = vpop.f32.mrf.mxu0
        %v4243 = vadd.f32 %v4082, %v4242
        %4244 = vmatprep.mubr.f32.mxu0 %v608
        %4245 = vmatmul.mubr.f32.gmra.mxu0 %v607
        %v4246 = vpop.f32.mrf.mxu0
        %v4247 = vadd.f32 %v4086, %v4246
        %v4248 = vpop.f32.mrf.mxu0
        %v4249 = vadd.f32 %v4088, %v4248
        %4250 = vmatprep.mubr.f32.mxu0 %v624
        %4251 = vmatmul.mubr.f32.gmra.mxu0 %v623
        %v4252 = vpop.f32.mrf.mxu0
        %v4253 = vadd.f32 %v4092, %v4252
        %v4254 = vpop.f32.mrf.mxu0
        %v4255 = vadd.f32 %v4094, %v4254
        %4256 = vmatprep.mubr.f32.mxu0 %v640
        %4257 = vmatmul.mubr.f32.gmra.mxu0 %v639
        %v4258 = vpop.f32.mrf.mxu0
        %v4259 = vadd.f32 %v4098, %v4258
        %v4260 = vpop.f32.mrf.mxu0
        %v4261 = vadd.f32 %v4100, %v4260
        %4262 = vdwg.mxu0
        %v4263 = vmax.f32 %v2881, 0.0
        %v4264 = vmax.f32 %v2883, 0.0
        %v4265 = vmax.f32 %v4169, 0.0
        %v4266 = vmax.f32 %v4171, 0.0
        %v4267 = vmax.f32 %v2887, 0.0
        %v4268 = vmax.f32 %v2889, 0.0
        %v4269 = vmax.f32 %v4175, 0.0
        %v4270 = vmax.f32 %v4177, 0.0
        %v4271 = vmax.f32 %v2893, 0.0
        %v4272 = vmax.f32 %v2895, 0.0
        %v4273 = vmax.f32 %v4181, 0.0
        %v4274 = vmax.f32 %v4183, 0.0
        %v4275 = vmax.f32 %v2899, 0.0
        %v4276 = vmax.f32 %v2901, 0.0
        %v4277 = vmax.f32 %v4187, 0.0
        %v4278 = vmax.f32 %v4189, 0.0
        %v4279 = vmax.f32 %v2905, 0.0
        %v4280 = vmax.f32 %v2907, 0.0
        %v4281 = vmax.f32 %v4193, 0.0
        %v4282 = vmax.f32 %v4195, 0.0
        %v4283 = vmax.f32 %v2911, 0.0
        %v4284 = vmax.f32 %v2913, 0.0
        %v4285 = vmax.f32 %v4199, 0.0
        %v4286 = vmax.f32 %v4201, 0.0
        %v4287 = vmax.f32 %v2917, 0.0
        %v4288 = vmax.f32 %v2919, 0.0
        %v4289 = vmax.f32 %v4205, 0.0
        %v4290 = vmax.f32 %v4207, 0.0
        %v4291 = vmax.f32 %v2923, 0.0
        %v4292 = vmax.f32 %v2925, 0.0
        %v4293 = vmax.f32 %v4211, 0.0
        %v4294 = vmax.f32 %v4213, 0.0
        %v4295 = vmax.f32 %v2929, 0.0
        %v4296 = vmax.f32 %v2931, 0.0
        %v4297 = vmax.f32 %v4217, 0.0
        %v4298 = vmax.f32 %v4219, 0.0
        %v4299 = vmax.f32 %v2935, 0.0
        %v4300 = vmax.f32 %v2937, 0.0
        %v4301 = vmax.f32 %v4223, 0.0
        %v4302 = vmax.f32 %v4225, 0.0
        %v4303 = vmax.f32 %v2941, 0.0
        %v4304 = vmax.f32 %v2943, 0.0
        %v4305 = vmax.f32 %v4229, 0.0
        %v4306 = vmax.f32 %v4231, 0.0
        %v4307 = vmax.f32 %v2947, 0.0
        %v4308 = vmax.f32 %v2949, 0.0
        %v4309 = vmax.f32 %v4235, 0.0
        %v4310 = vmax.f32 %v4237, 0.0
        %v4311 = vmax.f32 %v2953, 0.0
        %v4312 = vmax.f32 %v2955, 0.0
        %v4313 = vmax.f32 %v4241, 0.0
        %v4314 = vmax.f32 %v4243, 0.0
        %v4315 = vmax.f32 %v2959, 0.0
        %v4316 = vmax.f32 %v2961, 0.0
        %v4317 = vmax.f32 %v4247, 0.0
        %v4318 = vmax.f32 %v4249, 0.0
        %v4319 = vmax.f32 %v2965, 0.0
        %v4320 = vmax.f32 %v2967, 0.0
        %v4321 = vmax.f32 %v4253, 0.0
        %v4322 = vmax.f32 %v4255, 0.0
        %v4323 = vmax.f32 %v2971, 0.0
        %v4324 = vmax.f32 %v2973, 0.0
        %v4325 = vmax.f32 %v4259, 0.0
        %v4326 = vmax.f32 %v4261, 0.0
        %v4327 = vld [vmem:[#allocation8] sm:$0xff]
        %v4328 = vld [vmem:[#allocation8 + $0x8] sm:$0xff]
        %v4329 = vld [vmem:[#allocation8 + $0x10] sm:$0xff]
        %v4330 = vld [vmem:[#allocation8 + $0x18] sm:$0xff]
        %v4331 = vld [vmem:[#allocation8 + $0x20] sm:$0xff]
        %v4332 = vld [vmem:[#allocation8 + $0x28] sm:$0xff]
        %v4333 = vld [vmem:[#allocation8 + $0x30] sm:$0xff]
        %v4334 = vld [vmem:[#allocation8 + $0x38] sm:$0xff]
        %v4335 = vld [vmem:[#allocation8 + $0x40] sm:$0xff]
        %v4336 = vld [vmem:[#allocation8 + $0x48] sm:$0xff]
        %v4337 = vld [vmem:[#allocation8 + $0x50] sm:$0xff]
        %v4338 = vld [vmem:[#allocation8 + $0x58] sm:$0xff]
        %v4339 = vld [vmem:[#allocation8 + $0x60] sm:$0xff]
        %v4340 = vld [vmem:[#allocation8 + $0x68] sm:$0xff]
        %v4341 = vld [vmem:[#allocation8 + $0x70] sm:$0xff]
        %v4342 = vld [vmem:[#allocation8 + $0x78] sm:$0xff]
        %v4343 = vld [vmem:[#allocation8 + $0x80] sm:$0xff]
        %v4344 = vld [vmem:[#allocation8 + $0x88] sm:$0xff]
        %v4345 = vld [vmem:[#allocation8 + $0x90] sm:$0xff]
        %v4346 = vld [vmem:[#allocation8 + $0x98] sm:$0xff]
        %v4347 = vld [vmem:[#allocation8 + $0xa0] sm:$0xff]
        %v4348 = vld [vmem:[#allocation8 + $0xa8] sm:$0xff]
        %v4349 = vld [vmem:[#allocation8 + $0xb0] sm:$0xff]
        %v4350 = vld [vmem:[#allocation8 + $0xb8] sm:$0xff]
        %v4351 = vld [vmem:[#allocation8 + $0xc0] sm:$0xff]
        %v4352 = vld [vmem:[#allocation8 + $0xc8] sm:$0xff]
        %v4353 = vld [vmem:[#allocation8 + $0xd0] sm:$0xff]
        %v4354 = vld [vmem:[#allocation8 + $0xd8] sm:$0xff]
        %v4355 = vld [vmem:[#allocation8 + $0xe0] sm:$0xff]
        %v4356 = vld [vmem:[#allocation8 + $0xe8] sm:$0xff]
        %v4357 = vld [vmem:[#allocation8 + $0xf0] sm:$0xff]
        %v4358 = vld [vmem:[#allocation8 + $0xf8] sm:$0xff]
        %v4359 = vld [vmem:[#allocation8 + $0x100] sm:$0xff]
        %v4360 = vld [vmem:[#allocation8 + $0x108] sm:$0xff]
        %v4361 = vld [vmem:[#allocation8 + $0x110] sm:$0xff]
        %v4362 = vld [vmem:[#allocation8 + $0x118] sm:$0xff]
        %v4363 = vld [vmem:[#allocation8 + $0x120] sm:$0xff]
        %v4364 = vld [vmem:[#allocation8 + $0x128] sm:$0xff]
        %v4365 = vld [vmem:[#allocation8 + $0x130] sm:$0xff]
        %v4366 = vld [vmem:[#allocation8 + $0x138] sm:$0xff]
        %v4367 = vld [vmem:[#allocation8 + $0x140] sm:$0xff]
        %v4368 = vld [vmem:[#allocation8 + $0x148] sm:$0xff]
        %v4369 = vld [vmem:[#allocation8 + $0x150] sm:$0xff]
        %v4370 = vld [vmem:[#allocation8 + $0x158] sm:$0xff]
        %v4371 = vld [vmem:[#allocation8 + $0x160] sm:$0xff]
        %v4372 = vld [vmem:[#allocation8 + $0x168] sm:$0xff]
        %v4373 = vld [vmem:[#allocation8 + $0x170] sm:$0xff]
        %v4374 = vld [vmem:[#allocation8 + $0x178] sm:$0xff]
        %v4375 = vld [vmem:[#allocation8 + $0x180] sm:$0xff]
        %v4376 = vld [vmem:[#allocation8 + $0x188] sm:$0xff]
        %v4377 = vld [vmem:[#allocation8 + $0x190] sm:$0xff]
        %v4378 = vld [vmem:[#allocation8 + $0x198] sm:$0xff]
        %v4379 = vld [vmem:[#allocation8 + $0x1a0] sm:$0xff]
        %v4380 = vld [vmem:[#allocation8 + $0x1a8] sm:$0xff]
        %v4381 = vld [vmem:[#allocation8 + $0x1b0] sm:$0xff]
        %v4382 = vld [vmem:[#allocation8 + $0x1b8] sm:$0xff]
        %v4383 = vld [vmem:[#allocation8 + $0x1c0] sm:$0xff]
        %v4384 = vld [vmem:[#allocation8 + $0x1c8] sm:$0xff]
        %v4385 = vld [vmem:[#allocation8 + $0x1d0] sm:$0xff]
        %v4386 = vld [vmem:[#allocation8 + $0x1d8] sm:$0xff]
        %v4387 = vld [vmem:[#allocation8 + $0x1e0] sm:$0xff]
        %v4388 = vld [vmem:[#allocation8 + $0x1e8] sm:$0xff]
        %v4389 = vld [vmem:[#allocation8 + $0x1f0] sm:$0xff]
        %v4390 = vld [vmem:[#allocation8 + $0x1f8] sm:$0xff]
        %v4391 = vld [vmem:[#allocation10] sm:$0x1]
        %v4393 = vlaneseq
        %v4394 = vshrl.u32 %v4393, 7
        %v4395 = vsub.s32 0, %v4394
        %v4396 = vrot.slane %v4391, %v4395
        %4398 = vmatprep.subr.mxu0 0.0
        %4399 = vmatpush1.msra.mxu0 %v4342
        %4400 = vmatprep.subr.mxu0 0.0
        %4401 = vmatpush1.msra.mxu0 %v4341
        %4402 = vmatprep.subr.mxu0 0.0
        %4403 = vmatpush1.msra.mxu0 %v4340
        %4404 = vmatprep.subr.mxu0 0.0
        %4405 = vmatpush1.msra.mxu0 %v4339
        %4406 = vmatprep.subr.mxu0 0.0
        %4407 = vmatpush1.msra.mxu0 %v4338
        %4408 = vmatprep.subr.mxu0 0.0
        %4409 = vmatpush1.msra.mxu0 %v4337
        %4410 = vmatprep.subr.mxu0 0.0
        %4411 = vmatpush1.msra.mxu0 %v4336
        %4412 = vmatprep.subr.mxu0 0.0
        %4413 = vmatpush1.msra.mxu0 %v4335
        %4414 = vmatprep.subr.mxu0 0.0
        %4415 = vmatpush1.msra.mxu0 %v4334
        %4416 = vmatprep.subr.mxu0 0.0
        %4417 = vmatpush1.msra.mxu0 %v4333
        %4418 = vmatprep.subr.mxu0 0.0
        %4419 = vmatpush1.msra.mxu0 %v4332
        %4420 = vmatprep.subr.mxu0 0.0
        %4421 = vmatpush1.msra.mxu0 %v4331
        %4422 = vmatprep.subr.mxu0 0.0
        %4423 = vmatpush1.msra.mxu0 %v4330
        %4424 = vmatprep.subr.mxu0 0.0
        %4425 = vmatpush1.msra.mxu0 %v4329
        %4426 = vmatprep.subr.mxu0 0.0
        %4427 = vmatpush1.msra.mxu0 %v4328
        %4428 = vmatprep.subr.mxu0 0.0
        %4429 = vmatpush1.msra.mxu0 %v4327
        %4430 = vmatprep.subr.mxu0 0.0
        %4431 = vmatpush2.msra.mxu0 %v4358
        %4432 = vmatprep.subr.mxu0 0.0
        %4433 = vmatpush2.msra.mxu0 %v4357
        %4434 = vmatprep.subr.mxu0 0.0
        %4435 = vmatpush2.msra.mxu0 %v4356
        %4436 = vmatprep.subr.mxu0 0.0
        %4437 = vmatpush2.msra.mxu0 %v4355
        %4438 = vmatprep.subr.mxu0 0.0
        %4439 = vmatpush2.msra.mxu0 %v4354
        %4440 = vmatprep.subr.mxu0 0.0
        %4441 = vmatpush2.msra.mxu0 %v4353
        %4442 = vmatprep.subr.mxu0 0.0
        %4443 = vmatpush2.msra.mxu0 %v4352
        %4444 = vmatprep.subr.mxu0 0.0
        %4445 = vmatpush2.msra.mxu0 %v4351
        %4446 = vmatprep.subr.mxu0 0.0
        %4447 = vmatpush2.msra.mxu0 %v4350
        %4448 = vmatprep.subr.mxu0 0.0
        %4449 = vmatpush2.msra.mxu0 %v4349
        %4450 = vmatprep.subr.mxu0 0.0
        %4451 = vmatpush2.msra.mxu0 %v4348
        %4452 = vmatprep.subr.mxu0 0.0
        %4453 = vmatpush2.msra.mxu0 %v4347
        %4454 = vmatprep.subr.mxu0 0.0
        %4455 = vmatpush2.msra.mxu0 %v4346
        %4456 = vmatprep.subr.mxu0 0.0
        %4457 = vmatpush2.msra.mxu0 %v4345
        %4458 = vmatprep.subr.mxu0 0.0
        %4459 = vmatpush2.msra.mxu0 %v4344
        %4460 = vmatprep.subr.mxu0 0.0
        %4461 = vmatpush2.msra.mxu0 %v4343
        %4462 = vmatprep.mubr.f32.mxu0 %v4264
        %4463 = vmatmul.mubr.f32.gmra.mxu0 %v4263
        %v4464 = vpop.f32.mrf.mxu0
        %v4465 = vadd.f32 %v4396, %v4464
        %v4466 = vpop.f32.mrf.mxu0
        %4467 = vmatprep.mubr.f32.mxu0 %v4268
        %4468 = vmatmul.mubr.f32.gmra.mxu0 %v4267
        %v4469 = vpop.f32.mrf.mxu0
        %v4470 = vadd.f32 %v4396, %v4469
        %v4471 = vpop.f32.mrf.mxu0
        %4472 = vmatprep.mubr.f32.mxu0 %v4272
        %4473 = vmatmul.mubr.f32.gmra.mxu0 %v4271
        %v4474 = vpop.f32.mrf.mxu0
        %v4475 = vadd.f32 %v4396, %v4474
        %v4476 = vpop.f32.mrf.mxu0
        %4477 = vmatprep.mubr.f32.mxu0 %v4276
        %4478 = vmatmul.mubr.f32.gmra.mxu0 %v4275
        %v4479 = vpop.f32.mrf.mxu0
        %v4480 = vadd.f32 %v4396, %v4479
        %v4481 = vpop.f32.mrf.mxu0
        %4482 = vmatprep.mubr.f32.mxu0 %v4280
        %4483 = vmatmul.mubr.f32.gmra.mxu0 %v4279
        %v4484 = vpop.f32.mrf.mxu0
        %v4485 = vadd.f32 %v4396, %v4484
        %v4486 = vpop.f32.mrf.mxu0
        %4487 = vmatprep.mubr.f32.mxu0 %v4284
        %4488 = vmatmul.mubr.f32.gmra.mxu0 %v4283
        %v4489 = vpop.f32.mrf.mxu0
        %v4490 = vadd.f32 %v4396, %v4489
        %v4491 = vpop.f32.mrf.mxu0
        %4492 = vmatprep.mubr.f32.mxu0 %v4288
        %4493 = vmatmul.mubr.f32.gmra.mxu0 %v4287
        %v4494 = vpop.f32.mrf.mxu0
        %v4495 = vadd.f32 %v4396, %v4494
        %v4496 = vpop.f32.mrf.mxu0
        %4497 = vmatprep.mubr.f32.mxu0 %v4292
        %4498 = vmatmul.mubr.f32.gmra.mxu0 %v4291
        %v4499 = vpop.f32.mrf.mxu0
        %v4500 = vadd.f32 %v4396, %v4499
        %v4501 = vpop.f32.mrf.mxu0
        %4502 = vmatprep.mubr.f32.mxu0 %v4296
        %4503 = vmatmul.mubr.f32.gmra.mxu0 %v4295
        %v4504 = vpop.f32.mrf.mxu0
        %v4505 = vadd.f32 %v4396, %v4504
        %v4506 = vpop.f32.mrf.mxu0
        %4507 = vmatprep.mubr.f32.mxu0 %v4300
        %4508 = vmatmul.mubr.f32.gmra.mxu0 %v4299
        %v4509 = vpop.f32.mrf.mxu0
        %v4510 = vadd.f32 %v4396, %v4509
        %v4511 = vpop.f32.mrf.mxu0
        %4512 = vmatprep.mubr.f32.mxu0 %v4304
        %4513 = vmatmul.mubr.f32.gmra.mxu0 %v4303
        %v4514 = vpop.f32.mrf.mxu0
        %v4515 = vadd.f32 %v4396, %v4514
        %v4516 = vpop.f32.mrf.mxu0
        %4517 = vmatprep.mubr.f32.mxu0 %v4308
        %4518 = vmatmul.mubr.f32.gmra.mxu0 %v4307
        %v4519 = vpop.f32.mrf.mxu0
        %v4520 = vadd.f32 %v4396, %v4519
        %v4521 = vpop.f32.mrf.mxu0
        %4522 = vmatprep.mubr.f32.mxu0 %v4312
        %4523 = vmatmul.mubr.f32.gmra.mxu0 %v4311
        %v4524 = vpop.f32.mrf.mxu0
        %v4525 = vadd.f32 %v4396, %v4524
        %v4526 = vpop.f32.mrf.mxu0
        %4527 = vmatprep.mubr.f32.mxu0 %v4316
        %4528 = vmatmul.mubr.f32.gmra.mxu0 %v4315
        %v4529 = vpop.f32.mrf.mxu0
        %v4530 = vadd.f32 %v4396, %v4529
        %v4531 = vpop.f32.mrf.mxu0
        %4532 = vmatprep.mubr.f32.mxu0 %v4320
        %4533 = vmatmul.mubr.f32.gmra.mxu0 %v4319
        %v4534 = vpop.f32.mrf.mxu0
        %v4535 = vadd.f32 %v4396, %v4534
        %v4536 = vpop.f32.mrf.mxu0
        %4537 = vmatprep.mubr.f32.mxu0 %v4324
        %4538 = vmatmul.mubr.f32.gmra.mxu0 %v4323
        %v4539 = vpop.f32.mrf.mxu0
        %v4540 = vadd.f32 %v4396, %v4539
        %v4541 = vpop.f32.mrf.mxu0
        %4542 = vdwg.mxu0
        %4543 = vmatprep.subr.mxu0 0.0
        %4544 = vmatpush1.msra.mxu0 %v4374
        %4545 = vmatprep.subr.mxu0 0.0
        %4546 = vmatpush1.msra.mxu0 %v4373
        %4547 = vmatprep.subr.mxu0 0.0
        %4548 = vmatpush1.msra.mxu0 %v4372
        %4549 = vmatprep.subr.mxu0 0.0
        %4550 = vmatpush1.msra.mxu0 %v4371
        %4551 = vmatprep.subr.mxu0 0.0
        %4552 = vmatpush1.msra.mxu0 %v4370
        %4553 = vmatprep.subr.mxu0 0.0
        %4554 = vmatpush1.msra.mxu0 %v4369
        %4555 = vmatprep.subr.mxu0 0.0
        %4556 = vmatpush1.msra.mxu0 %v4368
        %4557 = vmatprep.subr.mxu0 0.0
        %4558 = vmatpush1.msra.mxu0 %v4367
        %4559 = vmatprep.subr.mxu0 0.0
        %4560 = vmatpush1.msra.mxu0 %v4366
        %4561 = vmatprep.subr.mxu0 0.0
        %4562 = vmatpush1.msra.mxu0 %v4365
        %4563 = vmatprep.subr.mxu0 0.0
        %4564 = vmatpush1.msra.mxu0 %v4364
        %4565 = vmatprep.subr.mxu0 0.0
        %4566 = vmatpush1.msra.mxu0 %v4363
        %4567 = vmatprep.subr.mxu0 0.0
        %4568 = vmatpush1.msra.mxu0 %v4362
        %4569 = vmatprep.subr.mxu0 0.0
        %4570 = vmatpush1.msra.mxu0 %v4361
        %4571 = vmatprep.subr.mxu0 0.0
        %4572 = vmatpush1.msra.mxu0 %v4360
        %4573 = vmatprep.subr.mxu0 0.0
        %4574 = vmatpush1.msra.mxu0 %v4359
        %4575 = vmatprep.subr.mxu0 0.0
        %4576 = vmatpush2.msra.mxu0 %v4390
        %4577 = vmatprep.subr.mxu0 0.0
        %4578 = vmatpush2.msra.mxu0 %v4389
        %4579 = vmatprep.subr.mxu0 0.0
        %4580 = vmatpush2.msra.mxu0 %v4388
        %4581 = vmatprep.subr.mxu0 0.0
        %4582 = vmatpush2.msra.mxu0 %v4387
        %4583 = vmatprep.subr.mxu0 0.0
        %4584 = vmatpush2.msra.mxu0 %v4386
        %4585 = vmatprep.subr.mxu0 0.0
        %4586 = vmatpush2.msra.mxu0 %v4385
        %4587 = vmatprep.subr.mxu0 0.0
        %4588 = vmatpush2.msra.mxu0 %v4384
        %4589 = vmatprep.subr.mxu0 0.0
        %4590 = vmatpush2.msra.mxu0 %v4383
        %4591 = vmatprep.subr.mxu0 0.0
        %4592 = vmatpush2.msra.mxu0 %v4382
        %4593 = vmatprep.subr.mxu0 0.0
        %4594 = vmatpush2.msra.mxu0 %v4381
        %4595 = vmatprep.subr.mxu0 0.0
        %4596 = vmatpush2.msra.mxu0 %v4380
        %4597 = vmatprep.subr.mxu0 0.0
        %4598 = vmatpush2.msra.mxu0 %v4379
        %4599 = vmatprep.subr.mxu0 0.0
        %4600 = vmatpush2.msra.mxu0 %v4378
        %4601 = vmatprep.subr.mxu0 0.0
        %4602 = vmatpush2.msra.mxu0 %v4377
        %4603 = vmatprep.subr.mxu0 0.0
        %4604 = vmatpush2.msra.mxu0 %v4376
        %4605 = vmatprep.subr.mxu0 0.0
        %4606 = vmatpush2.msra.mxu0 %v4375
        %4607 = vmatprep.mubr.f32.mxu0 %v4266
        %4608 = vmatmul.mubr.f32.gmra.mxu0 %v4265
        %v4609 = vpop.f32.mrf.mxu0
        %v4610 = vadd.f32 %v4465, %v4609
        %v4611 = vpop.f32.mrf.mxu0
        %4612 = vmatprep.mubr.f32.mxu0 %v4270
        %4613 = vmatmul.mubr.f32.gmra.mxu0 %v4269
        %v4614 = vpop.f32.mrf.mxu0
        %v4615 = vadd.f32 %v4470, %v4614
        %v4616 = vpop.f32.mrf.mxu0
        %4617 = vmatprep.mubr.f32.mxu0 %v4274
        %4618 = vmatmul.mubr.f32.gmra.mxu0 %v4273
        %v4619 = vpop.f32.mrf.mxu0
        %v4620 = vadd.f32 %v4475, %v4619
        %v4621 = vpop.f32.mrf.mxu0
        %4622 = vmatprep.mubr.f32.mxu0 %v4278
        %4623 = vmatmul.mubr.f32.gmra.mxu0 %v4277
        %v4624 = vpop.f32.mrf.mxu0
        %v4625 = vadd.f32 %v4480, %v4624
        %v4626 = vpop.f32.mrf.mxu0
        %4627 = vmatprep.mubr.f32.mxu0 %v4282
        %4628 = vmatmul.mubr.f32.gmra.mxu0 %v4281
        %v4629 = vpop.f32.mrf.mxu0
        %v4630 = vadd.f32 %v4485, %v4629
        %v4631 = vpop.f32.mrf.mxu0
        %4632 = vmatprep.mubr.f32.mxu0 %v4286
        %4633 = vmatmul.mubr.f32.gmra.mxu0 %v4285
        %v4634 = vpop.f32.mrf.mxu0
        %v4635 = vadd.f32 %v4490, %v4634
        %v4636 = vpop.f32.mrf.mxu0
        %4637 = vmatprep.mubr.f32.mxu0 %v4290
        %4638 = vmatmul.mubr.f32.gmra.mxu0 %v4289
        %v4639 = vpop.f32.mrf.mxu0
        %v4640 = vadd.f32 %v4495, %v4639
        %v4641 = vpop.f32.mrf.mxu0
        %4642 = vmatprep.mubr.f32.mxu0 %v4294
        %4643 = vmatmul.mubr.f32.gmra.mxu0 %v4293
        %v4644 = vpop.f32.mrf.mxu0
        %v4645 = vadd.f32 %v4500, %v4644
        %v4646 = vpop.f32.mrf.mxu0
        %4647 = vmatprep.mubr.f32.mxu0 %v4298
        %4648 = vmatmul.mubr.f32.gmra.mxu0 %v4297
        %v4649 = vpop.f32.mrf.mxu0
        %v4650 = vadd.f32 %v4505, %v4649
        %v4651 = vpop.f32.mrf.mxu0
        %4652 = vmatprep.mubr.f32.mxu0 %v4302
        %4653 = vmatmul.mubr.f32.gmra.mxu0 %v4301
        %v4654 = vpop.f32.mrf.mxu0
        %v4655 = vadd.f32 %v4510, %v4654
        %v4656 = vpop.f32.mrf.mxu0
        %4657 = vmatprep.mubr.f32.mxu0 %v4306
        %4658 = vmatmul.mubr.f32.gmra.mxu0 %v4305
        %v4659 = vpop.f32.mrf.mxu0
        %v4660 = vadd.f32 %v4515, %v4659
        %v4661 = vpop.f32.mrf.mxu0
        %4662 = vmatprep.mubr.f32.mxu0 %v4310
        %4663 = vmatmul.mubr.f32.gmra.mxu0 %v4309
        %v4664 = vpop.f32.mrf.mxu0
        %v4665 = vadd.f32 %v4520, %v4664
        %v4666 = vpop.f32.mrf.mxu0
        %4667 = vmatprep.mubr.f32.mxu0 %v4314
        %4668 = vmatmul.mubr.f32.gmra.mxu0 %v4313
        %v4669 = vpop.f32.mrf.mxu0
        %v4670 = vadd.f32 %v4525, %v4669
        %v4671 = vpop.f32.mrf.mxu0
        %4672 = vmatprep.mubr.f32.mxu0 %v4318
        %4673 = vmatmul.mubr.f32.gmra.mxu0 %v4317
        %v4674 = vpop.f32.mrf.mxu0
        %v4675 = vadd.f32 %v4530, %v4674
        %v4676 = vpop.f32.mrf.mxu0
        %4677 = vmatprep.mubr.f32.mxu0 %v4322
        %4678 = vmatmul.mubr.f32.gmra.mxu0 %v4321
        %v4679 = vpop.f32.mrf.mxu0
        %v4680 = vadd.f32 %v4535, %v4679
        %v4681 = vpop.f32.mrf.mxu0
        %4682 = vmatprep.mubr.f32.mxu0 %v4326
        %4683 = vmatmul.mubr.f32.gmra.mxu0 %v4325
        %v4684 = vpop.f32.mrf.mxu0
        %v4685 = vadd.f32 %v4540, %v4684
        %v4686 = vpop.f32.mrf.mxu0
        %4687 = vdwg.mxu0
        %v4688 = vld [vmem:[%s374] sm:$0xff]
        %v4689 = vld [vmem:[%s374 + $0x8] sm:$0xff]
        %v4690 = vld [vmem:[%s374 + $0x10] sm:$0xff]
        %v4691 = vld [vmem:[%s374 + $0x18] sm:$0xff]
        %v4692 = vld [vmem:[%s374 + $0x20] sm:$0xff]
        %v4693 = vld [vmem:[%s374 + $0x28] sm:$0xff]
        %v4694 = vld [vmem:[%s374 + $0x30] sm:$0xff]
        %v4695 = vld [vmem:[%s374 + $0x38] sm:$0xff]
        %v4696 = vld [vmem:[%s374 + $0x40] sm:$0xff]
        %v4697 = vld [vmem:[%s374 + $0x48] sm:$0xff]
        %v4698 = vld [vmem:[%s374 + $0x50] sm:$0xff]
        %v4699 = vld [vmem:[%s374 + $0x58] sm:$0xff]
        %v4700 = vld [vmem:[%s374 + $0x60] sm:$0xff]
        %v4701 = vld [vmem:[%s374 + $0x68] sm:$0xff]
        %v4702 = vld [vmem:[%s374 + $0x70] sm:$0xff]
        %v4703 = vld [vmem:[%s374 + $0x78] sm:$0xff]
        %4705 = vset.pattern.permute.xlu0 0
        %4706 = vperm.xlu0 %4705, %v4688
        %v4707 = vpop.permute.xlu0 %4706
        %4710 = vset.pattern.permute.xlu0 0
        %4711 = vperm.xlu0 %4710, %v4689
        %v4712 = vpop.permute.xlu0 %4711
        %4715 = vset.pattern.permute.xlu0 0
        %4716 = vperm.xlu0 %4715, %v4690
        %v4717 = vpop.permute.xlu0 %4716
        %4720 = vset.pattern.permute.xlu0 0
        %4721 = vperm.xlu0 %4720, %v4691
        %v4722 = vpop.permute.xlu0 %4721
        %4725 = vset.pattern.permute.xlu0 0
        %4726 = vperm.xlu0 %4725, %v4692
        %v4727 = vpop.permute.xlu0 %4726
        %4730 = vset.pattern.permute.xlu0 0
        %4731 = vperm.xlu0 %4730, %v4693
        %v4732 = vpop.permute.xlu0 %4731
        %4735 = vset.pattern.permute.xlu0 0
        %4736 = vperm.xlu0 %4735, %v4694
        %v4737 = vpop.permute.xlu0 %4736
        %4740 = vset.pattern.permute.xlu0 0
        %4741 = vperm.xlu0 %4740, %v4695
        %v4742 = vpop.permute.xlu0 %4741
        %4745 = vset.pattern.permute.xlu0 0
        %4746 = vperm.xlu0 %4745, %v4696
        %v4747 = vpop.permute.xlu0 %4746
        %4750 = vset.pattern.permute.xlu0 0
        %4751 = vperm.xlu0 %4750, %v4697
        %v4752 = vpop.permute.xlu0 %4751
        %4755 = vset.pattern.permute.xlu0 0
        %4756 = vperm.xlu0 %4755, %v4698
        %v4757 = vpop.permute.xlu0 %4756
        %4760 = vset.pattern.permute.xlu0 0
        %4761 = vperm.xlu0 %4760, %v4699
        %v4762 = vpop.permute.xlu0 %4761
        %4765 = vset.pattern.permute.xlu0 0
        %4766 = vperm.xlu0 %4765, %v4700
        %v4767 = vpop.permute.xlu0 %4766
        %4770 = vset.pattern.permute.xlu0 0
        %4771 = vperm.xlu0 %4770, %v4701
        %v4772 = vpop.permute.xlu0 %4771
        %4775 = vset.pattern.permute.xlu0 0
        %4776 = vperm.xlu0 %4775, %v4702
        %v4777 = vpop.permute.xlu0 %4776
        %4780 = vset.pattern.permute.xlu0 0
        %4781 = vperm.xlu0 %4780, %v4703
        %v4782 = vpop.permute.xlu0 %4781
        %v4784 = vmul.f32 %v4610, %v4707
        %v4785 = vmul.f32 %v4615, %v4712
        %v4786 = vmul.f32 %v4620, %v4717
        %v4787 = vmul.f32 %v4625, %v4722
        %v4788 = vmul.f32 %v4630, %v4727
        %v4789 = vmul.f32 %v4635, %v4732
        %v4790 = vmul.f32 %v4640, %v4737
        %v4791 = vmul.f32 %v4645, %v4742
        %v4792 = vmul.f32 %v4650, %v4747
        %v4793 = vmul.f32 %v4655, %v4752
        %v4794 = vmul.f32 %v4660, %v4757
        %v4795 = vmul.f32 %v4665, %v4762
        %v4796 = vmul.f32 %v4670, %v4767
        %v4797 = vmul.f32 %v4675, %v4772
        %v4798 = vmul.f32 %v4680, %v4777
        %v4799 = vmul.f32 %v4685, %v4782
        %4800 = vst [vmem:[%s359] sm:$0xff] %v4784
        %4801 = vst [vmem:[%s359 + $0x8] sm:$0xff] %v4785
        %4802 = vst [vmem:[%s359 + $0x10] sm:$0xff] %v4786
        %4803 = vst [vmem:[%s359 + $0x18] sm:$0xff] %v4787
        %4804 = vst [vmem:[%s359 + $0x20] sm:$0xff] %v4788
        %4805 = vst [vmem:[%s359 + $0x28] sm:$0xff] %v4789
        %4806 = vst [vmem:[%s359 + $0x30] sm:$0xff] %v4790
        %4807 = vst [vmem:[%s359 + $0x38] sm:$0xff] %v4791
        %4808 = vst [vmem:[%s359 + $0x40] sm:$0xff] %v4792
        %4809 = vst [vmem:[%s359 + $0x48] sm:$0xff] %v4793
        %4810 = vst [vmem:[%s359 + $0x50] sm:$0xff] %v4794
        %4811 = vst [vmem:[%s359 + $0x58] sm:$0xff] %v4795
        %4812 = vst [vmem:[%s359 + $0x60] sm:$0xff] %v4796
        %4813 = vst [vmem:[%s359 + $0x68] sm:$0xff] %v4797
        %4814 = vst [vmem:[%s359 + $0x70] sm:$0xff] %v4798
        %4815 = vst [vmem:[%s359 + $0x78] sm:$0xff] %v4799
        %s4816 = sand.u32 %s169, 1
        %s4817 = scalar_lea.sflag [#allocation4], %s4816
        %s4818 = sand.u32 %s169, 1
        %s4819 = smul.addr %s4818, 128
        %s4820 = scalar_lea.vmem [#allocation11], %s4819
        // Predicated region
        $region65: #{tpu_custom_call.1} parent=43 // pred_check
          %p4821 = pneg %p179
        $region66: #{tpu_custom_call.1} parent=43 // pred_check_branch
          %4823 = sbr.rel (%p4821) target = $region68
        $region67: #{tpu_custom_call.1} parent=43 // pred_region
          %s4824 = smul.u32 16, %s25
          %s4825 = ssub.s32 20, %s4824
          %p4826 = scmp.lt.s32.totalorder %s4825, 16
          %s4827 = scalar_select %p4826, %s4825, 16
          %s4828 = smul.u32 128, %s4827
          %s4830 = ssub.s32 2048, %s4828
          %4831 = vsyncadd %s4817, %s4830
          %p4832 = scmp.ne.s32.totalorder 0, %s4828
          %s4833 = smul.addr %s4824, 128
          %s4834 = scalar_lea.hbm %s6, %s4833
          %s4835 = smul.u32 8, %s4827
          %s4836 = sshll.u32 %s4820, 4
          %s4837 = int_to_ptr.vmem [resolvable:$true] %s4836
          %s4838 = sshll.u32 %s4835, 4
          %4842 = dma.vmem_to_hbm [thread:$0]  (%p4832), %s4837, %s4838, %s4834, %s4817, 128, 128, 8
        $region68: #{tpu_custom_call.1} parent=43 // pred_fallthru
          _
      $region44: #{tpu_custom_call.1} parent=5 // pred_fallthru
        _
      %p4843 = scmp.le.s32.totalorder 2, %s20
      // Predicated region
      $region69: #{tpu_custom_call.1} parent=5 // pred_check
        %p4844 = pneg %p4843
      $region70: #{tpu_custom_call.1} parent=5 // pred_check_branch
        %4846 = sbr.rel (%p4844) target = $region72
      $region71: #{tpu_custom_call.1} parent=5 // pred_region
        %s4847 = ssub.s32 %s20, 2
        // Predicated region
        $region73: #{tpu_custom_call.1} parent=71 // pred_check
          %p4848 = pneg %p185
        $region74: #{tpu_custom_call.1} parent=71 // pred_check_branch
          %4850 = sbr.rel (%p4848) target = $region76
        $region75: #{tpu_custom_call.1} parent=71 // pred_region
          %s4851 = sand.u32 %s170, 1
          %s4852 = scalar_lea.sflag [#allocation4], %s4851
          %s4853 = sand.u32 %s170, 1
          %s4854 = smul.addr %s4853, 128
          %s4855 = scalar_lea.vmem [#allocation11], %s4854
          %4856 = dma.done %s4852, 2048
        $region76: #{tpu_custom_call.1} parent=71 // pred_fallthru
          _
      $region72: #{tpu_custom_call.1} parent=5 // pred_fallthru
        _
    $region6: #{tpu_custom_call.1} parent=1 // loop_footer
      %s24 = sadd.s32 1, %s20
    $region7: #{tpu_custom_call.1} parent=1 // loop_footer_branch
      %19 = sbr.rel target = $region3
    $region8: #{tpu_custom_call.1} parent=1 // loop_exit
      _
    %4857 = vsyncpa [#allocation3], 1
    %s4858 = scalar_lea.sflag [#allocation3], 1
    %4859 = vsyncpa %s4858, 1
    %4860 = vsyncpa [#allocation6], 1
    %4861 = vsyncpa [#allocation9], 1
    %4862 = vsyncpa [#allocation4], 1
    %s4863 = scalar_lea.sflag [#allocation4], 1
    %4864 = vsyncpa %s4863, 1

</llo_original>
